<compile_context>
chip_gen: v7x
topology: tpu7x:2x2x1
jax: 0.10.0
libtpu: 0.0.40
codegen_flags: <defaults>
</compile_context>

<pallas_src>
import math

import jax
import jax.numpy as jnp
from jax.experimental import pallas as pl
from jax.experimental.pallas import tpu as pltpu

# Caps_Layer defaults
NUM_CAPSULE = 5
DIM_CAPSULE = 5
ROUTINGS = 4
T_EPSILON = 1e-7

_OUT_LANES = 128  # lane-padded width of the flattened (NC*DC = 25) output


def _caps_kernel(x_ref, w_ref, out_ref):
    # x_ref:   (TB*J, Din)   TB batch elements, flattened over input capsules
    # w_ref:   (Din, NC*DC)  shared weights
    # out_ref: (TB, 128)     lane-padded flattened output capsules
    nc, dc = NUM_CAPSULE, DIM_CAPSULE
    ncdc = nc * dc
    tb, out_lanes = out_ref.shape
    rows, _ = x_ref.shape
    j = rows // tb  # input_num_capsule

    # One fused MXU matmul for every capsule and every batch row of the block.
    u = jnp.dot(x_ref[...], w_ref[...], preferred_element_type=jnp.float32)
    # (TB*J, NC*DC) -> (TB, J, NC*DC); J (=8) is sublane-aligned so this is a
    # pure re-tiling of the leading dims.
    u3 = u.reshape(tb, j, ncdc)
    # Per-output-capsule views: u_n[n][t, j, k] == u_hat[t, n, j, k] of the ref.
    u_n = [u3[:, :, n * dc:(n + 1) * dc] for n in range(nc)]

    # Routing logits stored as (TB, J, NC) so the softmax axis is the lane axis.
    b3 = jnp.zeros((tb, j, nc), dtype=jnp.float32)

    outs = None
    for it in range(ROUTINGS):
        # c = softmax(b) over the num_capsule axis (lanes); reciprocal -> EUP.
        m = jnp.max(b3, axis=-1, keepdims=True)
        e = jnp.exp(b3 - m)
        c3 = e * pl.reciprocal(jnp.sum(e, axis=-1, keepdims=True), approx=True)

        outs = []
        bcols = []
        for n in range(nc):
            # einsum('bij,bijk->bik'): o[t, k] = sum_j c[t, j, n] * u[t, j, n, k]
            o_n = jnp.sum(c3[:, :, n:n + 1] * u_n[n], axis=1)        # (TB, DC)
            # squash: x / sqrt(sum(x^2) + eps)  (rsqrt -> EUP slot)
            s_n = jnp.sum(o_n * o_n, axis=-1, keepdims=True)         # (TB, 1)
            o_n = o_n * jax.lax.rsqrt(s_n + T_EPSILON)
            outs.append(o_n)
            if it < ROUTINGS - 1:
                # einsum('bik,bijk->bij'): b[t, j, n] = sum_k o[t, k] * u[t, j, n, k]
                bcols.append(
                    jnp.sum(u_n[n] * o_n[:, None, :], axis=-1, keepdims=True))  # (TB, J, 1)
        if it < ROUTINGS - 1:
            b3 = jnp.concatenate(bcols, axis=-1)                     # (TB, J, NC)

    out_full = jnp.concatenate(outs, axis=-1)                        # (TB, NC*DC)
    pad = out_lanes - ncdc
    out_ref[...] = jnp.concatenate(
        [out_full, jnp.zeros((tb, pad), jnp.float32)], axis=-1)      # dense 128-lane store


def caps_layer(x, W, *, tb=None):
    """x: (B, J, Din) float32;  W: (1, Din, NC*DC) float32 (torch parameter shape)."""
    B, J, Din = x.shape
    ncdc = NUM_CAPSULE * DIM_CAPSULE

    # Batch-block size: multiple of 8 (sublanes); default keeps the per-block
    # VMEM footprint tiny (well under the 32 MiB scoped limit on every gen).
    if tb is None:
        tb = 256
    tb = int(min(tb, ((B + 7) // 8) * 8))
    tb = max(8, ((tb + 7) // 8) * 8)
    Bp = ((B + tb - 1) // tb) * tb

    x_p = x if Bp == B else jnp.concatenate(
        [x, jnp.zeros((Bp - B, J, Din), x.dtype)], axis=0)
    x_flat = x_p.reshape(Bp * J, Din)       # flatten (batch, capsule) rows
    w = W.reshape(Din, ncdc)                # shared weight, no transpose needed

    out = pl.pallas_call(
        _caps_kernel,
        out_shape=jax.ShapeDtypeStruct((Bp, _OUT_LANES), jnp.float32),
        grid=(Bp // tb,),
        in_specs=[
            pl.BlockSpec((tb * J, Din), lambda b: (b, 0)),
            pl.BlockSpec((Din, ncdc), lambda b: (0, 0)),
        ],
        out_specs=pl.BlockSpec((tb, _OUT_LANES), lambda b: (b, 0)),
        compiler_params=pltpu.CompilerParams(
            dimension_semantics=("parallel",),
            vmem_limit_bytes=32 * 1024 * 1024,
        ),
    )(x_flat, w)

    return out[:B, :ncdc].reshape(B, NUM_CAPSULE, DIM_CAPSULE)


def caps_layer_ref(x, W):
    """Pure-JAX reference mirroring the PyTorch forward (routing math in exact f32)."""
    B, J, Din = x.shape
    u = jnp.matmul(x, W)                                    # (B, J, NC*DC)
    u = u.reshape(B, J, NUM_CAPSULE, DIM_CAPSULE).transpose(0, 2, 1, 3)  # (B, NC, J, DC)
    b = jnp.zeros(u.shape[:3], jnp.float32)                 # (B, NC, J)
    outputs = None
    for i in range(ROUTINGS):
        c = jax.nn.softmax(b, axis=1)                       # softmax over num_capsule
        outputs = jnp.sum(c[..., None] * u, axis=2)         # (B, NC, DC)
        s = jnp.sum(outputs ** 2, axis=-1, keepdims=True)
        outputs = outputs / jnp.sqrt(s + T_EPSILON)
        if i < ROUTINGS - 1:
            b = jnp.sum(outputs[:, :, None, :] * u, axis=-1)  # (B, NC, J)
    return outputs


if __name__ == "__main__":
    key = jax.random.PRNGKey(0)
    B, J, Din = 16, 8, 32  # batch, input_num_capsule, input_dim_capsule

    kx, kw = jax.random.split(key)
    x = jax.random.normal(kx, (B, J, Din), dtype=jnp.float32)

    # Deterministic xavier_normal_-style init for W of shape (1, Din, NC*DC).
    fan_in = Din * NUM_CAPSULE * DIM_CAPSULE
    fan_out = 1 * NUM_CAPSULE * DIM_CAPSULE
    std = math.sqrt(2.0 / (fan_in + fan_out))
    W = std * jax.random.normal(kw, (1, Din, NUM_CAPSULE * DIM_CAPSULE), dtype=jnp.float32)

    # tb=8 -> 2 grid steps over the batch (exercises blocking + megacore sharding).
    out = jax.block_until_ready(caps_layer(x, W, tb=8))
    assert out.shape == (B, NUM_CAPSULE, DIM_CAPSULE)

    ref = jax.block_until_ready(caps_layer_ref(x, W))
    assert jnp.allclose(out, ref, rtol=2e-3, atol=2e-3), float(jnp.max(jnp.abs(out - ref)))

    print("KERNEL_OK")
</pallas_src>

<mosaic_0001>
module attributes {stable_mosaic.version = 11 : i64} {
  func.func @_caps_kernel(%arg0: i32, %arg1: memref<64x32xf32, #tpu.memory_space<vmem>>, %arg2: memref<32x25xf32, #tpu.memory_space<vmem>>, %arg3: memref<8x128xf32, #tpu.memory_space<vmem>>) attributes {dimension_semantics = [#tpu.dimension_semantics<parallel>], iteration_bounds = array<i64: 2>, scalar_prefetch = 0 : i64, scratch_operands = 0 : i64, tpu.core_type = #tpu.core_type<tc>, window_params = [{transform_indices = @transform_0, window_bounds = array<i64: 64, 32>}, {pipeline_mode = #tpu.pipeline_mode<synchronous>, transform_indices = @transform_1, window_bounds = array<i64: 32, 25>}, {transform_indices = @transform_2, window_bounds = array<i64: 8, 128>}]} {
    %c0 = arith.constant 0 : index
    %c0_0 = arith.constant 0 : index
    %0 = vector.load %arg1[%c0, %c0_0] : memref<64x32xf32, #tpu.memory_space<vmem>>, vector<64x32xf32>
    %c0_1 = arith.constant 0 : index
    %c0_2 = arith.constant 0 : index
    %1 = vector.load %arg2[%c0_1, %c0_2] : memref<32x25xf32, #tpu.memory_space<vmem>>, vector<32x25xf32>
    %cst = arith.constant dense<0.000000e+00> : vector<64x25xf32>
    %2 = tpu.matmul %0, %1, %cst {dimension_numbers = #tpu.dot_dimension_numbers<[1], [0], [0], [1], [0, 0, 1, 1], [], []>} : vector<64x32xf32>, vector<32x25xf32>, vector<64x25xf32> -> vector<64x25xf32>
    %3 = vector.shape_cast %2 : vector<64x25xf32> to vector<8x8x25xf32>
    %4 = vector.extract_strided_slice %3 {offsets = [0, 0, 0], sizes = [8, 8, 5], strides = [1, 1, 1]} : vector<8x8x25xf32> to vector<8x8x5xf32>
    %5 = vector.extract_strided_slice %3 {offsets = [0, 0, 5], sizes = [8, 8, 5], strides = [1, 1, 1]} : vector<8x8x25xf32> to vector<8x8x5xf32>
    %6 = vector.extract_strided_slice %3 {offsets = [0, 0, 10], sizes = [8, 8, 5], strides = [1, 1, 1]} : vector<8x8x25xf32> to vector<8x8x5xf32>
    %7 = vector.extract_strided_slice %3 {offsets = [0, 0, 15], sizes = [8, 8, 5], strides = [1, 1, 1]} : vector<8x8x25xf32> to vector<8x8x5xf32>
    %8 = vector.extract_strided_slice %3 {offsets = [0, 0, 20], sizes = [8, 8, 5], strides = [1, 1, 1]} : vector<8x8x25xf32> to vector<8x8x5xf32>
    %cst_3 = arith.constant 0.000000e+00 : f32
    %9 = vector.broadcast %cst_3 : f32 to vector<8x8x5xf32>
    %cst_4 = arith.constant dense<0xFF800000> : vector<8x8xf32>
    %10 = vector.multi_reduction <maximumf>, %9, %cst_4 [2] : vector<8x8x5xf32> to vector<8x8xf32>
    %11 = vector.shape_cast %10 : vector<8x8xf32> to vector<8x8x1xf32>
    %12 = vector.broadcast %11 : vector<8x8x1xf32> to vector<8x8x5xf32>
    %13 = arith.subf %9, %12 : vector<8x8x5xf32>
    %14 = math.exp %13 : vector<8x8x5xf32>
    %cst_5 = arith.constant dense<0.000000e+00> : vector<8x8xf32>
    %15 = vector.multi_reduction <add>, %14, %cst_5 [2] : vector<8x8x5xf32> to vector<8x8xf32>
    %16 = vector.shape_cast %15 : vector<8x8xf32> to vector<8x8x1xf32>
    %17 = tpu.reciprocal %16 {approx = true} : vector<8x8x1xf32> -> vector<8x8x1xf32>
    %18 = vector.broadcast %17 : vector<8x8x1xf32> to vector<8x8x5xf32>
    %19 = arith.mulf %14, %18 : vector<8x8x5xf32>
    %20 = vector.extract_strided_slice %19 {offsets = [0, 0, 0], sizes = [8, 8, 1], strides = [1, 1, 1]} : vector<8x8x5xf32> to vector<8x8x1xf32>
    %21 = vector.broadcast %20 : vector<8x8x1xf32> to vector<8x8x5xf32>
    %22 = arith.mulf %21, %4 : vector<8x8x5xf32>
    %cst_6 = arith.constant dense<0.000000e+00> : vector<8x5xf32>
    %23 = vector.multi_reduction <add>, %22, %cst_6 [1] : vector<8x8x5xf32> to vector<8x5xf32>
    %24 = arith.mulf %23, %23 : vector<8x5xf32>
    %cst_7 = arith.constant dense<0.000000e+00> : vector<8xf32>
    %25 = vector.multi_reduction <add>, %24, %cst_7 [1] : vector<8x5xf32> to vector<8xf32>
    %26 = vector.shape_cast %25 : vector<8xf32> to vector<8x1xf32>
    %cst_8 = arith.constant 1.000000e-07 : f32
    %27 = vector.broadcast %cst_8 : f32 to vector<8x1xf32>
    %28 = arith.addf %26, %27 : vector<8x1xf32>
    %29 = math.rsqrt %28 : vector<8x1xf32>
    %30 = vector.broadcast %29 : vector<8x1xf32> to vector<8x5xf32>
    %31 = arith.mulf %23, %30 : vector<8x5xf32>
    %32 = vector.shape_cast %31 : vector<8x5xf32> to vector<8x1x5xf32>
    %33 = vector.broadcast %32 : vector<8x1x5xf32> to vector<8x8x5xf32>
    %34 = arith.mulf %4, %33 : vector<8x8x5xf32>
    %cst_9 = arith.constant dense<0.000000e+00> : vector<8x8xf32>
    %35 = vector.multi_reduction <add>, %34, %cst_9 [2] : vector<8x8x5xf32> to vector<8x8xf32>
    %36 = vector.shape_cast %35 : vector<8x8xf32> to vector<8x8x1xf32>
    %37 = vector.extract_strided_slice %19 {offsets = [0, 0, 1], sizes = [8, 8, 1], strides = [1, 1, 1]} : vector<8x8x5xf32> to vector<8x8x1xf32>
    %38 = vector.broadcast %37 : vector<8x8x1xf32> to vector<8x8x5xf32>
    %39 = arith.mulf %38, %5 : vector<8x8x5xf32>
    %cst_10 = arith.constant dense<0.000000e+00> : vector<8x5xf32>
    %40 = vector.multi_reduction <add>, %39, %cst_10 [1] : vector<8x8x5xf32> to vector<8x5xf32>
    %41 = arith.mulf %40, %40 : vector<8x5xf32>
    %cst_11 = arith.constant dense<0.000000e+00> : vector<8xf32>
    %42 = vector.multi_reduction <add>, %41, %cst_11 [1] : vector<8x5xf32> to vector<8xf32>
    %43 = vector.shape_cast %42 : vector<8xf32> to vector<8x1xf32>
    %cst_12 = arith.constant 1.000000e-07 : f32
    %44 = vector.broadcast %cst_12 : f32 to vector<8x1xf32>
    %45 = arith.addf %43, %44 : vector<8x1xf32>
    %46 = math.rsqrt %45 : vector<8x1xf32>
    %47 = vector.broadcast %46 : vector<8x1xf32> to vector<8x5xf32>
    %48 = arith.mulf %40, %47 : vector<8x5xf32>
    %49 = vector.shape_cast %48 : vector<8x5xf32> to vector<8x1x5xf32>
    %50 = vector.broadcast %49 : vector<8x1x5xf32> to vector<8x8x5xf32>
    %51 = arith.mulf %5, %50 : vector<8x8x5xf32>
    %cst_13 = arith.constant dense<0.000000e+00> : vector<8x8xf32>
    %52 = vector.multi_reduction <add>, %51, %cst_13 [2] : vector<8x8x5xf32> to vector<8x8xf32>
    %53 = vector.shape_cast %52 : vector<8x8xf32> to vector<8x8x1xf32>
    %54 = vector.extract_strided_slice %19 {offsets = [0, 0, 2], sizes = [8, 8, 1], strides = [1, 1, 1]} : vector<8x8x5xf32> to vector<8x8x1xf32>
    %55 = vector.broadcast %54 : vector<8x8x1xf32> to vector<8x8x5xf32>
    %56 = arith.mulf %55, %6 : vector<8x8x5xf32>
    %cst_14 = arith.constant dense<0.000000e+00> : vector<8x5xf32>
    %57 = vector.multi_reduction <add>, %56, %cst_14 [1] : vector<8x8x5xf32> to vector<8x5xf32>
    %58 = arith.mulf %57, %57 : vector<8x5xf32>
    %cst_15 = arith.constant dense<0.000000e+00> : vector<8xf32>
    %59 = vector.multi_reduction <add>, %58, %cst_15 [1] : vector<8x5xf32> to vector<8xf32>
    %60 = vector.shape_cast %59 : vector<8xf32> to vector<8x1xf32>
    %cst_16 = arith.constant 1.000000e-07 : f32
    %61 = vector.broadcast %cst_16 : f32 to vector<8x1xf32>
    %62 = arith.addf %60, %61 : vector<8x1xf32>
    %63 = math.rsqrt %62 : vector<8x1xf32>
    %64 = vector.broadcast %63 : vector<8x1xf32> to vector<8x5xf32>
    %65 = arith.mulf %57, %64 : vector<8x5xf32>
    %66 = vector.shape_cast %65 : vector<8x5xf32> to vector<8x1x5xf32>
    %67 = vector.broadcast %66 : vector<8x1x5xf32> to vector<8x8x5xf32>
    %68 = arith.mulf %6, %67 : vector<8x8x5xf32>
    %cst_17 = arith.constant dense<0.000000e+00> : vector<8x8xf32>
    %69 = vector.multi_reduction <add>, %68, %cst_17 [2] : vector<8x8x5xf32> to vector<8x8xf32>
    %70 = vector.shape_cast %69 : vector<8x8xf32> to vector<8x8x1xf32>
    %71 = vector.extract_strided_slice %19 {offsets = [0, 0, 3], sizes = [8, 8, 1], strides = [1, 1, 1]} : vector<8x8x5xf32> to vector<8x8x1xf32>
    %72 = vector.broadcast %71 : vector<8x8x1xf32> to vector<8x8x5xf32>
    %73 = arith.mulf %72, %7 : vector<8x8x5xf32>
    %cst_18 = arith.constant dense<0.000000e+00> : vector<8x5xf32>
    %74 = vector.multi_reduction <add>, %73, %cst_18 [1] : vector<8x8x5xf32> to vector<8x5xf32>
    %75 = arith.mulf %74, %74 : vector<8x5xf32>
    %cst_19 = arith.constant dense<0.000000e+00> : vector<8xf32>
    %76 = vector.multi_reduction <add>, %75, %cst_19 [1] : vector<8x5xf32> to vector<8xf32>
    %77 = vector.shape_cast %76 : vector<8xf32> to vector<8x1xf32>
    %cst_20 = arith.constant 1.000000e-07 : f32
    %78 = vector.broadcast %cst_20 : f32 to vector<8x1xf32>
    %79 = arith.addf %77, %78 : vector<8x1xf32>
    %80 = math.rsqrt %79 : vector<8x1xf32>
    %81 = vector.broadcast %80 : vector<8x1xf32> to vector<8x5xf32>
    %82 = arith.mulf %74, %81 : vector<8x5xf32>
    %83 = vector.shape_cast %82 : vector<8x5xf32> to vector<8x1x5xf32>
    %84 = vector.broadcast %83 : vector<8x1x5xf32> to vector<8x8x5xf32>
    %85 = arith.mulf %7, %84 : vector<8x8x5xf32>
    %cst_21 = arith.constant dense<0.000000e+00> : vector<8x8xf32>
    %86 = vector.multi_reduction <add>, %85, %cst_21 [2] : vector<8x8x5xf32> to vector<8x8xf32>
    %87 = vector.shape_cast %86 : vector<8x8xf32> to vector<8x8x1xf32>
    %88 = vector.extract_strided_slice %19 {offsets = [0, 0, 4], sizes = [8, 8, 1], strides = [1, 1, 1]} : vector<8x8x5xf32> to vector<8x8x1xf32>
    %89 = vector.broadcast %88 : vector<8x8x1xf32> to vector<8x8x5xf32>
    %90 = arith.mulf %89, %8 : vector<8x8x5xf32>
    %cst_22 = arith.constant dense<0.000000e+00> : vector<8x5xf32>
    %91 = vector.multi_reduction <add>, %90, %cst_22 [1] : vector<8x8x5xf32> to vector<8x5xf32>
    %92 = arith.mulf %91, %91 : vector<8x5xf32>
    %cst_23 = arith.constant dense<0.000000e+00> : vector<8xf32>
    %93 = vector.multi_reduction <add>, %92, %cst_23 [1] : vector<8x5xf32> to vector<8xf32>
    %94 = vector.shape_cast %93 : vector<8xf32> to vector<8x1xf32>
    %cst_24 = arith.constant 1.000000e-07 : f32
    %95 = vector.broadcast %cst_24 : f32 to vector<8x1xf32>
    %96 = arith.addf %94, %95 : vector<8x1xf32>
    %97 = math.rsqrt %96 : vector<8x1xf32>
    %98 = vector.broadcast %97 : vector<8x1xf32> to vector<8x5xf32>
    %99 = arith.mulf %91, %98 : vector<8x5xf32>
    %100 = vector.shape_cast %99 : vector<8x5xf32> to vector<8x1x5xf32>
    %101 = vector.broadcast %100 : vector<8x1x5xf32> to vector<8x8x5xf32>
    %102 = arith.mulf %8, %101 : vector<8x8x5xf32>
    %cst_25 = arith.constant dense<0.000000e+00> : vector<8x8xf32>
    %103 = vector.multi_reduction <add>, %102, %cst_25 [2] : vector<8x8x5xf32> to vector<8x8xf32>
    %104 = vector.shape_cast %103 : vector<8x8xf32> to vector<8x8x1xf32>
    %105 = tpu.concatenate %36, %53, %70, %87, %104 in 2 : vector<8x8x1xf32>, vector<8x8x1xf32>, vector<8x8x1xf32>, vector<8x8x1xf32>, vector<8x8x1xf32> -> vector<8x8x5xf32>
    %cst_26 = arith.constant dense<0xFF800000> : vector<8x8xf32>
    %106 = vector.multi_reduction <maximumf>, %105, %cst_26 [2] : vector<8x8x5xf32> to vector<8x8xf32>
    %107 = vector.shape_cast %106 : vector<8x8xf32> to vector<8x8x1xf32>
    %108 = vector.broadcast %107 : vector<8x8x1xf32> to vector<8x8x5xf32>
    %109 = arith.subf %105, %108 : vector<8x8x5xf32>
    %110 = math.exp %109 : vector<8x8x5xf32>
    %cst_27 = arith.constant dense<0.000000e+00> : vector<8x8xf32>
    %111 = vector.multi_reduction <add>, %110, %cst_27 [2] : vector<8x8x5xf32> to vector<8x8xf32>
    %112 = vector.shape_cast %111 : vector<8x8xf32> to vector<8x8x1xf32>
    %113 = tpu.reciprocal %112 {approx = true} : vector<8x8x1xf32> -> vector<8x8x1xf32>
    %114 = vector.broadcast %113 : vector<8x8x1xf32> to vector<8x8x5xf32>
    %115 = arith.mulf %110, %114 : vector<8x8x5xf32>
    %116 = vector.extract_strided_slice %115 {offsets = [0, 0, 0], sizes = [8, 8, 1], strides = [1, 1, 1]} : vector<8x8x5xf32> to vector<8x8x1xf32>
    %117 = vector.broadcast %116 : vector<8x8x1xf32> to vector<8x8x5xf32>
    %118 = arith.mulf %117, %4 : vector<8x8x5xf32>
    %cst_28 = arith.constant dense<0.000000e+00> : vector<8x5xf32>
    %119 = vector.multi_reduction <add>, %118, %cst_28 [1] : vector<8x8x5xf32> to vector<8x5xf32>
    %120 = arith.mulf %119, %119 : vector<8x5xf32>
    %cst_29 = arith.constant dense<0.000000e+00> : vector<8xf32>
    %121 = vector.multi_reduction <add>, %120, %cst_29 [1] : vector<8x5xf32> to vector<8xf32>
    %122 = vector.shape_cast %121 : vector<8xf32> to vector<8x1xf32>
    %cst_30 = arith.constant 1.000000e-07 : f32
    %123 = vector.broadcast %cst_30 : f32 to vector<8x1xf32>
    %124 = arith.addf %122, %123 : vector<8x1xf32>
    %125 = math.rsqrt %124 : vector<8x1xf32>
    %126 = vector.broadcast %125 : vector<8x1xf32> to vector<8x5xf32>
    %127 = arith.mulf %119, %126 : vector<8x5xf32>
    %128 = vector.shape_cast %127 : vector<8x5xf32> to vector<8x1x5xf32>
    %129 = vector.broadcast %128 : vector<8x1x5xf32> to vector<8x8x5xf32>
    %130 = arith.mulf %4, %129 : vector<8x8x5xf32>
    %cst_31 = arith.constant dense<0.000000e+00> : vector<8x8xf32>
    %131 = vector.multi_reduction <add>, %130, %cst_31 [2] : vector<8x8x5xf32> to vector<8x8xf32>
    %132 = vector.shape_cast %131 : vector<8x8xf32> to vector<8x8x1xf32>
    %133 = vector.extract_strided_slice %115 {offsets = [0, 0, 1], sizes = [8, 8, 1], strides = [1, 1, 1]} : vector<8x8x5xf32> to vector<8x8x1xf32>
    %134 = vector.broadcast %133 : vector<8x8x1xf32> to vector<8x8x5xf32>
    %135 = arith.mulf %134, %5 : vector<8x8x5xf32>
    %cst_32 = arith.constant dense<0.000000e+00> : vector<8x5xf32>
    %136 = vector.multi_reduction <add>, %135, %cst_32 [1] : vector<8x8x5xf32> to vector<8x5xf32>
    %137 = arith.mulf %136, %136 : vector<8x5xf32>
    %cst_33 = arith.constant dense<0.000000e+00> : vector<8xf32>
    %138 = vector.multi_reduction <add>, %137, %cst_33 [1] : vector<8x5xf32> to vector<8xf32>
    %139 = vector.shape_cast %138 : vector<8xf32> to vector<8x1xf32>
    %cst_34 = arith.constant 1.000000e-07 : f32
    %140 = vector.broadcast %cst_34 : f32 to vector<8x1xf32>
    %141 = arith.addf %139, %140 : vector<8x1xf32>
    %142 = math.rsqrt %141 : vector<8x1xf32>
    %143 = vector.broadcast %142 : vector<8x1xf32> to vector<8x5xf32>
    %144 = arith.mulf %136, %143 : vector<8x5xf32>
    %145 = vector.shape_cast %144 : vector<8x5xf32> to vector<8x1x5xf32>
    %146 = vector.broadcast %145 : vector<8x1x5xf32> to vector<8x8x5xf32>
    %147 = arith.mulf %5, %146 : vector<8x8x5xf32>
    %cst_35 = arith.constant dense<0.000000e+00> : vector<8x8xf32>
    %148 = vector.multi_reduction <add>, %147, %cst_35 [2] : vector<8x8x5xf32> to vector<8x8xf32>
    %149 = vector.shape_cast %148 : vector<8x8xf32> to vector<8x8x1xf32>
    %150 = vector.extract_strided_slice %115 {offsets = [0, 0, 2], sizes = [8, 8, 1], strides = [1, 1, 1]} : vector<8x8x5xf32> to vector<8x8x1xf32>
    %151 = vector.broadcast %150 : vector<8x8x1xf32> to vector<8x8x5xf32>
    %152 = arith.mulf %151, %6 : vector<8x8x5xf32>
    %cst_36 = arith.constant dense<0.000000e+00> : vector<8x5xf32>
    %153 = vector.multi_reduction <add>, %152, %cst_36 [1] : vector<8x8x5xf32> to vector<8x5xf32>
    %154 = arith.mulf %153, %153 : vector<8x5xf32>
    %cst_37 = arith.constant dense<0.000000e+00> : vector<8xf32>
    %155 = vector.multi_reduction <add>, %154, %cst_37 [1] : vector<8x5xf32> to vector<8xf32>
    %156 = vector.shape_cast %155 : vector<8xf32> to vector<8x1xf32>
    %cst_38 = arith.constant 1.000000e-07 : f32
    %157 = vector.broadcast %cst_38 : f32 to vector<8x1xf32>
    %158 = arith.addf %156, %157 : vector<8x1xf32>
    %159 = math.rsqrt %158 : vector<8x1xf32>
    %160 = vector.broadcast %159 : vector<8x1xf32> to vector<8x5xf32>
    %161 = arith.mulf %153, %160 : vector<8x5xf32>
    %162 = vector.shape_cast %161 : vector<8x5xf32> to vector<8x1x5xf32>
    %163 = vector.broadcast %162 : vector<8x1x5xf32> to vector<8x8x5xf32>
    %164 = arith.mulf %6, %163 : vector<8x8x5xf32>
    %cst_39 = arith.constant dense<0.000000e+00> : vector<8x8xf32>
    %165 = vector.multi_reduction <add>, %164, %cst_39 [2] : vector<8x8x5xf32> to vector<8x8xf32>
    %166 = vector.shape_cast %165 : vector<8x8xf32> to vector<8x8x1xf32>
    %167 = vector.extract_strided_slice %115 {offsets = [0, 0, 3], sizes = [8, 8, 1], strides = [1, 1, 1]} : vector<8x8x5xf32> to vector<8x8x1xf32>
    %168 = vector.broadcast %167 : vector<8x8x1xf32> to vector<8x8x5xf32>
    %169 = arith.mulf %168, %7 : vector<8x8x5xf32>
    %cst_40 = arith.constant dense<0.000000e+00> : vector<8x5xf32>
    %170 = vector.multi_reduction <add>, %169, %cst_40 [1] : vector<8x8x5xf32> to vector<8x5xf32>
    %171 = arith.mulf %170, %170 : vector<8x5xf32>
    %cst_41 = arith.constant dense<0.000000e+00> : vector<8xf32>
    %172 = vector.multi_reduction <add>, %171, %cst_41 [1] : vector<8x5xf32> to vector<8xf32>
    %173 = vector.shape_cast %172 : vector<8xf32> to vector<8x1xf32>
    %cst_42 = arith.constant 1.000000e-07 : f32
    %174 = vector.broadcast %cst_42 : f32 to vector<8x1xf32>
    %175 = arith.addf %173, %174 : vector<8x1xf32>
    %176 = math.rsqrt %175 : vector<8x1xf32>
    %177 = vector.broadcast %176 : vector<8x1xf32> to vector<8x5xf32>
    %178 = arith.mulf %170, %177 : vector<8x5xf32>
    %179 = vector.shape_cast %178 : vector<8x5xf32> to vector<8x1x5xf32>
    %180 = vector.broadcast %179 : vector<8x1x5xf32> to vector<8x8x5xf32>
    %181 = arith.mulf %7, %180 : vector<8x8x5xf32>
    %cst_43 = arith.constant dense<0.000000e+00> : vector<8x8xf32>
    %182 = vector.multi_reduction <add>, %181, %cst_43 [2] : vector<8x8x5xf32> to vector<8x8xf32>
    %183 = vector.shape_cast %182 : vector<8x8xf32> to vector<8x8x1xf32>
    %184 = vector.extract_strided_slice %115 {offsets = [0, 0, 4], sizes = [8, 8, 1], strides = [1, 1, 1]} : vector<8x8x5xf32> to vector<8x8x1xf32>
    %185 = vector.broadcast %184 : vector<8x8x1xf32> to vector<8x8x5xf32>
    %186 = arith.mulf %185, %8 : vector<8x8x5xf32>
    %cst_44 = arith.constant dense<0.000000e+00> : vector<8x5xf32>
    %187 = vector.multi_reduction <add>, %186, %cst_44 [1] : vector<8x8x5xf32> to vector<8x5xf32>
    %188 = arith.mulf %187, %187 : vector<8x5xf32>
    %cst_45 = arith.constant dense<0.000000e+00> : vector<8xf32>
    %189 = vector.multi_reduction <add>, %188, %cst_45 [1] : vector<8x5xf32> to vector<8xf32>
    %190 = vector.shape_cast %189 : vector<8xf32> to vector<8x1xf32>
    %cst_46 = arith.constant 1.000000e-07 : f32
    %191 = vector.broadcast %cst_46 : f32 to vector<8x1xf32>
    %192 = arith.addf %190, %191 : vector<8x1xf32>
    %193 = math.rsqrt %192 : vector<8x1xf32>
    %194 = vector.broadcast %193 : vector<8x1xf32> to vector<8x5xf32>
    %195 = arith.mulf %187, %194 : vector<8x5xf32>
    %196 = vector.shape_cast %195 : vector<8x5xf32> to vector<8x1x5xf32>
    %197 = vector.broadcast %196 : vector<8x1x5xf32> to vector<8x8x5xf32>
    %198 = arith.mulf %8, %197 : vector<8x8x5xf32>
    %cst_47 = arith.constant dense<0.000000e+00> : vector<8x8xf32>
    %199 = vector.multi_reduction <add>, %198, %cst_47 [2] : vector<8x8x5xf32> to vector<8x8xf32>
    %200 = vector.shape_cast %199 : vector<8x8xf32> to vector<8x8x1xf32>
    %201 = tpu.concatenate %132, %149, %166, %183, %200 in 2 : vector<8x8x1xf32>, vector<8x8x1xf32>, vector<8x8x1xf32>, vector<8x8x1xf32>, vector<8x8x1xf32> -> vector<8x8x5xf32>
    %cst_48 = arith.constant dense<0xFF800000> : vector<8x8xf32>
    %202 = vector.multi_reduction <maximumf>, %201, %cst_48 [2] : vector<8x8x5xf32> to vector<8x8xf32>
    %203 = vector.shape_cast %202 : vector<8x8xf32> to vector<8x8x1xf32>
    %204 = vector.broadcast %203 : vector<8x8x1xf32> to vector<8x8x5xf32>
    %205 = arith.subf %201, %204 : vector<8x8x5xf32>
    %206 = math.exp %205 : vector<8x8x5xf32>
    %cst_49 = arith.constant dense<0.000000e+00> : vector<8x8xf32>
    %207 = vector.multi_reduction <add>, %206, %cst_49 [2] : vector<8x8x5xf32> to vector<8x8xf32>
    %208 = vector.shape_cast %207 : vector<8x8xf32> to vector<8x8x1xf32>
    %209 = tpu.reciprocal %208 {approx = true} : vector<8x8x1xf32> -> vector<8x8x1xf32>
    %210 = vector.broadcast %209 : vector<8x8x1xf32> to vector<8x8x5xf32>
    %211 = arith.mulf %206, %210 : vector<8x8x5xf32>
    %212 = vector.extract_strided_slice %211 {offsets = [0, 0, 0], sizes = [8, 8, 1], strides = [1, 1, 1]} : vector<8x8x5xf32> to vector<8x8x1xf32>
    %213 = vector.broadcast %212 : vector<8x8x1xf32> to vector<8x8x5xf32>
    %214 = arith.mulf %213, %4 : vector<8x8x5xf32>
    %cst_50 = arith.constant dense<0.000000e+00> : vector<8x5xf32>
    %215 = vector.multi_reduction <add>, %214, %cst_50 [1] : vector<8x8x5xf32> to vector<8x5xf32>
    %216 = arith.mulf %215, %215 : vector<8x5xf32>
    %cst_51 = arith.constant dense<0.000000e+00> : vector<8xf32>
    %217 = vector.multi_reduction <add>, %216, %cst_51 [1] : vector<8x5xf32> to vector<8xf32>
    %218 = vector.shape_cast %217 : vector<8xf32> to vector<8x1xf32>
    %cst_52 = arith.constant 1.000000e-07 : f32
    %219 = vector.broadcast %cst_52 : f32 to vector<8x1xf32>
    %220 = arith.addf %218, %219 : vector<8x1xf32>
    %221 = math.rsqrt %220 : vector<8x1xf32>
    %222 = vector.broadcast %221 : vector<8x1xf32> to vector<8x5xf32>
    %223 = arith.mulf %215, %222 : vector<8x5xf32>
    %224 = vector.shape_cast %223 : vector<8x5xf32> to vector<8x1x5xf32>
    %225 = vector.broadcast %224 : vector<8x1x5xf32> to vector<8x8x5xf32>
    %226 = arith.mulf %4, %225 : vector<8x8x5xf32>
    %cst_53 = arith.constant dense<0.000000e+00> : vector<8x8xf32>
    %227 = vector.multi_reduction <add>, %226, %cst_53 [2] : vector<8x8x5xf32> to vector<8x8xf32>
    %228 = vector.shape_cast %227 : vector<8x8xf32> to vector<8x8x1xf32>
    %229 = vector.extract_strided_slice %211 {offsets = [0, 0, 1], sizes = [8, 8, 1], strides = [1, 1, 1]} : vector<8x8x5xf32> to vector<8x8x1xf32>
    %230 = vector.broadcast %229 : vector<8x8x1xf32> to vector<8x8x5xf32>
    %231 = arith.mulf %230, %5 : vector<8x8x5xf32>
    %cst_54 = arith.constant dense<0.000000e+00> : vector<8x5xf32>
    %232 = vector.multi_reduction <add>, %231, %cst_54 [1] : vector<8x8x5xf32> to vector<8x5xf32>
    %233 = arith.mulf %232, %232 : vector<8x5xf32>
    %cst_55 = arith.constant dense<0.000000e+00> : vector<8xf32>
    %234 = vector.multi_reduction <add>, %233, %cst_55 [1] : vector<8x5xf32> to vector<8xf32>
    %235 = vector.shape_cast %234 : vector<8xf32> to vector<8x1xf32>
    %cst_56 = arith.constant 1.000000e-07 : f32
    %236 = vector.broadcast %cst_56 : f32 to vector<8x1xf32>
    %237 = arith.addf %235, %236 : vector<8x1xf32>
    %238 = math.rsqrt %237 : vector<8x1xf32>
    %239 = vector.broadcast %238 : vector<8x1xf32> to vector<8x5xf32>
    %240 = arith.mulf %232, %239 : vector<8x5xf32>
    %241 = vector.shape_cast %240 : vector<8x5xf32> to vector<8x1x5xf32>
    %242 = vector.broadcast %241 : vector<8x1x5xf32> to vector<8x8x5xf32>
    %243 = arith.mulf %5, %242 : vector<8x8x5xf32>
    %cst_57 = arith.constant dense<0.000000e+00> : vector<8x8xf32>
    %244 = vector.multi_reduction <add>, %243, %cst_57 [2] : vector<8x8x5xf32> to vector<8x8xf32>
    %245 = vector.shape_cast %244 : vector<8x8xf32> to vector<8x8x1xf32>
    %246 = vector.extract_strided_slice %211 {offsets = [0, 0, 2], sizes = [8, 8, 1], strides = [1, 1, 1]} : vector<8x8x5xf32> to vector<8x8x1xf32>
    %247 = vector.broadcast %246 : vector<8x8x1xf32> to vector<8x8x5xf32>
    %248 = arith.mulf %247, %6 : vector<8x8x5xf32>
    %cst_58 = arith.constant dense<0.000000e+00> : vector<8x5xf32>
    %249 = vector.multi_reduction <add>, %248, %cst_58 [1] : vector<8x8x5xf32> to vector<8x5xf32>
    %250 = arith.mulf %249, %249 : vector<8x5xf32>
    %cst_59 = arith.constant dense<0.000000e+00> : vector<8xf32>
    %251 = vector.multi_reduction <add>, %250, %cst_59 [1] : vector<8x5xf32> to vector<8xf32>
    %252 = vector.shape_cast %251 : vector<8xf32> to vector<8x1xf32>
    %cst_60 = arith.constant 1.000000e-07 : f32
    %253 = vector.broadcast %cst_60 : f32 to vector<8x1xf32>
    %254 = arith.addf %252, %253 : vector<8x1xf32>
    %255 = math.rsqrt %254 : vector<8x1xf32>
    %256 = vector.broadcast %255 : vector<8x1xf32> to vector<8x5xf32>
    %257 = arith.mulf %249, %256 : vector<8x5xf32>
    %258 = vector.shape_cast %257 : vector<8x5xf32> to vector<8x1x5xf32>
    %259 = vector.broadcast %258 : vector<8x1x5xf32> to vector<8x8x5xf32>
    %260 = arith.mulf %6, %259 : vector<8x8x5xf32>
    %cst_61 = arith.constant dense<0.000000e+00> : vector<8x8xf32>
    %261 = vector.multi_reduction <add>, %260, %cst_61 [2] : vector<8x8x5xf32> to vector<8x8xf32>
    %262 = vector.shape_cast %261 : vector<8x8xf32> to vector<8x8x1xf32>
    %263 = vector.extract_strided_slice %211 {offsets = [0, 0, 3], sizes = [8, 8, 1], strides = [1, 1, 1]} : vector<8x8x5xf32> to vector<8x8x1xf32>
    %264 = vector.broadcast %263 : vector<8x8x1xf32> to vector<8x8x5xf32>
    %265 = arith.mulf %264, %7 : vector<8x8x5xf32>
    %cst_62 = arith.constant dense<0.000000e+00> : vector<8x5xf32>
    %266 = vector.multi_reduction <add>, %265, %cst_62 [1] : vector<8x8x5xf32> to vector<8x5xf32>
    %267 = arith.mulf %266, %266 : vector<8x5xf32>
    %cst_63 = arith.constant dense<0.000000e+00> : vector<8xf32>
    %268 = vector.multi_reduction <add>, %267, %cst_63 [1] : vector<8x5xf32> to vector<8xf32>
    %269 = vector.shape_cast %268 : vector<8xf32> to vector<8x1xf32>
    %cst_64 = arith.constant 1.000000e-07 : f32
    %270 = vector.broadcast %cst_64 : f32 to vector<8x1xf32>
    %271 = arith.addf %269, %270 : vector<8x1xf32>
    %272 = math.rsqrt %271 : vector<8x1xf32>
    %273 = vector.broadcast %272 : vector<8x1xf32> to vector<8x5xf32>
    %274 = arith.mulf %266, %273 : vector<8x5xf32>
    %275 = vector.shape_cast %274 : vector<8x5xf32> to vector<8x1x5xf32>
    %276 = vector.broadcast %275 : vector<8x1x5xf32> to vector<8x8x5xf32>
    %277 = arith.mulf %7, %276 : vector<8x8x5xf32>
    %cst_65 = arith.constant dense<0.000000e+00> : vector<8x8xf32>
    %278 = vector.multi_reduction <add>, %277, %cst_65 [2] : vector<8x8x5xf32> to vector<8x8xf32>
    %279 = vector.shape_cast %278 : vector<8x8xf32> to vector<8x8x1xf32>
    %280 = vector.extract_strided_slice %211 {offsets = [0, 0, 4], sizes = [8, 8, 1], strides = [1, 1, 1]} : vector<8x8x5xf32> to vector<8x8x1xf32>
    %281 = vector.broadcast %280 : vector<8x8x1xf32> to vector<8x8x5xf32>
    %282 = arith.mulf %281, %8 : vector<8x8x5xf32>
    %cst_66 = arith.constant dense<0.000000e+00> : vector<8x5xf32>
    %283 = vector.multi_reduction <add>, %282, %cst_66 [1] : vector<8x8x5xf32> to vector<8x5xf32>
    %284 = arith.mulf %283, %283 : vector<8x5xf32>
    %cst_67 = arith.constant dense<0.000000e+00> : vector<8xf32>
    %285 = vector.multi_reduction <add>, %284, %cst_67 [1] : vector<8x5xf32> to vector<8xf32>
    %286 = vector.shape_cast %285 : vector<8xf32> to vector<8x1xf32>
    %cst_68 = arith.constant 1.000000e-07 : f32
    %287 = vector.broadcast %cst_68 : f32 to vector<8x1xf32>
    %288 = arith.addf %286, %287 : vector<8x1xf32>
    %289 = math.rsqrt %288 : vector<8x1xf32>
    %290 = vector.broadcast %289 : vector<8x1xf32> to vector<8x5xf32>
    %291 = arith.mulf %283, %290 : vector<8x5xf32>
    %292 = vector.shape_cast %291 : vector<8x5xf32> to vector<8x1x5xf32>
    %293 = vector.broadcast %292 : vector<8x1x5xf32> to vector<8x8x5xf32>
    %294 = arith.mulf %8, %293 : vector<8x8x5xf32>
    %cst_69 = arith.constant dense<0.000000e+00> : vector<8x8xf32>
    %295 = vector.multi_reduction <add>, %294, %cst_69 [2] : vector<8x8x5xf32> to vector<8x8xf32>
    %296 = vector.shape_cast %295 : vector<8x8xf32> to vector<8x8x1xf32>
    %297 = tpu.concatenate %228, %245, %262, %279, %296 in 2 : vector<8x8x1xf32>, vector<8x8x1xf32>, vector<8x8x1xf32>, vector<8x8x1xf32>, vector<8x8x1xf32> -> vector<8x8x5xf32>
    %cst_70 = arith.constant dense<0xFF800000> : vector<8x8xf32>
    %298 = vector.multi_reduction <maximumf>, %297, %cst_70 [2] : vector<8x8x5xf32> to vector<8x8xf32>
    %299 = vector.shape_cast %298 : vector<8x8xf32> to vector<8x8x1xf32>
    %300 = vector.broadcast %299 : vector<8x8x1xf32> to vector<8x8x5xf32>
    %301 = arith.subf %297, %300 : vector<8x8x5xf32>
    %302 = math.exp %301 : vector<8x8x5xf32>
    %cst_71 = arith.constant dense<0.000000e+00> : vector<8x8xf32>
    %303 = vector.multi_reduction <add>, %302, %cst_71 [2] : vector<8x8x5xf32> to vector<8x8xf32>
    %304 = vector.shape_cast %303 : vector<8x8xf32> to vector<8x8x1xf32>
    %305 = tpu.reciprocal %304 {approx = true} : vector<8x8x1xf32> -> vector<8x8x1xf32>
    %306 = vector.broadcast %305 : vector<8x8x1xf32> to vector<8x8x5xf32>
    %307 = arith.mulf %302, %306 : vector<8x8x5xf32>
    %308 = vector.extract_strided_slice %307 {offsets = [0, 0, 0], sizes = [8, 8, 1], strides = [1, 1, 1]} : vector<8x8x5xf32> to vector<8x8x1xf32>
    %309 = vector.broadcast %308 : vector<8x8x1xf32> to vector<8x8x5xf32>
    %310 = arith.mulf %309, %4 : vector<8x8x5xf32>
    %cst_72 = arith.constant dense<0.000000e+00> : vector<8x5xf32>
    %311 = vector.multi_reduction <add>, %310, %cst_72 [1] : vector<8x8x5xf32> to vector<8x5xf32>
    %312 = arith.mulf %311, %311 : vector<8x5xf32>
    %cst_73 = arith.constant dense<0.000000e+00> : vector<8xf32>
    %313 = vector.multi_reduction <add>, %312, %cst_73 [1] : vector<8x5xf32> to vector<8xf32>
    %314 = vector.shape_cast %313 : vector<8xf32> to vector<8x1xf32>
    %cst_74 = arith.constant 1.000000e-07 : f32
    %315 = vector.broadcast %cst_74 : f32 to vector<8x1xf32>
    %316 = arith.addf %314, %315 : vector<8x1xf32>
    %317 = math.rsqrt %316 : vector<8x1xf32>
    %318 = vector.broadcast %317 : vector<8x1xf32> to vector<8x5xf32>
    %319 = arith.mulf %311, %318 : vector<8x5xf32>
    %320 = vector.extract_strided_slice %307 {offsets = [0, 0, 1], sizes = [8, 8, 1], strides = [1, 1, 1]} : vector<8x8x5xf32> to vector<8x8x1xf32>
    %321 = vector.broadcast %320 : vector<8x8x1xf32> to vector<8x8x5xf32>
    %322 = arith.mulf %321, %5 : vector<8x8x5xf32>
    %cst_75 = arith.constant dense<0.000000e+00> : vector<8x5xf32>
    %323 = vector.multi_reduction <add>, %322, %cst_75 [1] : vector<8x8x5xf32> to vector<8x5xf32>
    %324 = arith.mulf %323, %323 : vector<8x5xf32>
    %cst_76 = arith.constant dense<0.000000e+00> : vector<8xf32>
    %325 = vector.multi_reduction <add>, %324, %cst_76 [1] : vector<8x5xf32> to vector<8xf32>
    %326 = vector.shape_cast %325 : vector<8xf32> to vector<8x1xf32>
    %cst_77 = arith.constant 1.000000e-07 : f32
    %327 = vector.broadcast %cst_77 : f32 to vector<8x1xf32>
    %328 = arith.addf %326, %327 : vector<8x1xf32>
    %329 = math.rsqrt %328 : vector<8x1xf32>
    %330 = vector.broadcast %329 : vector<8x1xf32> to vector<8x5xf32>
    %331 = arith.mulf %323, %330 : vector<8x5xf32>
    %332 = vector.extract_strided_slice %307 {offsets = [0, 0, 2], sizes = [8, 8, 1], strides = [1, 1, 1]} : vector<8x8x5xf32> to vector<8x8x1xf32>
    %333 = vector.broadcast %332 : vector<8x8x1xf32> to vector<8x8x5xf32>
    %334 = arith.mulf %333, %6 : vector<8x8x5xf32>
    %cst_78 = arith.constant dense<0.000000e+00> : vector<8x5xf32>
    %335 = vector.multi_reduction <add>, %334, %cst_78 [1] : vector<8x8x5xf32> to vector<8x5xf32>
    %336 = arith.mulf %335, %335 : vector<8x5xf32>
    %cst_79 = arith.constant dense<0.000000e+00> : vector<8xf32>
    %337 = vector.multi_reduction <add>, %336, %cst_79 [1] : vector<8x5xf32> to vector<8xf32>
    %338 = vector.shape_cast %337 : vector<8xf32> to vector<8x1xf32>
    %cst_80 = arith.constant 1.000000e-07 : f32
    %339 = vector.broadcast %cst_80 : f32 to vector<8x1xf32>
    %340 = arith.addf %338, %339 : vector<8x1xf32>
    %341 = math.rsqrt %340 : vector<8x1xf32>
    %342 = vector.broadcast %341 : vector<8x1xf32> to vector<8x5xf32>
    %343 = arith.mulf %335, %342 : vector<8x5xf32>
    %344 = vector.extract_strided_slice %307 {offsets = [0, 0, 3], sizes = [8, 8, 1], strides = [1, 1, 1]} : vector<8x8x5xf32> to vector<8x8x1xf32>
    %345 = vector.broadcast %344 : vector<8x8x1xf32> to vector<8x8x5xf32>
    %346 = arith.mulf %345, %7 : vector<8x8x5xf32>
    %cst_81 = arith.constant dense<0.000000e+00> : vector<8x5xf32>
    %347 = vector.multi_reduction <add>, %346, %cst_81 [1] : vector<8x8x5xf32> to vector<8x5xf32>
    %348 = arith.mulf %347, %347 : vector<8x5xf32>
    %cst_82 = arith.constant dense<0.000000e+00> : vector<8xf32>
    %349 = vector.multi_reduction <add>, %348, %cst_82 [1] : vector<8x5xf32> to vector<8xf32>
    %350 = vector.shape_cast %349 : vector<8xf32> to vector<8x1xf32>
    %cst_83 = arith.constant 1.000000e-07 : f32
    %351 = vector.broadcast %cst_83 : f32 to vector<8x1xf32>
    %352 = arith.addf %350, %351 : vector<8x1xf32>
    %353 = math.rsqrt %352 : vector<8x1xf32>
    %354 = vector.broadcast %353 : vector<8x1xf32> to vector<8x5xf32>
    %355 = arith.mulf %347, %354 : vector<8x5xf32>
    %356 = vector.extract_strided_slice %307 {offsets = [0, 0, 4], sizes = [8, 8, 1], strides = [1, 1, 1]} : vector<8x8x5xf32> to vector<8x8x1xf32>
    %357 = vector.broadcast %356 : vector<8x8x1xf32> to vector<8x8x5xf32>
    %358 = arith.mulf %357, %8 : vector<8x8x5xf32>
    %cst_84 = arith.constant dense<0.000000e+00> : vector<8x5xf32>
    %359 = vector.multi_reduction <add>, %358, %cst_84 [1] : vector<8x8x5xf32> to vector<8x5xf32>
    %360 = arith.mulf %359, %359 : vector<8x5xf32>
    %cst_85 = arith.constant dense<0.000000e+00> : vector<8xf32>
    %361 = vector.multi_reduction <add>, %360, %cst_85 [1] : vector<8x5xf32> to vector<8xf32>
    %362 = vector.shape_cast %361 : vector<8xf32> to vector<8x1xf32>
    %cst_86 = arith.constant 1.000000e-07 : f32
    %363 = vector.broadcast %cst_86 : f32 to vector<8x1xf32>
    %364 = arith.addf %362, %363 : vector<8x1xf32>
    %365 = math.rsqrt %364 : vector<8x1xf32>
    %366 = vector.broadcast %365 : vector<8x1xf32> to vector<8x5xf32>
    %367 = arith.mulf %359, %366 : vector<8x5xf32>
    %368 = tpu.concatenate %319, %331, %343, %355, %367 in 1 : vector<8x5xf32>, vector<8x5xf32>, vector<8x5xf32>, vector<8x5xf32>, vector<8x5xf32> -> vector<8x25xf32>
    %cst_87 = arith.constant 0.000000e+00 : f32
    %369 = vector.broadcast %cst_87 : f32 to vector<8x103xf32>
    %370 = tpu.concatenate %368, %369 in 1 : vector<8x25xf32>, vector<8x103xf32> -> vector<8x128xf32>
    %c0_88 = arith.constant 0 : index
    %c0_89 = arith.constant 0 : index
    %371 = vector.load %arg3[%c0_88, %c0_89] : memref<8x128xf32, #tpu.memory_space<vmem>>, vector<8x128xf32>
    tpu.vector_store %arg3[%c0_88, %c0_89], %370 {strides = array<i32>} : memref<8x128xf32, #tpu.memory_space<vmem>>, vector<8x128xf32>,
    return
  }
  func.func @transform_0(%arg0: i32) -> (i32, i32) {
    %c0_i32 = arith.constant 0 : i32
    %c0_i32_0 = arith.constant 0 : i32
    return %arg0, %c0_i32 : i32, i32
  }
  func.func @transform_1(%arg0: i32) -> (i32, i32) {
    %c0_i32 = arith.constant 0 : i32
    %c0_i32_0 = arith.constant 0 : i32
    %c0_i32_1 = arith.constant 0 : i32
    return %c0_i32, %c0_i32_0 : i32, i32
  }
  func.func @transform_2(%arg0: i32) -> (i32, i32) {
    %c0_i32 = arith.constant 0 : i32
    %c0_i32_0 = arith.constant 0 : i32
    return %arg0, %c0_i32 : i32, i32
  }
}

</mosaic_0001>

<llo_original>
// kernel: tpu_custom_call.1
$region0: #{tpu_custom_call.1}
  #allocation0 [shape = 'u32[]', space=smem, size = 0x4, offset = 0x4, fixed_abs, tag = 'smem constant byte address 0x4 - core index']
  #allocation1 [shape = 'u32[144,128]{1,0:T(1,128)}', space=vmem, size = 0x12000, scoped, tag = 'internal scratch']
  %s0 = inlined_call_operand.vmem [shape: f32[128,32], index: 0, kind: input, shape index: {}]
  %s1 = inlined_call_operand.vmem [shape: f32[32,25], index: 1, kind: input, shape index: {}]
  %s2 = inlined_call_operand.hbm [shape: f32[16,128], index: 2, kind: output, shape index: {}]
  %s3 = sld [smem:[#allocation0]]
  $region41: #{tpu_custom_call.1} parent=0
    _
  %s5 = ssub.s32 1, %s3
  %s6 = scalar_select 0, %s5, %s3
  $region1: #{tpu_custom_call.1} parent=0
    #allocation2 [shape = 'u8[8192]{0}', space=vmem, size = 0x2000, scoped, tag = 'output window, operand 0']
    #allocation3 [shape = 's32[2]{0}', space=sflag, size = 0x8, scoped, tag = 'scoped memory for tpu_custom_call.1']
    %7 = vsyncpa [#allocation3], 0
    %s8 = scalar_lea.sflag [#allocation3], 1
    %9 = vsyncpa %s8, 0
    loop: start=0, step=1, limit=4
    $region2: #{tpu_custom_call.1} parent=1 // loop_pre_header
      _
    $region3: #{tpu_custom_call.1} parent=1 // loop_header
      %s11 = sphi 0, %s15
      %p12 = scmp.ge.s32.totalorder %s11, 4
      %s21 = sphi 0, %s23
      %s24 = sphi 0, %s21
      %s25 = sphi 0, %s24
      %s41 = sphi 0, %s25
      %s45 = sphi 0, %s45
      %s47 = sphi 0, %s45
      %s48 = sphi 0, %s47
      %s62 = sphi 0, %s48
      %s68 = sphi 0, %s70
      %s71 = sphi 0, %s68
      %s72 = sphi 0, %s71
      %s88 = sphi 0, %s72
    $region4: #{tpu_custom_call.1} parent=1 // loop_header_branch
      %14 = sbr.rel (%p12) target = $region8
    $region5: #{tpu_custom_call.1} parent=1 // loop_body
      %s16 = ssub.s32 %s11, 1
      %s17 = ssub.s32 %s11, 2
      %s18 = sadd.s32 %s11, 1
      %s19 = ssub.s32 %s11, %s18
      %p20 = scmp.eq.s32.totalorder %s19, 0
      %s22 = sadd.s32 %s21, 1
      %s23 = scalar_select %p20, %s21, %s22
      %p26 = pneg %p20
      %p27 = scmp.eq.s32.totalorder %s11, 1
      %p28 = por %p26, %p27
      %p29 = scmp.ne.s32.totalorder %s21, %s24
      %p30 = scmp.eq.s32.totalorder %s11, 0
      %p31 = por %p29, %p30
      %p32 = scmp.ne.s32.totalorder %s21, %s24
      %p33 = scmp.eq.s32.totalorder %s16, 1
      %p34 = por %p32, %p33
      %p35 = scmp.ne.s32.totalorder %s24, %s25
      %p36 = scmp.eq.s32.totalorder %s16, 0
      %p37 = por %p35, %p36
      %p38 = scmp.ne.s32.totalorder %s24, %s25
      %p39 = scmp.eq.s32.totalorder %s17, 1
      %p40 = por %p38, %p39
      %p42 = scmp.ne.s32.totalorder %s25, %s41
      %p43 = scmp.eq.s32.totalorder %s17, 0
      %p44 = por %p42, %p43
      %s46 = sadd.s32 %s45, 1
      %p49 = scmp.eq.s32.totalorder %s11, 1
      %p50 = scmp.ne.s32.totalorder %s45, %s47
      %p51 = scmp.eq.s32.totalorder %s11, 0
      %p52 = por %p50, %p51
      %p53 = scmp.ne.s32.totalorder %s45, %s47
      %p54 = scmp.eq.s32.totalorder %s16, 1
      %p55 = por %p53, %p54
      %p56 = scmp.ne.s32.totalorder %s47, %s48
      %p57 = scmp.eq.s32.totalorder %s16, 0
      %p58 = por %p56, %p57
      %p59 = scmp.ne.s32.totalorder %s47, %s48
      %p60 = scmp.eq.s32.totalorder %s17, 1
      %p61 = por %p59, %p60
      %p63 = scmp.ne.s32.totalorder %s48, %s62
      %p64 = scmp.eq.s32.totalorder %s17, 0
      %p65 = por %p63, %p64
      %s66 = ssub.s32 %s11, %s18
      %p67 = scmp.eq.s32.totalorder %s66, 0
      %s69 = sadd.s32 %s68, 1
      %s70 = scalar_select %p67, %s68, %s69
      %p73 = pneg %p67
      %p74 = scmp.eq.s32.totalorder %s11, 1
      %p75 = por %p73, %p74
      %p76 = scmp.ne.s32.totalorder %s68, %s71
      %p77 = scmp.eq.s32.totalorder %s11, 0
      %p78 = por %p76, %p77
      %p79 = scmp.ne.s32.totalorder %s68, %s71
      %p80 = scmp.eq.s32.totalorder %s16, 1
      %p81 = por %p79, %p80
      %p82 = scmp.ne.s32.totalorder %s71, %s72
      %p83 = scmp.eq.s32.totalorder %s16, 0
      %p84 = por %p82, %p83
      %p85 = scmp.ne.s32.totalorder %s71, %s72
      %p86 = scmp.eq.s32.totalorder %s17, 1
      %p87 = por %p85, %p86
      %p89 = scmp.ne.s32.totalorder %s72, %s88
      %p90 = scmp.eq.s32.totalorder %s17, 0
      %p91 = por %p89, %p90
      %p92 = scmp.le.s32.totalorder 1, %s11
      %p93 = scmp.lt.s32.totalorder %s11, 3
      %p94 = pnand %p92, %p93
      %p95 = pneg %p94
      // Predicated region
      $region9: #{tpu_custom_call.1} parent=5 // pred_check
        _
      $region10: #{tpu_custom_call.1} parent=5 // pred_check_branch
        %97 = sbr.rel (%p94) target = $region12
      $region11: #{tpu_custom_call.1} parent=5 // pred_region
        %s98 = ssub.s32 %s11, 1
        // Predicated region
        $region13: #{tpu_custom_call.1} parent=11 // pred_check
          %p99 = pneg %p58
        $region14: #{tpu_custom_call.1} parent=11 // pred_check_branch
          %101 = sbr.rel (%p99) target = $region16
        $region15: #{tpu_custom_call.1} parent=11 // pred_region
          _
        $region16: #{tpu_custom_call.1} parent=11 // pred_fallthru
          _
      $region12: #{tpu_custom_call.1} parent=5 // pred_fallthru
        _
      %p102 = scmp.lt.s32.totalorder %s11, 2
      // Predicated region
      $region17: #{tpu_custom_call.1} parent=5 // pred_check
        %p103 = pneg %p102
      $region18: #{tpu_custom_call.1} parent=5 // pred_check_branch
        %105 = sbr.rel (%p103) target = $region20
      $region19: #{tpu_custom_call.1} parent=5 // pred_region
        // Predicated region
        $region21: #{tpu_custom_call.1} parent=19 // pred_check
          %p106 = pneg %p31
        $region22: #{tpu_custom_call.1} parent=19 // pred_check_branch
          %108 = sbr.rel (%p106) target = $region24
        $region23: #{tpu_custom_call.1} parent=19 // pred_region
          %s109 = smul.u32 8, %s11
          %p110 = scmp.lt.s32.totalorder %s109, 15
          %s111 = scalar_select %p110, %s109, 15
          %s112 = smul.addr %s111, 8
          %s113 = scalar_lea.vmem %s0, %s112
          %s114 = smul.u32 8, %s11
        $region24: #{tpu_custom_call.1} parent=19 // pred_fallthru
          _
      $region20: #{tpu_custom_call.1} parent=5 // pred_fallthru
        _
      %p115 = scmp.le.s32.totalorder 1, %s11
      %p116 = scmp.lt.s32.totalorder %s11, 3
      %p117 = pnand %p115, %p116
      %p118 = pneg %p117
      // Predicated region
      $region25: #{tpu_custom_call.1} parent=5 // pred_check
        _
      $region26: #{tpu_custom_call.1} parent=5 // pred_check_branch
        %120 = sbr.rel (%p117) target = $region28
      $region27: #{tpu_custom_call.1} parent=5 // pred_region
        %s121 = ssub.s32 %s11, 1
        %s122 = smul.u32 8, %s16
        %p123 = scmp.lt.s32.totalorder %s122, 15
        %s124 = scalar_select %p123, %s122, 15
        %s125 = smul.addr %s124, 8
        %s126 = scalar_lea.vmem %s0, %s125
        %p127 = pneg %p37
        %p128 = pneg %p34
        %p129 = pneg %p58
        %p130 = pneg %p55
        %p131 = pneg %p84
        %p132 = pneg %p81
        %s133 = sand.u32 %s71, 1
        %s134 = scalar_lea.sflag [#allocation3], %s133
        %s135 = sand.u32 %s71, 1
        %s136 = smul.addr %s135, 8
        %s137 = scalar_lea.vmem [#allocation2], %s136
        %s138 = smul.u32 8, %s16
        %p139 = scmp.lt.s32.totalorder %s138, 15
        %s140 = scalar_select %p139, %s138, 15
        %s141 = smul.addr %s140, 8
        %s142 = scalar_lea.vmem %s0, %s141
        %s143 = smul.u32 8, %s16
        %v144 = vld [vmem:[%s142] sm:$0xff]
        %v145 = vld [vmem:[%s142 + $0x8] sm:$0xff]
        %v146 = vld [vmem:[%s142 + $0x10] sm:$0xff]
        %v147 = vld [vmem:[%s142 + $0x18] sm:$0xff]
        %v148 = vld [vmem:[%s142 + $0x20] sm:$0xff]
        %v149 = vld [vmem:[%s142 + $0x28] sm:$0xff]
        %v150 = vld [vmem:[%s142 + $0x30] sm:$0xff]
        %v151 = vld [vmem:[%s142 + $0x38] sm:$0xff]
        %v152 = vld [vmem:[%s1] sm:$0xff]
        %v153 = vld [vmem:[%s1 + $0x8] sm:$0xff]
        %v154 = vld [vmem:[%s1 + $0x10] sm:$0xff]
        %v155 = vld [vmem:[%s1 + $0x18] sm:$0xff]
        %vm156 = vcmask 261120
        %v158 = vsel %vm156, %v144, 0
        %v161 = vsel %vm156, %v145, 0
        %v164 = vsel %vm156, %v146, 0
        %v167 = vsel %vm156, %v147, 0
        %v170 = vsel %vm156, %v148, 0
        %v173 = vsel %vm156, %v149, 0
        %v176 = vsel %vm156, %v150, 0
        %v179 = vsel %vm156, %v151, 0
        %181 = vmatprep.subr.mxu0 0.0
        %182 = vmatpush1.msra.mxu0 %v152
        %183 = vmatprep.subr.mxu0 0.0
        %184 = vmatpush1.msra.mxu0 %v153
        %185 = vmatprep.subr.mxu0 0.0
        %186 = vmatpush1.msra.mxu0 %v154
        %187 = vmatprep.subr.mxu0 0.0
        %188 = vmatpush1.msra.mxu0 %v155
        %189 = vmatprep.subr.mxu0 0.0
        %190 = vmatpush1.msra.mxu0 0.0
        %191 = vmatprep.subr.mxu0 0.0
        %192 = vmatpush1.msra.mxu0 0.0
        %193 = vmatprep.subr.mxu0 0.0
        %194 = vmatpush1.msra.mxu0 0.0
        %195 = vmatprep.subr.mxu0 0.0
        %196 = vmatpush1.msra.mxu0 0.0
        %197 = vmatprep.subr.mxu0 0.0
        %198 = vmatpush1.msra.mxu0 0.0
        %199 = vmatprep.subr.mxu0 0.0
        %200 = vmatpush1.msra.mxu0 0.0
        %201 = vmatprep.subr.mxu0 0.0
        %202 = vmatpush1.msra.mxu0 0.0
        %203 = vmatprep.subr.mxu0 0.0
        %204 = vmatpush1.msra.mxu0 0.0
        %205 = vmatprep.subr.mxu0 0.0
        %206 = vmatpush1.msra.mxu0 0.0
        %207 = vmatprep.subr.mxu0 0.0
        %208 = vmatpush1.msra.mxu0 0.0
        %209 = vmatprep.subr.mxu0 0.0
        %210 = vmatpush1.msra.mxu0 0.0
        %211 = vmatprep.subr.mxu0 0.0
        %212 = vmatpush1.msra.mxu0 0.0
        %213 = vmatprep.subr.mxu0 0.0
        %214 = vmatpush1.msra.mxu0 0.0
        %215 = vmatprep.subr.mxu0 0.0
        %216 = vmatpush1.msra.mxu0 0.0
        %217 = vmatprep.subr.mxu0 0.0
        %218 = vmatpush1.msra.mxu0 0.0
        %219 = vmatprep.subr.mxu0 0.0
        %220 = vmatpush1.msra.mxu0 0.0
        %221 = vmatprep.subr.mxu0 0.0
        %222 = vmatpush1.msra.mxu0 0.0
        %223 = vmatprep.subr.mxu0 0.0
        %224 = vmatpush1.msra.mxu0 0.0
        %225 = vmatprep.subr.mxu0 0.0
        %226 = vmatpush1.msra.mxu0 0.0
        %227 = vmatprep.subr.mxu0 0.0
        %228 = vmatpush1.msra.mxu0 0.0
        %229 = vmatprep.subr.mxu0 0.0
        %230 = vmatpush1.msra.mxu0 0.0
        %231 = vmatprep.subr.mxu0 0.0
        %232 = vmatpush1.msra.mxu0 0.0
        %233 = vmatprep.subr.mxu0 0.0
        %234 = vmatpush1.msra.mxu0 0.0
        %235 = vmatprep.subr.mxu0 0.0
        %236 = vmatpush1.msra.mxu0 0.0
        %237 = vmatprep.subr.mxu0 0.0
        %238 = vmatpush1.msra.mxu0 0.0
        %239 = vmatprep.subr.mxu0 0.0
        %240 = vmatpush1.msra.mxu0 0.0
        %241 = vmatprep.subr.mxu0 0.0
        %242 = vmatpush1.msra.mxu0 0.0
        %243 = vmatprep.subr.mxu0 0.0
        %244 = vmatpush1.msra.mxu0 0.0
        %245 = vmatprep.mubr.f32.mxu0 0.0
        %246 = vmatmul.mubr.f32.gmra.mrb[0].mxu0 %v158
        %v247 = vpop.f32.mrb[0].mxu0
        %v248 = vadd.f32 0.0, %v247
        %v249 = vpop.f32.mrb[0].mxu0
        %250 = vmatprep.mubr.f32.mxu0 0.0
        %251 = vmatmul.mubr.f32.gmra.mrb[0].mxu0 %v161
        %v252 = vpop.f32.mrb[0].mxu0
        %v253 = vadd.f32 0.0, %v252
        %v254 = vpop.f32.mrb[0].mxu0
        %255 = vmatprep.mubr.f32.mxu0 0.0
        %256 = vmatmul.mubr.f32.gmra.mrb[0].mxu0 %v164
        %v257 = vpop.f32.mrb[0].mxu0
        %v258 = vadd.f32 0.0, %v257
        %v259 = vpop.f32.mrb[0].mxu0
        %260 = vmatprep.mubr.f32.mxu0 0.0
        %261 = vmatmul.mubr.f32.gmra.mrb[0].mxu0 %v167
        %v262 = vpop.f32.mrb[0].mxu0
        %v263 = vadd.f32 0.0, %v262
        %v264 = vpop.f32.mrb[0].mxu0
        %265 = vmatprep.mubr.f32.mxu0 0.0
        %266 = vmatmul.mubr.f32.gmra.mrb[0].mxu0 %v170
        %v267 = vpop.f32.mrb[0].mxu0
        %v268 = vadd.f32 0.0, %v267
        %v269 = vpop.f32.mrb[0].mxu0
        %270 = vmatprep.mubr.f32.mxu0 0.0
        %271 = vmatmul.mubr.f32.gmra.mrb[0].mxu0 %v173
        %v272 = vpop.f32.mrb[0].mxu0
        %v273 = vadd.f32 0.0, %v272
        %v274 = vpop.f32.mrb[0].mxu0
        %275 = vmatprep.mubr.f32.mxu0 0.0
        %276 = vmatmul.mubr.f32.gmra.mrb[0].mxu0 %v176
        %v277 = vpop.f32.mrb[0].mxu0
        %v278 = vadd.f32 0.0, %v277
        %v279 = vpop.f32.mrb[0].mxu0
        %280 = vmatprep.mubr.f32.mxu0 0.0
        %281 = vmatmul.mubr.f32.gmra.mrb[0].mxu0 %v179
        %v282 = vpop.f32.mrb[0].mxu0
        %v283 = vadd.f32 0.0, %v282
        %v284 = vpop.f32.mrb[0].mxu0
        %285 = vdwg.mxu0
        %vm286 = vcmask 39936
        %v287 = vsel %vm286, 1.0, 0.0
        %288 = vadd.xlane.f32.xlu0 %v287
        %v289 = vpop.xlane.xlu0 %288
        %v290 = vrcp.pop %v289
        %v291 = vmul.f32 %v290, %v248
        %v292 = vmul.f32 %v290, %v253
        %v293 = vmul.f32 %v290, %v258
        %v294 = vmul.f32 %v290, %v263
        %v295 = vmul.f32 %v290, %v268
        %v296 = vmul.f32 %v290, %v273
        %v297 = vmul.f32 %v290, %v278
        %v298 = vmul.f32 %v290, %v283
        %v299 = vsel %vm286, %v291, 0.0
        %v300 = vrot.slane %v299, 4
        %v301 = vadd.f32 %v299, %v300
        %v302 = vrot.slane %v301, 2
        %v303 = vadd.f32 %v301, %v302
        %v304 = vrot.slane %v303, 1
        %v305 = vadd.f32 %v303, %v304
        %v306 = vsel %vm286, %v292, 0.0
        %v307 = vrot.slane %v306, 4
        %v308 = vadd.f32 %v306, %v307
        %v309 = vrot.slane %v308, 2
        %v310 = vadd.f32 %v308, %v309
        %v311 = vrot.slane %v310, 1
        %v312 = vadd.f32 %v310, %v311
        %v313 = vsel %vm286, %v293, 0.0
        %v314 = vrot.slane %v313, 4
        %v315 = vadd.f32 %v313, %v314
        %v316 = vrot.slane %v315, 2
        %v317 = vadd.f32 %v315, %v316
        %v318 = vrot.slane %v317, 1
        %v319 = vadd.f32 %v317, %v318
        %v320 = vsel %vm286, %v294, 0.0
        %v321 = vrot.slane %v320, 4
        %v322 = vadd.f32 %v320, %v321
        %v323 = vrot.slane %v322, 2
        %v324 = vadd.f32 %v322, %v323
        %v325 = vrot.slane %v324, 1
        %v326 = vadd.f32 %v324, %v325
        %v327 = vsel %vm286, %v295, 0.0
        %v328 = vrot.slane %v327, 4
        %v329 = vadd.f32 %v327, %v328
        %v330 = vrot.slane %v329, 2
        %v331 = vadd.f32 %v329, %v330
        %v332 = vrot.slane %v331, 1
        %v333 = vadd.f32 %v331, %v332
        %v334 = vsel %vm286, %v296, 0.0
        %v335 = vrot.slane %v334, 4
        %v336 = vadd.f32 %v334, %v335
        %v337 = vrot.slane %v336, 2
        %v338 = vadd.f32 %v336, %v337
        %v339 = vrot.slane %v338, 1
        %v340 = vadd.f32 %v338, %v339
        %v341 = vsel %vm286, %v297, 0.0
        %v342 = vrot.slane %v341, 4
        %v343 = vadd.f32 %v341, %v342
        %v344 = vrot.slane %v343, 2
        %v345 = vadd.f32 %v343, %v344
        %v346 = vrot.slane %v345, 1
        %v347 = vadd.f32 %v345, %v346
        %v348 = vsel %vm286, %v298, 0.0
        %v349 = vrot.slane %v348, 4
        %v350 = vadd.f32 %v348, %v349
        %v351 = vrot.slane %v350, 2
        %v352 = vadd.f32 %v350, %v351
        %v353 = vrot.slane %v352, 1
        %v354 = vadd.f32 %v352, %v353
        %v355 = vmul.f32 %v305, %v305
        %v356 = vmul.f32 %v312, %v312
        %v357 = vmul.f32 %v319, %v319
        %v358 = vmul.f32 %v326, %v326
        %v359 = vmul.f32 %v333, %v333
        %v360 = vmul.f32 %v340, %v340
        %v361 = vmul.f32 %v347, %v347
        %v362 = vmul.f32 %v354, %v354
        %vm371 = vcmask 1041409
        %v372 = vsel %vm371, %v356, %v355
        %vm373 = vcmask 1042434
        %v374 = vsel %vm373, %v357, %v372
        %vm375 = vcmask 1043459
        %v376 = vsel %vm375, %v358, %v374
        %vm377 = vcmask 1044484
        %v378 = vsel %vm377, %v359, %v376
        %vm379 = vcmask 1045509
        %v380 = vsel %vm379, %v360, %v378
        %vm381 = vcmask 1046534
        %v382 = vsel %vm381, %v361, %v380
        %vm383 = vcmask 1047559
        %v384 = vsel %vm383, %v362, %v382
        %v386 = vsel %vm286, %v384, 0.0
        %387 = vadd.xlane.f32.xlu0 %v386
        %v388 = vpop.xlane.xlu0 %387
        %v389 = vadd.f32 %v388, 1e-07
        %v390 = vrsqrt.pop %v389
        %v392 = vrot.slane %v390, 1
        %v393 = vrot.slane %v390, 2
        %v394 = vrot.slane %v390, 3
        %v395 = vrot.slane %v390, 4
        %v396 = vrot.slane %v390, 5
        %v397 = vrot.slane %v390, 6
        %v398 = vrot.slane %v390, 7
        %v407 = vmul.f32 %v305, %v390
        %v408 = vmul.f32 %v312, %v392
        %v409 = vmul.f32 %v319, %v393
        %v410 = vmul.f32 %v326, %v394
        %v411 = vmul.f32 %v333, %v395
        %v412 = vmul.f32 %v340, %v396
        %v413 = vmul.f32 %v347, %v397
        %v414 = vmul.f32 %v354, %v398
        %v415 = vlaneseq
        %v416 = vshrl.u32 %v415, 7
        %v417 = vsub.s32 0, %v416
        %v418 = vrot.slane %v407, %v417
        %v419 = vlaneseq
        %v420 = vshrl.u32 %v419, 7
        %v421 = vsub.s32 0, %v420
        %v422 = vrot.slane %v408, %v421
        %v423 = vlaneseq
        %v424 = vshrl.u32 %v423, 7
        %v425 = vsub.s32 0, %v424
        %v426 = vrot.slane %v409, %v425
        %v427 = vlaneseq
        %v428 = vshrl.u32 %v427, 7
        %v429 = vsub.s32 0, %v428
        %v430 = vrot.slane %v410, %v429
        %v431 = vlaneseq
        %v432 = vshrl.u32 %v431, 7
        %v433 = vsub.s32 0, %v432
        %v434 = vrot.slane %v411, %v433
        %v435 = vlaneseq
        %v436 = vshrl.u32 %v435, 7
        %v437 = vsub.s32 0, %v436
        %v438 = vrot.slane %v412, %v437
        %v439 = vlaneseq
        %v440 = vshrl.u32 %v439, 7
        %v441 = vsub.s32 0, %v440
        %v442 = vrot.slane %v413, %v441
        %v443 = vlaneseq
        %v444 = vshrl.u32 %v443, 7
        %v445 = vsub.s32 0, %v444
        %v446 = vrot.slane %v414, %v445
        %v447 = vmul.f32 %v248, %v418
        %v448 = vmul.f32 %v253, %v422
        %v449 = vmul.f32 %v258, %v426
        %v450 = vmul.f32 %v263, %v430
        %v451 = vmul.f32 %v268, %v434
        %v452 = vmul.f32 %v273, %v438
        %v453 = vmul.f32 %v278, %v442
        %v454 = vmul.f32 %v283, %v446
        %v455 = vsel %vm286, %v447, 0.0
        %456 = vadd.xlane.f32.xlu0 %v455
        %v457 = vpop.xlane.xlu0 %456
        %v458 = vsel %vm286, %v448, 0.0
        %459 = vadd.xlane.f32.xlu0 %v458
        %v460 = vpop.xlane.xlu0 %459
        %v461 = vsel %vm286, %v449, 0.0
        %462 = vadd.xlane.f32.xlu0 %v461
        %v463 = vpop.xlane.xlu0 %462
        %v464 = vsel %vm286, %v450, 0.0
        %465 = vadd.xlane.f32.xlu0 %v464
        %v466 = vpop.xlane.xlu0 %465
        %v467 = vsel %vm286, %v451, 0.0
        %468 = vadd.xlane.f32.xlu0 %v467
        %v469 = vpop.xlane.xlu0 %468
        %v470 = vsel %vm286, %v452, 0.0
        %471 = vadd.xlane.f32.xlu0 %v470
        %v472 = vpop.xlane.xlu0 %471
        %v473 = vsel %vm286, %v453, 0.0
        %474 = vadd.xlane.f32.xlu0 %v473
        %v475 = vpop.xlane.xlu0 %474
        %v476 = vsel %vm286, %v454, 0.0
        %477 = vadd.xlane.f32.xlu0 %v476
        %v478 = vpop.xlane.xlu0 %477
        %vm479 = vcmask 80936
        %v480 = vsel %vm479, %v291, 0.0
        %v481 = vrot.slane %v480, 4
        %v482 = vadd.f32 %v480, %v481
        %v483 = vrot.slane %v482, 2
        %v484 = vadd.f32 %v482, %v483
        %v485 = vrot.slane %v484, 1
        %v486 = vadd.f32 %v484, %v485
        %v487 = vsel %vm479, %v292, 0.0
        %v488 = vrot.slane %v487, 4
        %v489 = vadd.f32 %v487, %v488
        %v490 = vrot.slane %v489, 2
        %v491 = vadd.f32 %v489, %v490
        %v492 = vrot.slane %v491, 1
        %v493 = vadd.f32 %v491, %v492
        %v494 = vsel %vm479, %v293, 0.0
        %v495 = vrot.slane %v494, 4
        %v496 = vadd.f32 %v494, %v495
        %v497 = vrot.slane %v496, 2
        %v498 = vadd.f32 %v496, %v497
        %v499 = vrot.slane %v498, 1
        %v500 = vadd.f32 %v498, %v499
        %v501 = vsel %vm479, %v294, 0.0
        %v502 = vrot.slane %v501, 4
        %v503 = vadd.f32 %v501, %v502
        %v504 = vrot.slane %v503, 2
        %v505 = vadd.f32 %v503, %v504
        %v506 = vrot.slane %v505, 1
        %v507 = vadd.f32 %v505, %v506
        %v508 = vsel %vm479, %v295, 0.0
        %v509 = vrot.slane %v508, 4
        %v510 = vadd.f32 %v508, %v509
        %v511 = vrot.slane %v510, 2
        %v512 = vadd.f32 %v510, %v511
        %v513 = vrot.slane %v512, 1
        %v514 = vadd.f32 %v512, %v513
        %v515 = vsel %vm479, %v296, 0.0
        %v516 = vrot.slane %v515, 4
        %v517 = vadd.f32 %v515, %v516
        %v518 = vrot.slane %v517, 2
        %v519 = vadd.f32 %v517, %v518
        %v520 = vrot.slane %v519, 1
        %v521 = vadd.f32 %v519, %v520
        %v522 = vsel %vm479, %v297, 0.0
        %v523 = vrot.slane %v522, 4
        %v524 = vadd.f32 %v522, %v523
        %v525 = vrot.slane %v524, 2
        %v526 = vadd.f32 %v524, %v525
        %v527 = vrot.slane %v526, 1
        %v528 = vadd.f32 %v526, %v527
        %v529 = vsel %vm479, %v298, 0.0
        %v530 = vrot.slane %v529, 4
        %v531 = vadd.f32 %v529, %v530
        %v532 = vrot.slane %v531, 2
        %v533 = vadd.f32 %v531, %v532
        %v534 = vrot.slane %v533, 1
        %v535 = vadd.f32 %v533, %v534
        %v536 = vmul.f32 %v486, %v486
        %v537 = vmul.f32 %v493, %v493
        %v538 = vmul.f32 %v500, %v500
        %v539 = vmul.f32 %v507, %v507
        %v540 = vmul.f32 %v514, %v514
        %v541 = vmul.f32 %v521, %v521
        %v542 = vmul.f32 %v528, %v528
        %v543 = vmul.f32 %v535, %v535
        %v552 = vsel %vm371, %v537, %v536
        %v553 = vsel %vm373, %v538, %v552
        %v554 = vsel %vm375, %v539, %v553
        %v555 = vsel %vm377, %v540, %v554
        %v556 = vsel %vm379, %v541, %v555
        %v557 = vsel %vm381, %v542, %v556
        %v558 = vsel %vm383, %v543, %v557
        %559 = vrot.lane.b32.xlu0 %v558, 123
        %v560 = vpop.permute.xlu0 %559
        %v562 = vsel %vm286, %v560, 0.0
        %563 = vadd.xlane.f32.xlu0 %v562
        %v564 = vpop.xlane.xlu0 %563
        %v565 = vadd.f32 %v564, 1e-07
        %v566 = vrsqrt.pop %v565
        %v568 = vrot.slane %v566, 1
        %v569 = vrot.slane %v566, 2
        %v570 = vrot.slane %v566, 3
        %v571 = vrot.slane %v566, 4
        %v572 = vrot.slane %v566, 5
        %v573 = vrot.slane %v566, 6
        %v574 = vrot.slane %v566, 7
        %v583 = vmul.f32 %v486, %v566
        %v584 = vmul.f32 %v493, %v568
        %v585 = vmul.f32 %v500, %v569
        %v586 = vmul.f32 %v507, %v570
        %v587 = vmul.f32 %v514, %v571
        %v588 = vmul.f32 %v521, %v572
        %v589 = vmul.f32 %v528, %v573
        %v590 = vmul.f32 %v535, %v574
        %v591 = vlaneseq
        %v592 = vshrl.u32 %v591, 7
        %v593 = vsub.s32 0, %v592
        %v594 = vrot.slane %v583, %v593
        %v595 = vlaneseq
        %v596 = vshrl.u32 %v595, 7
        %v597 = vsub.s32 0, %v596
        %v598 = vrot.slane %v584, %v597
        %v599 = vlaneseq
        %v600 = vshrl.u32 %v599, 7
        %v601 = vsub.s32 0, %v600
        %v602 = vrot.slane %v585, %v601
        %v603 = vlaneseq
        %v604 = vshrl.u32 %v603, 7
        %v605 = vsub.s32 0, %v604
        %v606 = vrot.slane %v586, %v605
        %v607 = vlaneseq
        %v608 = vshrl.u32 %v607, 7
        %v609 = vsub.s32 0, %v608
        %v610 = vrot.slane %v587, %v609
        %v611 = vlaneseq
        %v612 = vshrl.u32 %v611, 7
        %v613 = vsub.s32 0, %v612
        %v614 = vrot.slane %v588, %v613
        %v615 = vlaneseq
        %v616 = vshrl.u32 %v615, 7
        %v617 = vsub.s32 0, %v616
        %v618 = vrot.slane %v589, %v617
        %v619 = vlaneseq
        %v620 = vshrl.u32 %v619, 7
        %v621 = vsub.s32 0, %v620
        %v622 = vrot.slane %v590, %v621
        %v623 = vmul.f32 %v248, %v594
        %v624 = vmul.f32 %v253, %v598
        %v625 = vmul.f32 %v258, %v602
        %v626 = vmul.f32 %v263, %v606
        %v627 = vmul.f32 %v268, %v610
        %v628 = vmul.f32 %v273, %v614
        %v629 = vmul.f32 %v278, %v618
        %v630 = vmul.f32 %v283, %v622
        %639 = vrot.lane.b32.xlu0 %v623, 123
        %v640 = vpop.permute.xlu0 %639
        %641 = vrot.lane.b32.xlu0 %v624, 123
        %v642 = vpop.permute.xlu0 %641
        %643 = vrot.lane.b32.xlu0 %v625, 123
        %v644 = vpop.permute.xlu0 %643
        %645 = vrot.lane.b32.xlu0 %v626, 123
        %v646 = vpop.permute.xlu0 %645
        %647 = vrot.lane.b32.xlu0 %v627, 123
        %v648 = vpop.permute.xlu0 %647
        %649 = vrot.lane.b32.xlu0 %v628, 123
        %v650 = vpop.permute.xlu0 %649
        %651 = vrot.lane.b32.xlu0 %v629, 123
        %v652 = vpop.permute.xlu0 %651
        %653 = vrot.lane.b32.xlu0 %v630, 123
        %v654 = vpop.permute.xlu0 %653
        %v663 = vsel %vm286, %v640, 0.0
        %664 = vadd.xlane.f32.xlu0 %v663
        %v665 = vpop.xlane.xlu0 %664
        %v666 = vsel %vm286, %v642, 0.0
        %667 = vadd.xlane.f32.xlu0 %v666
        %v668 = vpop.xlane.xlu0 %667
        %v669 = vsel %vm286, %v644, 0.0
        %670 = vadd.xlane.f32.xlu0 %v669
        %v671 = vpop.xlane.xlu0 %670
        %v672 = vsel %vm286, %v646, 0.0
        %673 = vadd.xlane.f32.xlu0 %v672
        %v674 = vpop.xlane.xlu0 %673
        %v675 = vsel %vm286, %v648, 0.0
        %676 = vadd.xlane.f32.xlu0 %v675
        %v677 = vpop.xlane.xlu0 %676
        %v678 = vsel %vm286, %v650, 0.0
        %679 = vadd.xlane.f32.xlu0 %v678
        %v680 = vpop.xlane.xlu0 %679
        %v681 = vsel %vm286, %v652, 0.0
        %682 = vadd.xlane.f32.xlu0 %v681
        %v683 = vpop.xlane.xlu0 %682
        %v684 = vsel %vm286, %v654, 0.0
        %685 = vadd.xlane.f32.xlu0 %v684
        %v686 = vpop.xlane.xlu0 %685
        %vm687 = vcmask 121936
        %v688 = vsel %vm687, %v291, 0.0
        %v689 = vrot.slane %v688, 4
        %v690 = vadd.f32 %v688, %v689
        %v691 = vrot.slane %v690, 2
        %v692 = vadd.f32 %v690, %v691
        %v693 = vrot.slane %v692, 1
        %v694 = vadd.f32 %v692, %v693
        %v695 = vsel %vm687, %v292, 0.0
        %v696 = vrot.slane %v695, 4
        %v697 = vadd.f32 %v695, %v696
        %v698 = vrot.slane %v697, 2
        %v699 = vadd.f32 %v697, %v698
        %v700 = vrot.slane %v699, 1
        %v701 = vadd.f32 %v699, %v700
        %v702 = vsel %vm687, %v293, 0.0
        %v703 = vrot.slane %v702, 4
        %v704 = vadd.f32 %v702, %v703
        %v705 = vrot.slane %v704, 2
        %v706 = vadd.f32 %v704, %v705
        %v707 = vrot.slane %v706, 1
        %v708 = vadd.f32 %v706, %v707
        %v709 = vsel %vm687, %v294, 0.0
        %v710 = vrot.slane %v709, 4
        %v711 = vadd.f32 %v709, %v710
        %v712 = vrot.slane %v711, 2
        %v713 = vadd.f32 %v711, %v712
        %v714 = vrot.slane %v713, 1
        %v715 = vadd.f32 %v713, %v714
        %v716 = vsel %vm687, %v295, 0.0
        %v717 = vrot.slane %v716, 4
        %v718 = vadd.f32 %v716, %v717
        %v719 = vrot.slane %v718, 2
        %v720 = vadd.f32 %v718, %v719
        %v721 = vrot.slane %v720, 1
        %v722 = vadd.f32 %v720, %v721
        %v723 = vsel %vm687, %v296, 0.0
        %v724 = vrot.slane %v723, 4
        %v725 = vadd.f32 %v723, %v724
        %v726 = vrot.slane %v725, 2
        %v727 = vadd.f32 %v725, %v726
        %v728 = vrot.slane %v727, 1
        %v729 = vadd.f32 %v727, %v728
        %v730 = vsel %vm687, %v297, 0.0
        %v731 = vrot.slane %v730, 4
        %v732 = vadd.f32 %v730, %v731
        %v733 = vrot.slane %v732, 2
        %v734 = vadd.f32 %v732, %v733
        %v735 = vrot.slane %v734, 1
        %v736 = vadd.f32 %v734, %v735
        %v737 = vsel %vm687, %v298, 0.0
        %v738 = vrot.slane %v737, 4
        %v739 = vadd.f32 %v737, %v738
        %v740 = vrot.slane %v739, 2
        %v741 = vadd.f32 %v739, %v740
        %v742 = vrot.slane %v741, 1
        %v743 = vadd.f32 %v741, %v742
        %v744 = vmul.f32 %v694, %v694
        %v745 = vmul.f32 %v701, %v701
        %v746 = vmul.f32 %v708, %v708
        %v747 = vmul.f32 %v715, %v715
        %v748 = vmul.f32 %v722, %v722
        %v749 = vmul.f32 %v729, %v729
        %v750 = vmul.f32 %v736, %v736
        %v751 = vmul.f32 %v743, %v743
        %v760 = vsel %vm371, %v745, %v744
        %v761 = vsel %vm373, %v746, %v760
        %v762 = vsel %vm375, %v747, %v761
        %v763 = vsel %vm377, %v748, %v762
        %v764 = vsel %vm379, %v749, %v763
        %v765 = vsel %vm381, %v750, %v764
        %v766 = vsel %vm383, %v751, %v765
        %767 = vrot.lane.b32.xlu0 %v766, 118
        %v768 = vpop.permute.xlu0 %767
        %v770 = vsel %vm286, %v768, 0.0
        %771 = vadd.xlane.f32.xlu0 %v770
        %v772 = vpop.xlane.xlu0 %771
        %v773 = vadd.f32 %v772, 1e-07
        %v774 = vrsqrt.pop %v773
        %v776 = vrot.slane %v774, 1
        %v777 = vrot.slane %v774, 2
        %v778 = vrot.slane %v774, 3
        %v779 = vrot.slane %v774, 4
        %v780 = vrot.slane %v774, 5
        %v781 = vrot.slane %v774, 6
        %v782 = vrot.slane %v774, 7
        %v791 = vmul.f32 %v694, %v774
        %v792 = vmul.f32 %v701, %v776
        %v793 = vmul.f32 %v708, %v777
        %v794 = vmul.f32 %v715, %v778
        %v795 = vmul.f32 %v722, %v779
        %v796 = vmul.f32 %v729, %v780
        %v797 = vmul.f32 %v736, %v781
        %v798 = vmul.f32 %v743, %v782
        %v799 = vlaneseq
        %v800 = vshrl.u32 %v799, 7
        %v801 = vsub.s32 0, %v800
        %v802 = vrot.slane %v791, %v801
        %v803 = vlaneseq
        %v804 = vshrl.u32 %v803, 7
        %v805 = vsub.s32 0, %v804
        %v806 = vrot.slane %v792, %v805
        %v807 = vlaneseq
        %v808 = vshrl.u32 %v807, 7
        %v809 = vsub.s32 0, %v808
        %v810 = vrot.slane %v793, %v809
        %v811 = vlaneseq
        %v812 = vshrl.u32 %v811, 7
        %v813 = vsub.s32 0, %v812
        %v814 = vrot.slane %v794, %v813
        %v815 = vlaneseq
        %v816 = vshrl.u32 %v815, 7
        %v817 = vsub.s32 0, %v816
        %v818 = vrot.slane %v795, %v817
        %v819 = vlaneseq
        %v820 = vshrl.u32 %v819, 7
        %v821 = vsub.s32 0, %v820
        %v822 = vrot.slane %v796, %v821
        %v823 = vlaneseq
        %v824 = vshrl.u32 %v823, 7
        %v825 = vsub.s32 0, %v824
        %v826 = vrot.slane %v797, %v825
        %v827 = vlaneseq
        %v828 = vshrl.u32 %v827, 7
        %v829 = vsub.s32 0, %v828
        %v830 = vrot.slane %v798, %v829
        %v831 = vmul.f32 %v248, %v802
        %v832 = vmul.f32 %v253, %v806
        %v833 = vmul.f32 %v258, %v810
        %v834 = vmul.f32 %v263, %v814
        %v835 = vmul.f32 %v268, %v818
        %v836 = vmul.f32 %v273, %v822
        %v837 = vmul.f32 %v278, %v826
        %v838 = vmul.f32 %v283, %v830
        %847 = vrot.lane.b32.xlu0 %v831, 118
        %v848 = vpop.permute.xlu0 %847
        %849 = vrot.lane.b32.xlu0 %v832, 118
        %v850 = vpop.permute.xlu0 %849
        %851 = vrot.lane.b32.xlu0 %v833, 118
        %v852 = vpop.permute.xlu0 %851
        %853 = vrot.lane.b32.xlu0 %v834, 118
        %v854 = vpop.permute.xlu0 %853
        %855 = vrot.lane.b32.xlu0 %v835, 118
        %v856 = vpop.permute.xlu0 %855
        %857 = vrot.lane.b32.xlu0 %v836, 118
        %v858 = vpop.permute.xlu0 %857
        %859 = vrot.lane.b32.xlu0 %v837, 118
        %v860 = vpop.permute.xlu0 %859
        %861 = vrot.lane.b32.xlu0 %v838, 118
        %v862 = vpop.permute.xlu0 %861
        %v871 = vsel %vm286, %v848, 0.0
        %872 = vadd.xlane.f32.xlu0 %v871
        %v873 = vpop.xlane.xlu0 %872
        %v874 = vsel %vm286, %v850, 0.0
        %875 = vadd.xlane.f32.xlu0 %v874
        %v876 = vpop.xlane.xlu0 %875
        %v877 = vsel %vm286, %v852, 0.0
        %878 = vadd.xlane.f32.xlu0 %v877
        %v879 = vpop.xlane.xlu0 %878
        %v880 = vsel %vm286, %v854, 0.0
        %881 = vadd.xlane.f32.xlu0 %v880
        %v882 = vpop.xlane.xlu0 %881
        %v883 = vsel %vm286, %v856, 0.0
        %884 = vadd.xlane.f32.xlu0 %v883
        %v885 = vpop.xlane.xlu0 %884
        %v886 = vsel %vm286, %v858, 0.0
        %887 = vadd.xlane.f32.xlu0 %v886
        %v888 = vpop.xlane.xlu0 %887
        %v889 = vsel %vm286, %v860, 0.0
        %890 = vadd.xlane.f32.xlu0 %v889
        %v891 = vpop.xlane.xlu0 %890
        %v892 = vsel %vm286, %v862, 0.0
        %893 = vadd.xlane.f32.xlu0 %v892
        %v894 = vpop.xlane.xlu0 %893
        %vm895 = vcmask 162936
        %v896 = vsel %vm895, %v291, 0.0
        %v897 = vrot.slane %v896, 4
        %v898 = vadd.f32 %v896, %v897
        %v899 = vrot.slane %v898, 2
        %v900 = vadd.f32 %v898, %v899
        %v901 = vrot.slane %v900, 1
        %v902 = vadd.f32 %v900, %v901
        %v903 = vsel %vm895, %v292, 0.0
        %v904 = vrot.slane %v903, 4
        %v905 = vadd.f32 %v903, %v904
        %v906 = vrot.slane %v905, 2
        %v907 = vadd.f32 %v905, %v906
        %v908 = vrot.slane %v907, 1
        %v909 = vadd.f32 %v907, %v908
        %v910 = vsel %vm895, %v293, 0.0
        %v911 = vrot.slane %v910, 4
        %v912 = vadd.f32 %v910, %v911
        %v913 = vrot.slane %v912, 2
        %v914 = vadd.f32 %v912, %v913
        %v915 = vrot.slane %v914, 1
        %v916 = vadd.f32 %v914, %v915
        %v917 = vsel %vm895, %v294, 0.0
        %v918 = vrot.slane %v917, 4
        %v919 = vadd.f32 %v917, %v918
        %v920 = vrot.slane %v919, 2
        %v921 = vadd.f32 %v919, %v920
        %v922 = vrot.slane %v921, 1
        %v923 = vadd.f32 %v921, %v922
        %v924 = vsel %vm895, %v295, 0.0
        %v925 = vrot.slane %v924, 4
        %v926 = vadd.f32 %v924, %v925
        %v927 = vrot.slane %v926, 2
        %v928 = vadd.f32 %v926, %v927
        %v929 = vrot.slane %v928, 1
        %v930 = vadd.f32 %v928, %v929
        %v931 = vsel %vm895, %v296, 0.0
        %v932 = vrot.slane %v931, 4
        %v933 = vadd.f32 %v931, %v932
        %v934 = vrot.slane %v933, 2
        %v935 = vadd.f32 %v933, %v934
        %v936 = vrot.slane %v935, 1
        %v937 = vadd.f32 %v935, %v936
        %v938 = vsel %vm895, %v297, 0.0
        %v939 = vrot.slane %v938, 4
        %v940 = vadd.f32 %v938, %v939
        %v941 = vrot.slane %v940, 2
        %v942 = vadd.f32 %v940, %v941
        %v943 = vrot.slane %v942, 1
        %v944 = vadd.f32 %v942, %v943
        %v945 = vsel %vm895, %v298, 0.0
        %v946 = vrot.slane %v945, 4
        %v947 = vadd.f32 %v945, %v946
        %v948 = vrot.slane %v947, 2
        %v949 = vadd.f32 %v947, %v948
        %v950 = vrot.slane %v949, 1
        %v951 = vadd.f32 %v949, %v950
        %v952 = vmul.f32 %v902, %v902
        %v953 = vmul.f32 %v909, %v909
        %v954 = vmul.f32 %v916, %v916
        %v955 = vmul.f32 %v923, %v923
        %v956 = vmul.f32 %v930, %v930
        %v957 = vmul.f32 %v937, %v937
        %v958 = vmul.f32 %v944, %v944
        %v959 = vmul.f32 %v951, %v951
        %v968 = vsel %vm371, %v953, %v952
        %v969 = vsel %vm373, %v954, %v968
        %v970 = vsel %vm375, %v955, %v969
        %v971 = vsel %vm377, %v956, %v970
        %v972 = vsel %vm379, %v957, %v971
        %v973 = vsel %vm381, %v958, %v972
        %v974 = vsel %vm383, %v959, %v973
        %975 = vrot.lane.b32.xlu0 %v974, 113
        %v976 = vpop.permute.xlu0 %975
        %v978 = vsel %vm286, %v976, 0.0
        %979 = vadd.xlane.f32.xlu0 %v978
        %v980 = vpop.xlane.xlu0 %979
        %v981 = vadd.f32 %v980, 1e-07
        %v982 = vrsqrt.pop %v981
        %v984 = vrot.slane %v982, 1
        %v985 = vrot.slane %v982, 2
        %v986 = vrot.slane %v982, 3
        %v987 = vrot.slane %v982, 4
        %v988 = vrot.slane %v982, 5
        %v989 = vrot.slane %v982, 6
        %v990 = vrot.slane %v982, 7
        %v999 = vmul.f32 %v902, %v982
        %v1000 = vmul.f32 %v909, %v984
        %v1001 = vmul.f32 %v916, %v985
        %v1002 = vmul.f32 %v923, %v986
        %v1003 = vmul.f32 %v930, %v987
        %v1004 = vmul.f32 %v937, %v988
        %v1005 = vmul.f32 %v944, %v989
        %v1006 = vmul.f32 %v951, %v990
        %v1007 = vlaneseq
        %v1008 = vshrl.u32 %v1007, 7
        %v1009 = vsub.s32 0, %v1008
        %v1010 = vrot.slane %v999, %v1009
        %v1011 = vlaneseq
        %v1012 = vshrl.u32 %v1011, 7
        %v1013 = vsub.s32 0, %v1012
        %v1014 = vrot.slane %v1000, %v1013
        %v1015 = vlaneseq
        %v1016 = vshrl.u32 %v1015, 7
        %v1017 = vsub.s32 0, %v1016
        %v1018 = vrot.slane %v1001, %v1017
        %v1019 = vlaneseq
        %v1020 = vshrl.u32 %v1019, 7
        %v1021 = vsub.s32 0, %v1020
        %v1022 = vrot.slane %v1002, %v1021
        %v1023 = vlaneseq
        %v1024 = vshrl.u32 %v1023, 7
        %v1025 = vsub.s32 0, %v1024
        %v1026 = vrot.slane %v1003, %v1025
        %v1027 = vlaneseq
        %v1028 = vshrl.u32 %v1027, 7
        %v1029 = vsub.s32 0, %v1028
        %v1030 = vrot.slane %v1004, %v1029
        %v1031 = vlaneseq
        %v1032 = vshrl.u32 %v1031, 7
        %v1033 = vsub.s32 0, %v1032
        %v1034 = vrot.slane %v1005, %v1033
        %v1035 = vlaneseq
        %v1036 = vshrl.u32 %v1035, 7
        %v1037 = vsub.s32 0, %v1036
        %v1038 = vrot.slane %v1006, %v1037
        %v1039 = vmul.f32 %v248, %v1010
        %v1040 = vmul.f32 %v253, %v1014
        %v1041 = vmul.f32 %v258, %v1018
        %v1042 = vmul.f32 %v263, %v1022
        %v1043 = vmul.f32 %v268, %v1026
        %v1044 = vmul.f32 %v273, %v1030
        %v1045 = vmul.f32 %v278, %v1034
        %v1046 = vmul.f32 %v283, %v1038
        %1055 = vrot.lane.b32.xlu0 %v1039, 113
        %v1056 = vpop.permute.xlu0 %1055
        %1057 = vrot.lane.b32.xlu0 %v1040, 113
        %v1058 = vpop.permute.xlu0 %1057
        %1059 = vrot.lane.b32.xlu0 %v1041, 113
        %v1060 = vpop.permute.xlu0 %1059
        %1061 = vrot.lane.b32.xlu0 %v1042, 113
        %v1062 = vpop.permute.xlu0 %1061
        %1063 = vrot.lane.b32.xlu0 %v1043, 113
        %v1064 = vpop.permute.xlu0 %1063
        %1065 = vrot.lane.b32.xlu0 %v1044, 113
        %v1066 = vpop.permute.xlu0 %1065
        %1067 = vrot.lane.b32.xlu0 %v1045, 113
        %v1068 = vpop.permute.xlu0 %1067
        %1069 = vrot.lane.b32.xlu0 %v1046, 113
        %v1070 = vpop.permute.xlu0 %1069
        %v1079 = vsel %vm286, %v1056, 0.0
        %1080 = vadd.xlane.f32.xlu0 %v1079
        %v1081 = vpop.xlane.xlu0 %1080
        %v1082 = vsel %vm286, %v1058, 0.0
        %1083 = vadd.xlane.f32.xlu0 %v1082
        %v1084 = vpop.xlane.xlu0 %1083
        %v1085 = vsel %vm286, %v1060, 0.0
        %1086 = vadd.xlane.f32.xlu0 %v1085
        %v1087 = vpop.xlane.xlu0 %1086
        %v1088 = vsel %vm286, %v1062, 0.0
        %1089 = vadd.xlane.f32.xlu0 %v1088
        %v1090 = vpop.xlane.xlu0 %1089
        %v1091 = vsel %vm286, %v1064, 0.0
        %1092 = vadd.xlane.f32.xlu0 %v1091
        %v1093 = vpop.xlane.xlu0 %1092
        %v1094 = vsel %vm286, %v1066, 0.0
        %1095 = vadd.xlane.f32.xlu0 %v1094
        %v1096 = vpop.xlane.xlu0 %1095
        %v1097 = vsel %vm286, %v1068, 0.0
        %1098 = vadd.xlane.f32.xlu0 %v1097
        %v1099 = vpop.xlane.xlu0 %1098
        %v1100 = vsel %vm286, %v1070, 0.0
        %1101 = vadd.xlane.f32.xlu0 %v1100
        %v1102 = vpop.xlane.xlu0 %1101
        %vm1103 = vcmask 203936
        %v1104 = vsel %vm1103, %v291, 0.0
        %v1105 = vrot.slane %v1104, 4
        %v1106 = vadd.f32 %v1104, %v1105
        %v1107 = vrot.slane %v1106, 2
        %v1108 = vadd.f32 %v1106, %v1107
        %v1109 = vrot.slane %v1108, 1
        %v1110 = vadd.f32 %v1108, %v1109
        %v1111 = vsel %vm1103, %v292, 0.0
        %v1112 = vrot.slane %v1111, 4
        %v1113 = vadd.f32 %v1111, %v1112
        %v1114 = vrot.slane %v1113, 2
        %v1115 = vadd.f32 %v1113, %v1114
        %v1116 = vrot.slane %v1115, 1
        %v1117 = vadd.f32 %v1115, %v1116
        %v1118 = vsel %vm1103, %v293, 0.0
        %v1119 = vrot.slane %v1118, 4
        %v1120 = vadd.f32 %v1118, %v1119
        %v1121 = vrot.slane %v1120, 2
        %v1122 = vadd.f32 %v1120, %v1121
        %v1123 = vrot.slane %v1122, 1
        %v1124 = vadd.f32 %v1122, %v1123
        %v1125 = vsel %vm1103, %v294, 0.0
        %v1126 = vrot.slane %v1125, 4
        %v1127 = vadd.f32 %v1125, %v1126
        %v1128 = vrot.slane %v1127, 2
        %v1129 = vadd.f32 %v1127, %v1128
        %v1130 = vrot.slane %v1129, 1
        %v1131 = vadd.f32 %v1129, %v1130
        %v1132 = vsel %vm1103, %v295, 0.0
        %v1133 = vrot.slane %v1132, 4
        %v1134 = vadd.f32 %v1132, %v1133
        %v1135 = vrot.slane %v1134, 2
        %v1136 = vadd.f32 %v1134, %v1135
        %v1137 = vrot.slane %v1136, 1
        %v1138 = vadd.f32 %v1136, %v1137
        %v1139 = vsel %vm1103, %v296, 0.0
        %v1140 = vrot.slane %v1139, 4
        %v1141 = vadd.f32 %v1139, %v1140
        %v1142 = vrot.slane %v1141, 2
        %v1143 = vadd.f32 %v1141, %v1142
        %v1144 = vrot.slane %v1143, 1
        %v1145 = vadd.f32 %v1143, %v1144
        %v1146 = vsel %vm1103, %v297, 0.0
        %v1147 = vrot.slane %v1146, 4
        %v1148 = vadd.f32 %v1146, %v1147
        %v1149 = vrot.slane %v1148, 2
        %v1150 = vadd.f32 %v1148, %v1149
        %v1151 = vrot.slane %v1150, 1
        %v1152 = vadd.f32 %v1150, %v1151
        %v1153 = vsel %vm1103, %v298, 0.0
        %v1154 = vrot.slane %v1153, 4
        %v1155 = vadd.f32 %v1153, %v1154
        %v1156 = vrot.slane %v1155, 2
        %v1157 = vadd.f32 %v1155, %v1156
        %v1158 = vrot.slane %v1157, 1
        %v1159 = vadd.f32 %v1157, %v1158
        %v1160 = vmul.f32 %v1110, %v1110
        %v1161 = vmul.f32 %v1117, %v1117
        %v1162 = vmul.f32 %v1124, %v1124
        %v1163 = vmul.f32 %v1131, %v1131
        %v1164 = vmul.f32 %v1138, %v1138
        %v1165 = vmul.f32 %v1145, %v1145
        %v1166 = vmul.f32 %v1152, %v1152
        %v1167 = vmul.f32 %v1159, %v1159
        %v1176 = vsel %vm371, %v1161, %v1160
        %v1177 = vsel %vm373, %v1162, %v1176
        %v1178 = vsel %vm375, %v1163, %v1177
        %v1179 = vsel %vm377, %v1164, %v1178
        %v1180 = vsel %vm379, %v1165, %v1179
        %v1181 = vsel %vm381, %v1166, %v1180
        %v1182 = vsel %vm383, %v1167, %v1181
        %1183 = vrot.lane.b32.xlu0 %v1182, 108
        %v1184 = vpop.permute.xlu0 %1183
        %v1186 = vsel %vm286, %v1184, 0.0
        %1187 = vadd.xlane.f32.xlu0 %v1186
        %v1188 = vpop.xlane.xlu0 %1187
        %v1189 = vadd.f32 %v1188, 1e-07
        %v1190 = vrsqrt.pop %v1189
        %v1192 = vrot.slane %v1190, 1
        %v1193 = vrot.slane %v1190, 2
        %v1194 = vrot.slane %v1190, 3
        %v1195 = vrot.slane %v1190, 4
        %v1196 = vrot.slane %v1190, 5
        %v1197 = vrot.slane %v1190, 6
        %v1198 = vrot.slane %v1190, 7
        %v1207 = vmul.f32 %v1110, %v1190
        %v1208 = vmul.f32 %v1117, %v1192
        %v1209 = vmul.f32 %v1124, %v1193
        %v1210 = vmul.f32 %v1131, %v1194
        %v1211 = vmul.f32 %v1138, %v1195
        %v1212 = vmul.f32 %v1145, %v1196
        %v1213 = vmul.f32 %v1152, %v1197
        %v1214 = vmul.f32 %v1159, %v1198
        %v1215 = vlaneseq
        %v1216 = vshrl.u32 %v1215, 7
        %v1217 = vsub.s32 0, %v1216
        %v1218 = vrot.slane %v1207, %v1217
        %v1219 = vlaneseq
        %v1220 = vshrl.u32 %v1219, 7
        %v1221 = vsub.s32 0, %v1220
        %v1222 = vrot.slane %v1208, %v1221
        %v1223 = vlaneseq
        %v1224 = vshrl.u32 %v1223, 7
        %v1225 = vsub.s32 0, %v1224
        %v1226 = vrot.slane %v1209, %v1225
        %v1227 = vlaneseq
        %v1228 = vshrl.u32 %v1227, 7
        %v1229 = vsub.s32 0, %v1228
        %v1230 = vrot.slane %v1210, %v1229
        %v1231 = vlaneseq
        %v1232 = vshrl.u32 %v1231, 7
        %v1233 = vsub.s32 0, %v1232
        %v1234 = vrot.slane %v1211, %v1233
        %v1235 = vlaneseq
        %v1236 = vshrl.u32 %v1235, 7
        %v1237 = vsub.s32 0, %v1236
        %v1238 = vrot.slane %v1212, %v1237
        %v1239 = vlaneseq
        %v1240 = vshrl.u32 %v1239, 7
        %v1241 = vsub.s32 0, %v1240
        %v1242 = vrot.slane %v1213, %v1241
        %v1243 = vlaneseq
        %v1244 = vshrl.u32 %v1243, 7
        %v1245 = vsub.s32 0, %v1244
        %v1246 = vrot.slane %v1214, %v1245
        %v1247 = vmul.f32 %v248, %v1218
        %v1248 = vmul.f32 %v253, %v1222
        %v1249 = vmul.f32 %v258, %v1226
        %v1250 = vmul.f32 %v263, %v1230
        %v1251 = vmul.f32 %v268, %v1234
        %v1252 = vmul.f32 %v273, %v1238
        %v1253 = vmul.f32 %v278, %v1242
        %v1254 = vmul.f32 %v283, %v1246
        %1263 = vrot.lane.b32.xlu0 %v1247, 108
        %v1264 = vpop.permute.xlu0 %1263
        %1265 = vrot.lane.b32.xlu0 %v1248, 108
        %v1266 = vpop.permute.xlu0 %1265
        %1267 = vrot.lane.b32.xlu0 %v1249, 108
        %v1268 = vpop.permute.xlu0 %1267
        %1269 = vrot.lane.b32.xlu0 %v1250, 108
        %v1270 = vpop.permute.xlu0 %1269
        %1271 = vrot.lane.b32.xlu0 %v1251, 108
        %v1272 = vpop.permute.xlu0 %1271
        %1273 = vrot.lane.b32.xlu0 %v1252, 108
        %v1274 = vpop.permute.xlu0 %1273
        %1275 = vrot.lane.b32.xlu0 %v1253, 108
        %v1276 = vpop.permute.xlu0 %1275
        %1277 = vrot.lane.b32.xlu0 %v1254, 108
        %v1278 = vpop.permute.xlu0 %1277
        %v1287 = vsel %vm286, %v1264, 0.0
        %1288 = vadd.xlane.f32.xlu0 %v1287
        %v1289 = vpop.xlane.xlu0 %1288
        %v1290 = vsel %vm286, %v1266, 0.0
        %1291 = vadd.xlane.f32.xlu0 %v1290
        %v1292 = vpop.xlane.xlu0 %1291
        %v1293 = vsel %vm286, %v1268, 0.0
        %1294 = vadd.xlane.f32.xlu0 %v1293
        %v1295 = vpop.xlane.xlu0 %1294
        %v1296 = vsel %vm286, %v1270, 0.0
        %1297 = vadd.xlane.f32.xlu0 %v1296
        %v1298 = vpop.xlane.xlu0 %1297
        %v1299 = vsel %vm286, %v1272, 0.0
        %1300 = vadd.xlane.f32.xlu0 %v1299
        %v1301 = vpop.xlane.xlu0 %1300
        %v1302 = vsel %vm286, %v1274, 0.0
        %1303 = vadd.xlane.f32.xlu0 %v1302
        %v1304 = vpop.xlane.xlu0 %1303
        %v1305 = vsel %vm286, %v1276, 0.0
        %1306 = vadd.xlane.f32.xlu0 %v1305
        %v1307 = vpop.xlane.xlu0 %1306
        %v1308 = vsel %vm286, %v1278, 0.0
        %1309 = vadd.xlane.f32.xlu0 %v1308
        %v1310 = vpop.xlane.xlu0 %1309
        %vm1311 = vcmask 7168
        %v1312 = vsel %vm1311, %v457, %v665
        %v1313 = vsel %vm1311, %v460, %v668
        %v1314 = vsel %vm1311, %v463, %v671
        %v1315 = vsel %vm1311, %v466, %v674
        %v1316 = vsel %vm1311, %v469, %v677
        %v1317 = vsel %vm1311, %v472, %v680
        %v1318 = vsel %vm1311, %v475, %v683
        %v1319 = vsel %vm1311, %v478, %v686
        %vm1320 = vcmask 15360
        %v1321 = vsel %vm1320, %v1312, %v873
        %v1322 = vsel %vm1320, %v1313, %v876
        %v1323 = vsel %vm1320, %v1314, %v879
        %v1324 = vsel %vm1320, %v1315, %v882
        %v1325 = vsel %vm1320, %v1316, %v885
        %v1326 = vsel %vm1320, %v1317, %v888
        %v1327 = vsel %vm1320, %v1318, %v891
        %v1328 = vsel %vm1320, %v1319, %v894
        %vm1329 = vcmask 23552
        %v1330 = vsel %vm1329, %v1321, %v1081
        %v1331 = vsel %vm1329, %v1322, %v1084
        %v1332 = vsel %vm1329, %v1323, %v1087
        %v1333 = vsel %vm1329, %v1324, %v1090
        %v1334 = vsel %vm1329, %v1325, %v1093
        %v1335 = vsel %vm1329, %v1326, %v1096
        %v1336 = vsel %vm1329, %v1327, %v1099
        %v1337 = vsel %vm1329, %v1328, %v1102
        %vm1338 = vcmask 31744
        %v1339 = vsel %vm1338, %v1330, %v1289
        %v1340 = vsel %vm1338, %v1331, %v1292
        %v1341 = vsel %vm1338, %v1332, %v1295
        %v1342 = vsel %vm1338, %v1333, %v1298
        %v1343 = vsel %vm1338, %v1334, %v1301
        %v1344 = vsel %vm1338, %v1335, %v1304
        %v1345 = vsel %vm1338, %v1336, %v1307
        %v1346 = vsel %vm1338, %v1337, %v1310
        %v1347 = vsel %vm286, %v1339, -inf
        %1348 = vmax.xlane.f32.xlu0 %v1347
        %v1349 = vpop.xlane.xlu0 %1348
        %v1350 = vsel %vm286, %v1340, -inf
        %1351 = vmax.xlane.f32.xlu0 %v1350
        %v1352 = vpop.xlane.xlu0 %1351
        %v1353 = vsel %vm286, %v1341, -inf
        %1354 = vmax.xlane.f32.xlu0 %v1353
        %v1355 = vpop.xlane.xlu0 %1354
        %v1356 = vsel %vm286, %v1342, -inf
        %1357 = vmax.xlane.f32.xlu0 %v1356
        %v1358 = vpop.xlane.xlu0 %1357
        %v1359 = vsel %vm286, %v1343, -inf
        %1360 = vmax.xlane.f32.xlu0 %v1359
        %v1361 = vpop.xlane.xlu0 %1360
        %v1362 = vsel %vm286, %v1344, -inf
        %1363 = vmax.xlane.f32.xlu0 %v1362
        %v1364 = vpop.xlane.xlu0 %1363
        %v1365 = vsel %vm286, %v1345, -inf
        %1366 = vmax.xlane.f32.xlu0 %v1365
        %v1367 = vpop.xlane.xlu0 %1366
        %v1368 = vsel %vm286, %v1346, -inf
        %1369 = vmax.xlane.f32.xlu0 %v1368
        %v1370 = vpop.xlane.xlu0 %1369
        %v1371 = vsub.f32 %v1339, %v1349
        %v1372 = vsub.f32 %v1340, %v1352
        %v1373 = vsub.f32 %v1341, %v1355
        %v1374 = vsub.f32 %v1342, %v1358
        %v1375 = vsub.f32 %v1343, %v1361
        %v1376 = vsub.f32 %v1344, %v1364
        %v1377 = vsub.f32 %v1345, %v1367
        %v1378 = vsub.f32 %v1346, %v1370
        %v1379 = vmul.f32 %v1371, 1.442695
        %v1380 = vpow.pop %v1379
        %v1381 = vmul.f32 %v1372, 1.442695
        %v1382 = vpow.pop %v1381
        %v1383 = vmul.f32 %v1373, 1.442695
        %v1384 = vpow.pop %v1383
        %v1385 = vmul.f32 %v1374, 1.442695
        %v1386 = vpow.pop %v1385
        %v1387 = vmul.f32 %v1375, 1.442695
        %v1388 = vpow.pop %v1387
        %v1389 = vmul.f32 %v1376, 1.442695
        %v1390 = vpow.pop %v1389
        %v1391 = vmul.f32 %v1377, 1.442695
        %v1392 = vpow.pop %v1391
        %v1393 = vmul.f32 %v1378, 1.442695
        %v1394 = vpow.pop %v1393
        %v1395 = vsel %vm286, %v1380, 0.0
        %1396 = vadd.xlane.f32.xlu0 %v1395
        %v1397 = vpop.xlane.xlu0 %1396
        %v1398 = vsel %vm286, %v1382, 0.0
        %1399 = vadd.xlane.f32.xlu0 %v1398
        %v1400 = vpop.xlane.xlu0 %1399
        %v1401 = vsel %vm286, %v1384, 0.0
        %1402 = vadd.xlane.f32.xlu0 %v1401
        %v1403 = vpop.xlane.xlu0 %1402
        %v1404 = vsel %vm286, %v1386, 0.0
        %1405 = vadd.xlane.f32.xlu0 %v1404
        %v1406 = vpop.xlane.xlu0 %1405
        %v1407 = vsel %vm286, %v1388, 0.0
        %1408 = vadd.xlane.f32.xlu0 %v1407
        %v1409 = vpop.xlane.xlu0 %1408
        %v1410 = vsel %vm286, %v1390, 0.0
        %1411 = vadd.xlane.f32.xlu0 %v1410
        %v1412 = vpop.xlane.xlu0 %1411
        %v1413 = vsel %vm286, %v1392, 0.0
        %1414 = vadd.xlane.f32.xlu0 %v1413
        %v1415 = vpop.xlane.xlu0 %1414
        %v1416 = vsel %vm286, %v1394, 0.0
        %1417 = vadd.xlane.f32.xlu0 %v1416
        %v1418 = vpop.xlane.xlu0 %1417
        %v1419 = vrcp.pop %v1397
        %v1420 = vrcp.pop %v1400
        %v1421 = vrcp.pop %v1403
        %v1422 = vrcp.pop %v1406
        %v1423 = vrcp.pop %v1409
        %v1424 = vrcp.pop %v1412
        %v1425 = vrcp.pop %v1415
        %v1426 = vrcp.pop %v1418
        %v1427 = vmul.f32 %v1380, %v1419
        %v1428 = vmul.f32 %v1382, %v1420
        %v1429 = vmul.f32 %v1384, %v1421
        %v1430 = vmul.f32 %v1386, %v1422
        %v1431 = vmul.f32 %v1388, %v1423
        %v1432 = vmul.f32 %v1390, %v1424
        %v1433 = vmul.f32 %v1392, %v1425
        %v1434 = vmul.f32 %v1394, %v1426
        %1436 = vset.pattern.permute.xlu0 0
        %1437 = vperm.xlu0 %1436, %v1427
        %v1438 = vpop.permute.xlu0 %1437
        %1441 = vset.pattern.permute.xlu0 0
        %1442 = vperm.xlu0 %1441, %v1428
        %v1443 = vpop.permute.xlu0 %1442
        %1446 = vset.pattern.permute.xlu0 0
        %1447 = vperm.xlu0 %1446, %v1429
        %v1448 = vpop.permute.xlu0 %1447
        %1451 = vset.pattern.permute.xlu0 0
        %1452 = vperm.xlu0 %1451, %v1430
        %v1453 = vpop.permute.xlu0 %1452
        %1456 = vset.pattern.permute.xlu0 0
        %1457 = vperm.xlu0 %1456, %v1431
        %v1458 = vpop.permute.xlu0 %1457
        %1461 = vset.pattern.permute.xlu0 0
        %1462 = vperm.xlu0 %1461, %v1432
        %v1463 = vpop.permute.xlu0 %1462
        %1466 = vset.pattern.permute.xlu0 0
        %1467 = vperm.xlu0 %1466, %v1433
        %v1468 = vpop.permute.xlu0 %1467
        %1471 = vset.pattern.permute.xlu0 0
        %1472 = vperm.xlu0 %1471, %v1434
        %v1473 = vpop.permute.xlu0 %1472
        %v1475 = vmul.f32 %v1438, %v248
        %v1476 = vmul.f32 %v1443, %v253
        %v1477 = vmul.f32 %v1448, %v258
        %v1478 = vmul.f32 %v1453, %v263
        %v1479 = vmul.f32 %v1458, %v268
        %v1480 = vmul.f32 %v1463, %v273
        %v1481 = vmul.f32 %v1468, %v278
        %v1482 = vmul.f32 %v1473, %v283
        %v1483 = vsel %vm286, %v1475, 0.0
        %v1484 = vrot.slane %v1483, 4
        %v1485 = vadd.f32 %v1483, %v1484
        %v1486 = vrot.slane %v1485, 2
        %v1487 = vadd.f32 %v1485, %v1486
        %v1488 = vrot.slane %v1487, 1
        %v1489 = vadd.f32 %v1487, %v1488
        %v1490 = vsel %vm286, %v1476, 0.0
        %v1491 = vrot.slane %v1490, 4
        %v1492 = vadd.f32 %v1490, %v1491
        %v1493 = vrot.slane %v1492, 2
        %v1494 = vadd.f32 %v1492, %v1493
        %v1495 = vrot.slane %v1494, 1
        %v1496 = vadd.f32 %v1494, %v1495
        %v1497 = vsel %vm286, %v1477, 0.0
        %v1498 = vrot.slane %v1497, 4
        %v1499 = vadd.f32 %v1497, %v1498
        %v1500 = vrot.slane %v1499, 2
        %v1501 = vadd.f32 %v1499, %v1500
        %v1502 = vrot.slane %v1501, 1
        %v1503 = vadd.f32 %v1501, %v1502
        %v1504 = vsel %vm286, %v1478, 0.0
        %v1505 = vrot.slane %v1504, 4
        %v1506 = vadd.f32 %v1504, %v1505
        %v1507 = vrot.slane %v1506, 2
        %v1508 = vadd.f32 %v1506, %v1507
        %v1509 = vrot.slane %v1508, 1
        %v1510 = vadd.f32 %v1508, %v1509
        %v1511 = vsel %vm286, %v1479, 0.0
        %v1512 = vrot.slane %v1511, 4
        %v1513 = vadd.f32 %v1511, %v1512
        %v1514 = vrot.slane %v1513, 2
        %v1515 = vadd.f32 %v1513, %v1514
        %v1516 = vrot.slane %v1515, 1
        %v1517 = vadd.f32 %v1515, %v1516
        %v1518 = vsel %vm286, %v1480, 0.0
        %v1519 = vrot.slane %v1518, 4
        %v1520 = vadd.f32 %v1518, %v1519
        %v1521 = vrot.slane %v1520, 2
        %v1522 = vadd.f32 %v1520, %v1521
        %v1523 = vrot.slane %v1522, 1
        %v1524 = vadd.f32 %v1522, %v1523
        %v1525 = vsel %vm286, %v1481, 0.0
        %v1526 = vrot.slane %v1525, 4
        %v1527 = vadd.f32 %v1525, %v1526
        %v1528 = vrot.slane %v1527, 2
        %v1529 = vadd.f32 %v1527, %v1528
        %v1530 = vrot.slane %v1529, 1
        %v1531 = vadd.f32 %v1529, %v1530
        %v1532 = vsel %vm286, %v1482, 0.0
        %v1533 = vrot.slane %v1532, 4
        %v1534 = vadd.f32 %v1532, %v1533
        %v1535 = vrot.slane %v1534, 2
        %v1536 = vadd.f32 %v1534, %v1535
        %v1537 = vrot.slane %v1536, 1
        %v1538 = vadd.f32 %v1536, %v1537
        %v1539 = vmul.f32 %v1489, %v1489
        %v1540 = vmul.f32 %v1496, %v1496
        %v1541 = vmul.f32 %v1503, %v1503
        %v1542 = vmul.f32 %v1510, %v1510
        %v1543 = vmul.f32 %v1517, %v1517
        %v1544 = vmul.f32 %v1524, %v1524
        %v1545 = vmul.f32 %v1531, %v1531
        %v1546 = vmul.f32 %v1538, %v1538
        %v1555 = vsel %vm371, %v1540, %v1539
        %v1556 = vsel %vm373, %v1541, %v1555
        %v1557 = vsel %vm375, %v1542, %v1556
        %v1558 = vsel %vm377, %v1543, %v1557
        %v1559 = vsel %vm379, %v1544, %v1558
        %v1560 = vsel %vm381, %v1545, %v1559
        %v1561 = vsel %vm383, %v1546, %v1560
        %v1563 = vsel %vm286, %v1561, 0.0
        %1564 = vadd.xlane.f32.xlu0 %v1563
        %v1565 = vpop.xlane.xlu0 %1564
        %v1566 = vadd.f32 %v1565, 1e-07
        %v1567 = vrsqrt.pop %v1566
        %v1569 = vrot.slane %v1567, 1
        %v1570 = vrot.slane %v1567, 2
        %v1571 = vrot.slane %v1567, 3
        %v1572 = vrot.slane %v1567, 4
        %v1573 = vrot.slane %v1567, 5
        %v1574 = vrot.slane %v1567, 6
        %v1575 = vrot.slane %v1567, 7
        %v1584 = vmul.f32 %v1489, %v1567
        %v1585 = vmul.f32 %v1496, %v1569
        %v1586 = vmul.f32 %v1503, %v1570
        %v1587 = vmul.f32 %v1510, %v1571
        %v1588 = vmul.f32 %v1517, %v1572
        %v1589 = vmul.f32 %v1524, %v1573
        %v1590 = vmul.f32 %v1531, %v1574
        %v1591 = vmul.f32 %v1538, %v1575
        %v1592 = vlaneseq
        %v1593 = vshrl.u32 %v1592, 7
        %v1594 = vsub.s32 0, %v1593
        %v1595 = vrot.slane %v1584, %v1594
        %v1596 = vlaneseq
        %v1597 = vshrl.u32 %v1596, 7
        %v1598 = vsub.s32 0, %v1597
        %v1599 = vrot.slane %v1585, %v1598
        %v1600 = vlaneseq
        %v1601 = vshrl.u32 %v1600, 7
        %v1602 = vsub.s32 0, %v1601
        %v1603 = vrot.slane %v1586, %v1602
        %v1604 = vlaneseq
        %v1605 = vshrl.u32 %v1604, 7
        %v1606 = vsub.s32 0, %v1605
        %v1607 = vrot.slane %v1587, %v1606
        %v1608 = vlaneseq
        %v1609 = vshrl.u32 %v1608, 7
        %v1610 = vsub.s32 0, %v1609
        %v1611 = vrot.slane %v1588, %v1610
        %v1612 = vlaneseq
        %v1613 = vshrl.u32 %v1612, 7
        %v1614 = vsub.s32 0, %v1613
        %v1615 = vrot.slane %v1589, %v1614
        %v1616 = vlaneseq
        %v1617 = vshrl.u32 %v1616, 7
        %v1618 = vsub.s32 0, %v1617
        %v1619 = vrot.slane %v1590, %v1618
        %v1620 = vlaneseq
        %v1621 = vshrl.u32 %v1620, 7
        %v1622 = vsub.s32 0, %v1621
        %v1623 = vrot.slane %v1591, %v1622
        %v1624 = vmul.f32 %v248, %v1595
        %v1625 = vmul.f32 %v253, %v1599
        %v1626 = vmul.f32 %v258, %v1603
        %v1627 = vmul.f32 %v263, %v1607
        %v1628 = vmul.f32 %v268, %v1611
        %v1629 = vmul.f32 %v273, %v1615
        %v1630 = vmul.f32 %v278, %v1619
        %v1631 = vmul.f32 %v283, %v1623
        %v1632 = vsel %vm286, %v1624, 0.0
        %1633 = vadd.xlane.f32.xlu0 %v1632
        %v1634 = vpop.xlane.xlu0 %1633
        %v1635 = vsel %vm286, %v1625, 0.0
        %1636 = vadd.xlane.f32.xlu0 %v1635
        %v1637 = vpop.xlane.xlu0 %1636
        %v1638 = vsel %vm286, %v1626, 0.0
        %1639 = vadd.xlane.f32.xlu0 %v1638
        %v1640 = vpop.xlane.xlu0 %1639
        %v1641 = vsel %vm286, %v1627, 0.0
        %1642 = vadd.xlane.f32.xlu0 %v1641
        %v1643 = vpop.xlane.xlu0 %1642
        %v1644 = vsel %vm286, %v1628, 0.0
        %1645 = vadd.xlane.f32.xlu0 %v1644
        %v1646 = vpop.xlane.xlu0 %1645
        %v1647 = vsel %vm286, %v1629, 0.0
        %1648 = vadd.xlane.f32.xlu0 %v1647
        %v1649 = vpop.xlane.xlu0 %1648
        %v1650 = vsel %vm286, %v1630, 0.0
        %1651 = vadd.xlane.f32.xlu0 %v1650
        %v1652 = vpop.xlane.xlu0 %1651
        %v1653 = vsel %vm286, %v1631, 0.0
        %1654 = vadd.xlane.f32.xlu0 %v1653
        %v1655 = vpop.xlane.xlu0 %1654
        %1656 = vset.pattern.permute.xlu0 1
        %1657 = vperm.xlu0 %1656, %v1427
        %v1658 = vpop.permute.xlu0 %1657
        %1660 = vset.pattern.permute.xlu0 1
        %1661 = vperm.xlu0 %1660, %v1428
        %v1662 = vpop.permute.xlu0 %1661
        %1664 = vset.pattern.permute.xlu0 1
        %1665 = vperm.xlu0 %1664, %v1429
        %v1666 = vpop.permute.xlu0 %1665
        %1668 = vset.pattern.permute.xlu0 1
        %1669 = vperm.xlu0 %1668, %v1430
        %v1670 = vpop.permute.xlu0 %1669
        %1672 = vset.pattern.permute.xlu0 1
        %1673 = vperm.xlu0 %1672, %v1431
        %v1674 = vpop.permute.xlu0 %1673
        %1676 = vset.pattern.permute.xlu0 1
        %1677 = vperm.xlu0 %1676, %v1432
        %v1678 = vpop.permute.xlu0 %1677
        %1680 = vset.pattern.permute.xlu0 1
        %1681 = vperm.xlu0 %1680, %v1433
        %v1682 = vpop.permute.xlu0 %1681
        %1684 = vset.pattern.permute.xlu0 1
        %1685 = vperm.xlu0 %1684, %v1434
        %v1686 = vpop.permute.xlu0 %1685
        %v1688 = vmul.f32 %v1658, %v248
        %v1689 = vmul.f32 %v1662, %v253
        %v1690 = vmul.f32 %v1666, %v258
        %v1691 = vmul.f32 %v1670, %v263
        %v1692 = vmul.f32 %v1674, %v268
        %v1693 = vmul.f32 %v1678, %v273
        %v1694 = vmul.f32 %v1682, %v278
        %v1695 = vmul.f32 %v1686, %v283
        %v1696 = vsel %vm479, %v1688, 0.0
        %v1697 = vrot.slane %v1696, 4
        %v1698 = vadd.f32 %v1696, %v1697
        %v1699 = vrot.slane %v1698, 2
        %v1700 = vadd.f32 %v1698, %v1699
        %v1701 = vrot.slane %v1700, 1
        %v1702 = vadd.f32 %v1700, %v1701
        %v1703 = vsel %vm479, %v1689, 0.0
        %v1704 = vrot.slane %v1703, 4
        %v1705 = vadd.f32 %v1703, %v1704
        %v1706 = vrot.slane %v1705, 2
        %v1707 = vadd.f32 %v1705, %v1706
        %v1708 = vrot.slane %v1707, 1
        %v1709 = vadd.f32 %v1707, %v1708
        %v1710 = vsel %vm479, %v1690, 0.0
        %v1711 = vrot.slane %v1710, 4
        %v1712 = vadd.f32 %v1710, %v1711
        %v1713 = vrot.slane %v1712, 2
        %v1714 = vadd.f32 %v1712, %v1713
        %v1715 = vrot.slane %v1714, 1
        %v1716 = vadd.f32 %v1714, %v1715
        %v1717 = vsel %vm479, %v1691, 0.0
        %v1718 = vrot.slane %v1717, 4
        %v1719 = vadd.f32 %v1717, %v1718
        %v1720 = vrot.slane %v1719, 2
        %v1721 = vadd.f32 %v1719, %v1720
        %v1722 = vrot.slane %v1721, 1
        %v1723 = vadd.f32 %v1721, %v1722
        %v1724 = vsel %vm479, %v1692, 0.0
        %v1725 = vrot.slane %v1724, 4
        %v1726 = vadd.f32 %v1724, %v1725
        %v1727 = vrot.slane %v1726, 2
        %v1728 = vadd.f32 %v1726, %v1727
        %v1729 = vrot.slane %v1728, 1
        %v1730 = vadd.f32 %v1728, %v1729
        %v1731 = vsel %vm479, %v1693, 0.0
        %v1732 = vrot.slane %v1731, 4
        %v1733 = vadd.f32 %v1731, %v1732
        %v1734 = vrot.slane %v1733, 2
        %v1735 = vadd.f32 %v1733, %v1734
        %v1736 = vrot.slane %v1735, 1
        %v1737 = vadd.f32 %v1735, %v1736
        %v1738 = vsel %vm479, %v1694, 0.0
        %v1739 = vrot.slane %v1738, 4
        %v1740 = vadd.f32 %v1738, %v1739
        %v1741 = vrot.slane %v1740, 2
        %v1742 = vadd.f32 %v1740, %v1741
        %v1743 = vrot.slane %v1742, 1
        %v1744 = vadd.f32 %v1742, %v1743
        %v1745 = vsel %vm479, %v1695, 0.0
        %v1746 = vrot.slane %v1745, 4
        %v1747 = vadd.f32 %v1745, %v1746
        %v1748 = vrot.slane %v1747, 2
        %v1749 = vadd.f32 %v1747, %v1748
        %v1750 = vrot.slane %v1749, 1
        %v1751 = vadd.f32 %v1749, %v1750
        %v1752 = vmul.f32 %v1702, %v1702
        %v1753 = vmul.f32 %v1709, %v1709
        %v1754 = vmul.f32 %v1716, %v1716
        %v1755 = vmul.f32 %v1723, %v1723
        %v1756 = vmul.f32 %v1730, %v1730
        %v1757 = vmul.f32 %v1737, %v1737
        %v1758 = vmul.f32 %v1744, %v1744
        %v1759 = vmul.f32 %v1751, %v1751
        %v1768 = vsel %vm371, %v1753, %v1752
        %v1769 = vsel %vm373, %v1754, %v1768
        %v1770 = vsel %vm375, %v1755, %v1769
        %v1771 = vsel %vm377, %v1756, %v1770
        %v1772 = vsel %vm379, %v1757, %v1771
        %v1773 = vsel %vm381, %v1758, %v1772
        %v1774 = vsel %vm383, %v1759, %v1773
        %1775 = vrot.lane.b32.xlu0 %v1774, 123
        %v1776 = vpop.permute.xlu0 %1775
        %v1778 = vsel %vm286, %v1776, 0.0
        %1779 = vadd.xlane.f32.xlu0 %v1778
        %v1780 = vpop.xlane.xlu0 %1779
        %v1781 = vadd.f32 %v1780, 1e-07
        %v1782 = vrsqrt.pop %v1781
        %v1784 = vrot.slane %v1782, 1
        %v1785 = vrot.slane %v1782, 2
        %v1786 = vrot.slane %v1782, 3
        %v1787 = vrot.slane %v1782, 4
        %v1788 = vrot.slane %v1782, 5
        %v1789 = vrot.slane %v1782, 6
        %v1790 = vrot.slane %v1782, 7
        %v1799 = vmul.f32 %v1702, %v1782
        %v1800 = vmul.f32 %v1709, %v1784
        %v1801 = vmul.f32 %v1716, %v1785
        %v1802 = vmul.f32 %v1723, %v1786
        %v1803 = vmul.f32 %v1730, %v1787
        %v1804 = vmul.f32 %v1737, %v1788
        %v1805 = vmul.f32 %v1744, %v1789
        %v1806 = vmul.f32 %v1751, %v1790
        %v1807 = vlaneseq
        %v1808 = vshrl.u32 %v1807, 7
        %v1809 = vsub.s32 0, %v1808
        %v1810 = vrot.slane %v1799, %v1809
        %v1811 = vlaneseq
        %v1812 = vshrl.u32 %v1811, 7
        %v1813 = vsub.s32 0, %v1812
        %v1814 = vrot.slane %v1800, %v1813
        %v1815 = vlaneseq
        %v1816 = vshrl.u32 %v1815, 7
        %v1817 = vsub.s32 0, %v1816
        %v1818 = vrot.slane %v1801, %v1817
        %v1819 = vlaneseq
        %v1820 = vshrl.u32 %v1819, 7
        %v1821 = vsub.s32 0, %v1820
        %v1822 = vrot.slane %v1802, %v1821
        %v1823 = vlaneseq
        %v1824 = vshrl.u32 %v1823, 7
        %v1825 = vsub.s32 0, %v1824
        %v1826 = vrot.slane %v1803, %v1825
        %v1827 = vlaneseq
        %v1828 = vshrl.u32 %v1827, 7
        %v1829 = vsub.s32 0, %v1828
        %v1830 = vrot.slane %v1804, %v1829
        %v1831 = vlaneseq
        %v1832 = vshrl.u32 %v1831, 7
        %v1833 = vsub.s32 0, %v1832
        %v1834 = vrot.slane %v1805, %v1833
        %v1835 = vlaneseq
        %v1836 = vshrl.u32 %v1835, 7
        %v1837 = vsub.s32 0, %v1836
        %v1838 = vrot.slane %v1806, %v1837
        %v1839 = vmul.f32 %v248, %v1810
        %v1840 = vmul.f32 %v253, %v1814
        %v1841 = vmul.f32 %v258, %v1818
        %v1842 = vmul.f32 %v263, %v1822
        %v1843 = vmul.f32 %v268, %v1826
        %v1844 = vmul.f32 %v273, %v1830
        %v1845 = vmul.f32 %v278, %v1834
        %v1846 = vmul.f32 %v283, %v1838
        %1855 = vrot.lane.b32.xlu0 %v1839, 123
        %v1856 = vpop.permute.xlu0 %1855
        %1857 = vrot.lane.b32.xlu0 %v1840, 123
        %v1858 = vpop.permute.xlu0 %1857
        %1859 = vrot.lane.b32.xlu0 %v1841, 123
        %v1860 = vpop.permute.xlu0 %1859
        %1861 = vrot.lane.b32.xlu0 %v1842, 123
        %v1862 = vpop.permute.xlu0 %1861
        %1863 = vrot.lane.b32.xlu0 %v1843, 123
        %v1864 = vpop.permute.xlu0 %1863
        %1865 = vrot.lane.b32.xlu0 %v1844, 123
        %v1866 = vpop.permute.xlu0 %1865
        %1867 = vrot.lane.b32.xlu0 %v1845, 123
        %v1868 = vpop.permute.xlu0 %1867
        %1869 = vrot.lane.b32.xlu0 %v1846, 123
        %v1870 = vpop.permute.xlu0 %1869
        %v1879 = vsel %vm286, %v1856, 0.0
        %1880 = vadd.xlane.f32.xlu0 %v1879
        %v1881 = vpop.xlane.xlu0 %1880
        %v1882 = vsel %vm286, %v1858, 0.0
        %1883 = vadd.xlane.f32.xlu0 %v1882
        %v1884 = vpop.xlane.xlu0 %1883
        %v1885 = vsel %vm286, %v1860, 0.0
        %1886 = vadd.xlane.f32.xlu0 %v1885
        %v1887 = vpop.xlane.xlu0 %1886
        %v1888 = vsel %vm286, %v1862, 0.0
        %1889 = vadd.xlane.f32.xlu0 %v1888
        %v1890 = vpop.xlane.xlu0 %1889
        %v1891 = vsel %vm286, %v1864, 0.0
        %1892 = vadd.xlane.f32.xlu0 %v1891
        %v1893 = vpop.xlane.xlu0 %1892
        %v1894 = vsel %vm286, %v1866, 0.0
        %1895 = vadd.xlane.f32.xlu0 %v1894
        %v1896 = vpop.xlane.xlu0 %1895
        %v1897 = vsel %vm286, %v1868, 0.0
        %1898 = vadd.xlane.f32.xlu0 %v1897
        %v1899 = vpop.xlane.xlu0 %1898
        %v1900 = vsel %vm286, %v1870, 0.0
        %1901 = vadd.xlane.f32.xlu0 %v1900
        %v1902 = vpop.xlane.xlu0 %1901
        %1903 = vset.pattern.permute.xlu0 2
        %1904 = vperm.xlu0 %1903, %v1427
        %v1905 = vpop.permute.xlu0 %1904
        %1907 = vset.pattern.permute.xlu0 2
        %1908 = vperm.xlu0 %1907, %v1428
        %v1909 = vpop.permute.xlu0 %1908
        %1911 = vset.pattern.permute.xlu0 2
        %1912 = vperm.xlu0 %1911, %v1429
        %v1913 = vpop.permute.xlu0 %1912
        %1915 = vset.pattern.permute.xlu0 2
        %1916 = vperm.xlu0 %1915, %v1430
        %v1917 = vpop.permute.xlu0 %1916
        %1919 = vset.pattern.permute.xlu0 2
        %1920 = vperm.xlu0 %1919, %v1431
        %v1921 = vpop.permute.xlu0 %1920
        %1923 = vset.pattern.permute.xlu0 2
        %1924 = vperm.xlu0 %1923, %v1432
        %v1925 = vpop.permute.xlu0 %1924
        %1927 = vset.pattern.permute.xlu0 2
        %1928 = vperm.xlu0 %1927, %v1433
        %v1929 = vpop.permute.xlu0 %1928
        %1931 = vset.pattern.permute.xlu0 2
        %1932 = vperm.xlu0 %1931, %v1434
        %v1933 = vpop.permute.xlu0 %1932
        %v1935 = vmul.f32 %v1905, %v248
        %v1936 = vmul.f32 %v1909, %v253
        %v1937 = vmul.f32 %v1913, %v258
        %v1938 = vmul.f32 %v1917, %v263
        %v1939 = vmul.f32 %v1921, %v268
        %v1940 = vmul.f32 %v1925, %v273
        %v1941 = vmul.f32 %v1929, %v278
        %v1942 = vmul.f32 %v1933, %v283
        %v1943 = vsel %vm687, %v1935, 0.0
        %v1944 = vrot.slane %v1943, 4
        %v1945 = vadd.f32 %v1943, %v1944
        %v1946 = vrot.slane %v1945, 2
        %v1947 = vadd.f32 %v1945, %v1946
        %v1948 = vrot.slane %v1947, 1
        %v1949 = vadd.f32 %v1947, %v1948
        %v1950 = vsel %vm687, %v1936, 0.0
        %v1951 = vrot.slane %v1950, 4
        %v1952 = vadd.f32 %v1950, %v1951
        %v1953 = vrot.slane %v1952, 2
        %v1954 = vadd.f32 %v1952, %v1953
        %v1955 = vrot.slane %v1954, 1
        %v1956 = vadd.f32 %v1954, %v1955
        %v1957 = vsel %vm687, %v1937, 0.0
        %v1958 = vrot.slane %v1957, 4
        %v1959 = vadd.f32 %v1957, %v1958
        %v1960 = vrot.slane %v1959, 2
        %v1961 = vadd.f32 %v1959, %v1960
        %v1962 = vrot.slane %v1961, 1
        %v1963 = vadd.f32 %v1961, %v1962
        %v1964 = vsel %vm687, %v1938, 0.0
        %v1965 = vrot.slane %v1964, 4
        %v1966 = vadd.f32 %v1964, %v1965
        %v1967 = vrot.slane %v1966, 2
        %v1968 = vadd.f32 %v1966, %v1967
        %v1969 = vrot.slane %v1968, 1
        %v1970 = vadd.f32 %v1968, %v1969
        %v1971 = vsel %vm687, %v1939, 0.0
        %v1972 = vrot.slane %v1971, 4
        %v1973 = vadd.f32 %v1971, %v1972
        %v1974 = vrot.slane %v1973, 2
        %v1975 = vadd.f32 %v1973, %v1974
        %v1976 = vrot.slane %v1975, 1
        %v1977 = vadd.f32 %v1975, %v1976
        %v1978 = vsel %vm687, %v1940, 0.0
        %v1979 = vrot.slane %v1978, 4
        %v1980 = vadd.f32 %v1978, %v1979
        %v1981 = vrot.slane %v1980, 2
        %v1982 = vadd.f32 %v1980, %v1981
        %v1983 = vrot.slane %v1982, 1
        %v1984 = vadd.f32 %v1982, %v1983
        %v1985 = vsel %vm687, %v1941, 0.0
        %v1986 = vrot.slane %v1985, 4
        %v1987 = vadd.f32 %v1985, %v1986
        %v1988 = vrot.slane %v1987, 2
        %v1989 = vadd.f32 %v1987, %v1988
        %v1990 = vrot.slane %v1989, 1
        %v1991 = vadd.f32 %v1989, %v1990
        %v1992 = vsel %vm687, %v1942, 0.0
        %v1993 = vrot.slane %v1992, 4
        %v1994 = vadd.f32 %v1992, %v1993
        %v1995 = vrot.slane %v1994, 2
        %v1996 = vadd.f32 %v1994, %v1995
        %v1997 = vrot.slane %v1996, 1
        %v1998 = vadd.f32 %v1996, %v1997
        %v1999 = vmul.f32 %v1949, %v1949
        %v2000 = vmul.f32 %v1956, %v1956
        %v2001 = vmul.f32 %v1963, %v1963
        %v2002 = vmul.f32 %v1970, %v1970
        %v2003 = vmul.f32 %v1977, %v1977
        %v2004 = vmul.f32 %v1984, %v1984
        %v2005 = vmul.f32 %v1991, %v1991
        %v2006 = vmul.f32 %v1998, %v1998
        %v2015 = vsel %vm371, %v2000, %v1999
        %v2016 = vsel %vm373, %v2001, %v2015
        %v2017 = vsel %vm375, %v2002, %v2016
        %v2018 = vsel %vm377, %v2003, %v2017
        %v2019 = vsel %vm379, %v2004, %v2018
        %v2020 = vsel %vm381, %v2005, %v2019
        %v2021 = vsel %vm383, %v2006, %v2020
        %2022 = vrot.lane.b32.xlu0 %v2021, 118
        %v2023 = vpop.permute.xlu0 %2022
        %v2025 = vsel %vm286, %v2023, 0.0
        %2026 = vadd.xlane.f32.xlu0 %v2025
        %v2027 = vpop.xlane.xlu0 %2026
        %v2028 = vadd.f32 %v2027, 1e-07
        %v2029 = vrsqrt.pop %v2028
        %v2031 = vrot.slane %v2029, 1
        %v2032 = vrot.slane %v2029, 2
        %v2033 = vrot.slane %v2029, 3
        %v2034 = vrot.slane %v2029, 4
        %v2035 = vrot.slane %v2029, 5
        %v2036 = vrot.slane %v2029, 6
        %v2037 = vrot.slane %v2029, 7
        %v2046 = vmul.f32 %v1949, %v2029
        %v2047 = vmul.f32 %v1956, %v2031
        %v2048 = vmul.f32 %v1963, %v2032
        %v2049 = vmul.f32 %v1970, %v2033
        %v2050 = vmul.f32 %v1977, %v2034
        %v2051 = vmul.f32 %v1984, %v2035
        %v2052 = vmul.f32 %v1991, %v2036
        %v2053 = vmul.f32 %v1998, %v2037
        %v2054 = vlaneseq
        %v2055 = vshrl.u32 %v2054, 7
        %v2056 = vsub.s32 0, %v2055
        %v2057 = vrot.slane %v2046, %v2056
        %v2058 = vlaneseq
        %v2059 = vshrl.u32 %v2058, 7
        %v2060 = vsub.s32 0, %v2059
        %v2061 = vrot.slane %v2047, %v2060
        %v2062 = vlaneseq
        %v2063 = vshrl.u32 %v2062, 7
        %v2064 = vsub.s32 0, %v2063
        %v2065 = vrot.slane %v2048, %v2064
        %v2066 = vlaneseq
        %v2067 = vshrl.u32 %v2066, 7
        %v2068 = vsub.s32 0, %v2067
        %v2069 = vrot.slane %v2049, %v2068
        %v2070 = vlaneseq
        %v2071 = vshrl.u32 %v2070, 7
        %v2072 = vsub.s32 0, %v2071
        %v2073 = vrot.slane %v2050, %v2072
        %v2074 = vlaneseq
        %v2075 = vshrl.u32 %v2074, 7
        %v2076 = vsub.s32 0, %v2075
        %v2077 = vrot.slane %v2051, %v2076
        %v2078 = vlaneseq
        %v2079 = vshrl.u32 %v2078, 7
        %v2080 = vsub.s32 0, %v2079
        %v2081 = vrot.slane %v2052, %v2080
        %v2082 = vlaneseq
        %v2083 = vshrl.u32 %v2082, 7
        %v2084 = vsub.s32 0, %v2083
        %v2085 = vrot.slane %v2053, %v2084
        %v2086 = vmul.f32 %v248, %v2057
        %v2087 = vmul.f32 %v253, %v2061
        %v2088 = vmul.f32 %v258, %v2065
        %v2089 = vmul.f32 %v263, %v2069
        %v2090 = vmul.f32 %v268, %v2073
        %v2091 = vmul.f32 %v273, %v2077
        %v2092 = vmul.f32 %v278, %v2081
        %v2093 = vmul.f32 %v283, %v2085
        %2102 = vrot.lane.b32.xlu0 %v2086, 118
        %v2103 = vpop.permute.xlu0 %2102
        %2104 = vrot.lane.b32.xlu0 %v2087, 118
        %v2105 = vpop.permute.xlu0 %2104
        %2106 = vrot.lane.b32.xlu0 %v2088, 118
        %v2107 = vpop.permute.xlu0 %2106
        %2108 = vrot.lane.b32.xlu0 %v2089, 118
        %v2109 = vpop.permute.xlu0 %2108
        %2110 = vrot.lane.b32.xlu0 %v2090, 118
        %v2111 = vpop.permute.xlu0 %2110
        %2112 = vrot.lane.b32.xlu0 %v2091, 118
        %v2113 = vpop.permute.xlu0 %2112
        %2114 = vrot.lane.b32.xlu0 %v2092, 118
        %v2115 = vpop.permute.xlu0 %2114
        %2116 = vrot.lane.b32.xlu0 %v2093, 118
        %v2117 = vpop.permute.xlu0 %2116
        %v2126 = vsel %vm286, %v2103, 0.0
        %2127 = vadd.xlane.f32.xlu0 %v2126
        %v2128 = vpop.xlane.xlu0 %2127
        %v2129 = vsel %vm286, %v2105, 0.0
        %2130 = vadd.xlane.f32.xlu0 %v2129
        %v2131 = vpop.xlane.xlu0 %2130
        %v2132 = vsel %vm286, %v2107, 0.0
        %2133 = vadd.xlane.f32.xlu0 %v2132
        %v2134 = vpop.xlane.xlu0 %2133
        %v2135 = vsel %vm286, %v2109, 0.0
        %2136 = vadd.xlane.f32.xlu0 %v2135
        %v2137 = vpop.xlane.xlu0 %2136
        %v2138 = vsel %vm286, %v2111, 0.0
        %2139 = vadd.xlane.f32.xlu0 %v2138
        %v2140 = vpop.xlane.xlu0 %2139
        %v2141 = vsel %vm286, %v2113, 0.0
        %2142 = vadd.xlane.f32.xlu0 %v2141
        %v2143 = vpop.xlane.xlu0 %2142
        %v2144 = vsel %vm286, %v2115, 0.0
        %2145 = vadd.xlane.f32.xlu0 %v2144
        %v2146 = vpop.xlane.xlu0 %2145
        %v2147 = vsel %vm286, %v2117, 0.0
        %2148 = vadd.xlane.f32.xlu0 %v2147
        %v2149 = vpop.xlane.xlu0 %2148
        %2150 = vset.pattern.permute.xlu0 3
        %2151 = vperm.xlu0 %2150, %v1427
        %v2152 = vpop.permute.xlu0 %2151
        %2154 = vset.pattern.permute.xlu0 3
        %2155 = vperm.xlu0 %2154, %v1428
        %v2156 = vpop.permute.xlu0 %2155
        %2158 = vset.pattern.permute.xlu0 3
        %2159 = vperm.xlu0 %2158, %v1429
        %v2160 = vpop.permute.xlu0 %2159
        %2162 = vset.pattern.permute.xlu0 3
        %2163 = vperm.xlu0 %2162, %v1430
        %v2164 = vpop.permute.xlu0 %2163
        %2166 = vset.pattern.permute.xlu0 3
        %2167 = vperm.xlu0 %2166, %v1431
        %v2168 = vpop.permute.xlu0 %2167
        %2170 = vset.pattern.permute.xlu0 3
        %2171 = vperm.xlu0 %2170, %v1432
        %v2172 = vpop.permute.xlu0 %2171
        %2174 = vset.pattern.permute.xlu0 3
        %2175 = vperm.xlu0 %2174, %v1433
        %v2176 = vpop.permute.xlu0 %2175
        %2178 = vset.pattern.permute.xlu0 3
        %2179 = vperm.xlu0 %2178, %v1434
        %v2180 = vpop.permute.xlu0 %2179
        %v2182 = vmul.f32 %v2152, %v248
        %v2183 = vmul.f32 %v2156, %v253
        %v2184 = vmul.f32 %v2160, %v258
        %v2185 = vmul.f32 %v2164, %v263
        %v2186 = vmul.f32 %v2168, %v268
        %v2187 = vmul.f32 %v2172, %v273
        %v2188 = vmul.f32 %v2176, %v278
        %v2189 = vmul.f32 %v2180, %v283
        %v2190 = vsel %vm895, %v2182, 0.0
        %v2191 = vrot.slane %v2190, 4
        %v2192 = vadd.f32 %v2190, %v2191
        %v2193 = vrot.slane %v2192, 2
        %v2194 = vadd.f32 %v2192, %v2193
        %v2195 = vrot.slane %v2194, 1
        %v2196 = vadd.f32 %v2194, %v2195
        %v2197 = vsel %vm895, %v2183, 0.0
        %v2198 = vrot.slane %v2197, 4
        %v2199 = vadd.f32 %v2197, %v2198
        %v2200 = vrot.slane %v2199, 2
        %v2201 = vadd.f32 %v2199, %v2200
        %v2202 = vrot.slane %v2201, 1
        %v2203 = vadd.f32 %v2201, %v2202
        %v2204 = vsel %vm895, %v2184, 0.0
        %v2205 = vrot.slane %v2204, 4
        %v2206 = vadd.f32 %v2204, %v2205
        %v2207 = vrot.slane %v2206, 2
        %v2208 = vadd.f32 %v2206, %v2207
        %v2209 = vrot.slane %v2208, 1
        %v2210 = vadd.f32 %v2208, %v2209
        %v2211 = vsel %vm895, %v2185, 0.0
        %v2212 = vrot.slane %v2211, 4
        %v2213 = vadd.f32 %v2211, %v2212
        %v2214 = vrot.slane %v2213, 2
        %v2215 = vadd.f32 %v2213, %v2214
        %v2216 = vrot.slane %v2215, 1
        %v2217 = vadd.f32 %v2215, %v2216
        %v2218 = vsel %vm895, %v2186, 0.0
        %v2219 = vrot.slane %v2218, 4
        %v2220 = vadd.f32 %v2218, %v2219
        %v2221 = vrot.slane %v2220, 2
        %v2222 = vadd.f32 %v2220, %v2221
        %v2223 = vrot.slane %v2222, 1
        %v2224 = vadd.f32 %v2222, %v2223
        %v2225 = vsel %vm895, %v2187, 0.0
        %v2226 = vrot.slane %v2225, 4
        %v2227 = vadd.f32 %v2225, %v2226
        %v2228 = vrot.slane %v2227, 2
        %v2229 = vadd.f32 %v2227, %v2228
        %v2230 = vrot.slane %v2229, 1
        %v2231 = vadd.f32 %v2229, %v2230
        %v2232 = vsel %vm895, %v2188, 0.0
        %v2233 = vrot.slane %v2232, 4
        %v2234 = vadd.f32 %v2232, %v2233
        %v2235 = vrot.slane %v2234, 2
        %v2236 = vadd.f32 %v2234, %v2235
        %v2237 = vrot.slane %v2236, 1
        %v2238 = vadd.f32 %v2236, %v2237
        %v2239 = vsel %vm895, %v2189, 0.0
        %v2240 = vrot.slane %v2239, 4
        %v2241 = vadd.f32 %v2239, %v2240
        %v2242 = vrot.slane %v2241, 2
        %v2243 = vadd.f32 %v2241, %v2242
        %v2244 = vrot.slane %v2243, 1
        %v2245 = vadd.f32 %v2243, %v2244
        %v2246 = vmul.f32 %v2196, %v2196
        %v2247 = vmul.f32 %v2203, %v2203
        %v2248 = vmul.f32 %v2210, %v2210
        %v2249 = vmul.f32 %v2217, %v2217
        %v2250 = vmul.f32 %v2224, %v2224
        %v2251 = vmul.f32 %v2231, %v2231
        %v2252 = vmul.f32 %v2238, %v2238
        %v2253 = vmul.f32 %v2245, %v2245
        %v2262 = vsel %vm371, %v2247, %v2246
        %v2263 = vsel %vm373, %v2248, %v2262
        %v2264 = vsel %vm375, %v2249, %v2263
        %v2265 = vsel %vm377, %v2250, %v2264
        %v2266 = vsel %vm379, %v2251, %v2265
        %v2267 = vsel %vm381, %v2252, %v2266
        %v2268 = vsel %vm383, %v2253, %v2267
        %2269 = vrot.lane.b32.xlu0 %v2268, 113
        %v2270 = vpop.permute.xlu0 %2269
        %v2272 = vsel %vm286, %v2270, 0.0
        %2273 = vadd.xlane.f32.xlu0 %v2272
        %v2274 = vpop.xlane.xlu0 %2273
        %v2275 = vadd.f32 %v2274, 1e-07
        %v2276 = vrsqrt.pop %v2275
        %v2278 = vrot.slane %v2276, 1
        %v2279 = vrot.slane %v2276, 2
        %v2280 = vrot.slane %v2276, 3
        %v2281 = vrot.slane %v2276, 4
        %v2282 = vrot.slane %v2276, 5
        %v2283 = vrot.slane %v2276, 6
        %v2284 = vrot.slane %v2276, 7
        %v2293 = vmul.f32 %v2196, %v2276
        %v2294 = vmul.f32 %v2203, %v2278
        %v2295 = vmul.f32 %v2210, %v2279
        %v2296 = vmul.f32 %v2217, %v2280
        %v2297 = vmul.f32 %v2224, %v2281
        %v2298 = vmul.f32 %v2231, %v2282
        %v2299 = vmul.f32 %v2238, %v2283
        %v2300 = vmul.f32 %v2245, %v2284
        %v2301 = vlaneseq
        %v2302 = vshrl.u32 %v2301, 7
        %v2303 = vsub.s32 0, %v2302
        %v2304 = vrot.slane %v2293, %v2303
        %v2305 = vlaneseq
        %v2306 = vshrl.u32 %v2305, 7
        %v2307 = vsub.s32 0, %v2306
        %v2308 = vrot.slane %v2294, %v2307
        %v2309 = vlaneseq
        %v2310 = vshrl.u32 %v2309, 7
        %v2311 = vsub.s32 0, %v2310
        %v2312 = vrot.slane %v2295, %v2311
        %v2313 = vlaneseq
        %v2314 = vshrl.u32 %v2313, 7
        %v2315 = vsub.s32 0, %v2314
        %v2316 = vrot.slane %v2296, %v2315
        %v2317 = vlaneseq
        %v2318 = vshrl.u32 %v2317, 7
        %v2319 = vsub.s32 0, %v2318
        %v2320 = vrot.slane %v2297, %v2319
        %v2321 = vlaneseq
        %v2322 = vshrl.u32 %v2321, 7
        %v2323 = vsub.s32 0, %v2322
        %v2324 = vrot.slane %v2298, %v2323
        %v2325 = vlaneseq
        %v2326 = vshrl.u32 %v2325, 7
        %v2327 = vsub.s32 0, %v2326
        %v2328 = vrot.slane %v2299, %v2327
        %v2329 = vlaneseq
        %v2330 = vshrl.u32 %v2329, 7
        %v2331 = vsub.s32 0, %v2330
        %v2332 = vrot.slane %v2300, %v2331
        %v2333 = vmul.f32 %v248, %v2304
        %v2334 = vmul.f32 %v253, %v2308
        %v2335 = vmul.f32 %v258, %v2312
        %v2336 = vmul.f32 %v263, %v2316
        %v2337 = vmul.f32 %v268, %v2320
        %v2338 = vmul.f32 %v273, %v2324
        %v2339 = vmul.f32 %v278, %v2328
        %v2340 = vmul.f32 %v283, %v2332
        %2349 = vrot.lane.b32.xlu0 %v2333, 113
        %v2350 = vpop.permute.xlu0 %2349
        %2351 = vrot.lane.b32.xlu0 %v2334, 113
        %v2352 = vpop.permute.xlu0 %2351
        %2353 = vrot.lane.b32.xlu0 %v2335, 113
        %v2354 = vpop.permute.xlu0 %2353
        %2355 = vrot.lane.b32.xlu0 %v2336, 113
        %v2356 = vpop.permute.xlu0 %2355
        %2357 = vrot.lane.b32.xlu0 %v2337, 113
        %v2358 = vpop.permute.xlu0 %2357
        %2359 = vrot.lane.b32.xlu0 %v2338, 113
        %v2360 = vpop.permute.xlu0 %2359
        %2361 = vrot.lane.b32.xlu0 %v2339, 113
        %v2362 = vpop.permute.xlu0 %2361
        %2363 = vrot.lane.b32.xlu0 %v2340, 113
        %v2364 = vpop.permute.xlu0 %2363
        %v2373 = vsel %vm286, %v2350, 0.0
        %2374 = vadd.xlane.f32.xlu0 %v2373
        %v2375 = vpop.xlane.xlu0 %2374
        %v2376 = vsel %vm286, %v2352, 0.0
        %2377 = vadd.xlane.f32.xlu0 %v2376
        %v2378 = vpop.xlane.xlu0 %2377
        %v2379 = vsel %vm286, %v2354, 0.0
        %2380 = vadd.xlane.f32.xlu0 %v2379
        %v2381 = vpop.xlane.xlu0 %2380
        %v2382 = vsel %vm286, %v2356, 0.0
        %2383 = vadd.xlane.f32.xlu0 %v2382
        %v2384 = vpop.xlane.xlu0 %2383
        %v2385 = vsel %vm286, %v2358, 0.0
        %2386 = vadd.xlane.f32.xlu0 %v2385
        %v2387 = vpop.xlane.xlu0 %2386
        %v2388 = vsel %vm286, %v2360, 0.0
        %2389 = vadd.xlane.f32.xlu0 %v2388
        %v2390 = vpop.xlane.xlu0 %2389
        %v2391 = vsel %vm286, %v2362, 0.0
        %2392 = vadd.xlane.f32.xlu0 %v2391
        %v2393 = vpop.xlane.xlu0 %2392
        %v2394 = vsel %vm286, %v2364, 0.0
        %2395 = vadd.xlane.f32.xlu0 %v2394
        %v2396 = vpop.xlane.xlu0 %2395
        %2397 = vset.pattern.permute.xlu0 4
        %2398 = vperm.xlu0 %2397, %v1427
        %v2399 = vpop.permute.xlu0 %2398
        %2401 = vset.pattern.permute.xlu0 4
        %2402 = vperm.xlu0 %2401, %v1428
        %v2403 = vpop.permute.xlu0 %2402
        %2405 = vset.pattern.permute.xlu0 4
        %2406 = vperm.xlu0 %2405, %v1429
        %v2407 = vpop.permute.xlu0 %2406
        %2409 = vset.pattern.permute.xlu0 4
        %2410 = vperm.xlu0 %2409, %v1430
        %v2411 = vpop.permute.xlu0 %2410
        %2413 = vset.pattern.permute.xlu0 4
        %2414 = vperm.xlu0 %2413, %v1431
        %v2415 = vpop.permute.xlu0 %2414
        %2417 = vset.pattern.permute.xlu0 4
        %2418 = vperm.xlu0 %2417, %v1432
        %v2419 = vpop.permute.xlu0 %2418
        %2421 = vset.pattern.permute.xlu0 4
        %2422 = vperm.xlu0 %2421, %v1433
        %v2423 = vpop.permute.xlu0 %2422
        %2425 = vset.pattern.permute.xlu0 4
        %2426 = vperm.xlu0 %2425, %v1434
        %v2427 = vpop.permute.xlu0 %2426
        %v2429 = vmul.f32 %v2399, %v248
        %v2430 = vmul.f32 %v2403, %v253
        %v2431 = vmul.f32 %v2407, %v258
        %v2432 = vmul.f32 %v2411, %v263
        %v2433 = vmul.f32 %v2415, %v268
        %v2434 = vmul.f32 %v2419, %v273
        %v2435 = vmul.f32 %v2423, %v278
        %v2436 = vmul.f32 %v2427, %v283
        %v2437 = vsel %vm1103, %v2429, 0.0
        %v2438 = vrot.slane %v2437, 4
        %v2439 = vadd.f32 %v2437, %v2438
        %v2440 = vrot.slane %v2439, 2
        %v2441 = vadd.f32 %v2439, %v2440
        %v2442 = vrot.slane %v2441, 1
        %v2443 = vadd.f32 %v2441, %v2442
        %v2444 = vsel %vm1103, %v2430, 0.0
        %v2445 = vrot.slane %v2444, 4
        %v2446 = vadd.f32 %v2444, %v2445
        %v2447 = vrot.slane %v2446, 2
        %v2448 = vadd.f32 %v2446, %v2447
        %v2449 = vrot.slane %v2448, 1
        %v2450 = vadd.f32 %v2448, %v2449
        %v2451 = vsel %vm1103, %v2431, 0.0
        %v2452 = vrot.slane %v2451, 4
        %v2453 = vadd.f32 %v2451, %v2452
        %v2454 = vrot.slane %v2453, 2
        %v2455 = vadd.f32 %v2453, %v2454
        %v2456 = vrot.slane %v2455, 1
        %v2457 = vadd.f32 %v2455, %v2456
        %v2458 = vsel %vm1103, %v2432, 0.0
        %v2459 = vrot.slane %v2458, 4
        %v2460 = vadd.f32 %v2458, %v2459
        %v2461 = vrot.slane %v2460, 2
        %v2462 = vadd.f32 %v2460, %v2461
        %v2463 = vrot.slane %v2462, 1
        %v2464 = vadd.f32 %v2462, %v2463
        %v2465 = vsel %vm1103, %v2433, 0.0
        %v2466 = vrot.slane %v2465, 4
        %v2467 = vadd.f32 %v2465, %v2466
        %v2468 = vrot.slane %v2467, 2
        %v2469 = vadd.f32 %v2467, %v2468
        %v2470 = vrot.slane %v2469, 1
        %v2471 = vadd.f32 %v2469, %v2470
        %v2472 = vsel %vm1103, %v2434, 0.0
        %v2473 = vrot.slane %v2472, 4
        %v2474 = vadd.f32 %v2472, %v2473
        %v2475 = vrot.slane %v2474, 2
        %v2476 = vadd.f32 %v2474, %v2475
        %v2477 = vrot.slane %v2476, 1
        %v2478 = vadd.f32 %v2476, %v2477
        %v2479 = vsel %vm1103, %v2435, 0.0
        %v2480 = vrot.slane %v2479, 4
        %v2481 = vadd.f32 %v2479, %v2480
        %v2482 = vrot.slane %v2481, 2
        %v2483 = vadd.f32 %v2481, %v2482
        %v2484 = vrot.slane %v2483, 1
        %v2485 = vadd.f32 %v2483, %v2484
        %v2486 = vsel %vm1103, %v2436, 0.0
        %v2487 = vrot.slane %v2486, 4
        %v2488 = vadd.f32 %v2486, %v2487
        %v2489 = vrot.slane %v2488, 2
        %v2490 = vadd.f32 %v2488, %v2489
        %v2491 = vrot.slane %v2490, 1
        %v2492 = vadd.f32 %v2490, %v2491
        %v2493 = vmul.f32 %v2443, %v2443
        %v2494 = vmul.f32 %v2450, %v2450
        %v2495 = vmul.f32 %v2457, %v2457
        %v2496 = vmul.f32 %v2464, %v2464
        %v2497 = vmul.f32 %v2471, %v2471
        %v2498 = vmul.f32 %v2478, %v2478
        %v2499 = vmul.f32 %v2485, %v2485
        %v2500 = vmul.f32 %v2492, %v2492
        %v2509 = vsel %vm371, %v2494, %v2493
        %v2510 = vsel %vm373, %v2495, %v2509
        %v2511 = vsel %vm375, %v2496, %v2510
        %v2512 = vsel %vm377, %v2497, %v2511
        %v2513 = vsel %vm379, %v2498, %v2512
        %v2514 = vsel %vm381, %v2499, %v2513
        %v2515 = vsel %vm383, %v2500, %v2514
        %2516 = vrot.lane.b32.xlu0 %v2515, 108
        %v2517 = vpop.permute.xlu0 %2516
        %v2519 = vsel %vm286, %v2517, 0.0
        %2520 = vadd.xlane.f32.xlu0 %v2519
        %v2521 = vpop.xlane.xlu0 %2520
        %v2522 = vadd.f32 %v2521, 1e-07
        %v2523 = vrsqrt.pop %v2522
        %v2525 = vrot.slane %v2523, 1
        %v2526 = vrot.slane %v2523, 2
        %v2527 = vrot.slane %v2523, 3
        %v2528 = vrot.slane %v2523, 4
        %v2529 = vrot.slane %v2523, 5
        %v2530 = vrot.slane %v2523, 6
        %v2531 = vrot.slane %v2523, 7
        %v2540 = vmul.f32 %v2443, %v2523
        %v2541 = vmul.f32 %v2450, %v2525
        %v2542 = vmul.f32 %v2457, %v2526
        %v2543 = vmul.f32 %v2464, %v2527
        %v2544 = vmul.f32 %v2471, %v2528
        %v2545 = vmul.f32 %v2478, %v2529
        %v2546 = vmul.f32 %v2485, %v2530
        %v2547 = vmul.f32 %v2492, %v2531
        %v2548 = vlaneseq
        %v2549 = vshrl.u32 %v2548, 7
        %v2550 = vsub.s32 0, %v2549
        %v2551 = vrot.slane %v2540, %v2550
        %v2552 = vlaneseq
        %v2553 = vshrl.u32 %v2552, 7
        %v2554 = vsub.s32 0, %v2553
        %v2555 = vrot.slane %v2541, %v2554
        %v2556 = vlaneseq
        %v2557 = vshrl.u32 %v2556, 7
        %v2558 = vsub.s32 0, %v2557
        %v2559 = vrot.slane %v2542, %v2558
        %v2560 = vlaneseq
        %v2561 = vshrl.u32 %v2560, 7
        %v2562 = vsub.s32 0, %v2561
        %v2563 = vrot.slane %v2543, %v2562
        %v2564 = vlaneseq
        %v2565 = vshrl.u32 %v2564, 7
        %v2566 = vsub.s32 0, %v2565
        %v2567 = vrot.slane %v2544, %v2566
        %v2568 = vlaneseq
        %v2569 = vshrl.u32 %v2568, 7
        %v2570 = vsub.s32 0, %v2569
        %v2571 = vrot.slane %v2545, %v2570
        %v2572 = vlaneseq
        %v2573 = vshrl.u32 %v2572, 7
        %v2574 = vsub.s32 0, %v2573
        %v2575 = vrot.slane %v2546, %v2574
        %v2576 = vlaneseq
        %v2577 = vshrl.u32 %v2576, 7
        %v2578 = vsub.s32 0, %v2577
        %v2579 = vrot.slane %v2547, %v2578
        %v2580 = vmul.f32 %v248, %v2551
        %v2581 = vmul.f32 %v253, %v2555
        %v2582 = vmul.f32 %v258, %v2559
        %v2583 = vmul.f32 %v263, %v2563
        %v2584 = vmul.f32 %v268, %v2567
        %v2585 = vmul.f32 %v273, %v2571
        %v2586 = vmul.f32 %v278, %v2575
        %v2587 = vmul.f32 %v283, %v2579
        %2596 = vrot.lane.b32.xlu0 %v2580, 108
        %v2597 = vpop.permute.xlu0 %2596
        %2598 = vrot.lane.b32.xlu0 %v2581, 108
        %v2599 = vpop.permute.xlu0 %2598
        %2600 = vrot.lane.b32.xlu0 %v2582, 108
        %v2601 = vpop.permute.xlu0 %2600
        %2602 = vrot.lane.b32.xlu0 %v2583, 108
        %v2603 = vpop.permute.xlu0 %2602
        %2604 = vrot.lane.b32.xlu0 %v2584, 108
        %v2605 = vpop.permute.xlu0 %2604
        %2606 = vrot.lane.b32.xlu0 %v2585, 108
        %v2607 = vpop.permute.xlu0 %2606
        %2608 = vrot.lane.b32.xlu0 %v2586, 108
        %v2609 = vpop.permute.xlu0 %2608
        %2610 = vrot.lane.b32.xlu0 %v2587, 108
        %v2611 = vpop.permute.xlu0 %2610
        %v2620 = vsel %vm286, %v2597, 0.0
        %2621 = vadd.xlane.f32.xlu0 %v2620
        %v2622 = vpop.xlane.xlu0 %2621
        %v2623 = vsel %vm286, %v2599, 0.0
        %2624 = vadd.xlane.f32.xlu0 %v2623
        %v2625 = vpop.xlane.xlu0 %2624
        %v2626 = vsel %vm286, %v2601, 0.0
        %2627 = vadd.xlane.f32.xlu0 %v2626
        %v2628 = vpop.xlane.xlu0 %2627
        %v2629 = vsel %vm286, %v2603, 0.0
        %2630 = vadd.xlane.f32.xlu0 %v2629
        %v2631 = vpop.xlane.xlu0 %2630
        %v2632 = vsel %vm286, %v2605, 0.0
        %2633 = vadd.xlane.f32.xlu0 %v2632
        %v2634 = vpop.xlane.xlu0 %2633
        %v2635 = vsel %vm286, %v2607, 0.0
        %2636 = vadd.xlane.f32.xlu0 %v2635
        %v2637 = vpop.xlane.xlu0 %2636
        %v2638 = vsel %vm286, %v2609, 0.0
        %2639 = vadd.xlane.f32.xlu0 %v2638
        %v2640 = vpop.xlane.xlu0 %2639
        %v2641 = vsel %vm286, %v2611, 0.0
        %2642 = vadd.xlane.f32.xlu0 %v2641
        %v2643 = vpop.xlane.xlu0 %2642
        %v2644 = vsel %vm1311, %v1634, %v1881
        %v2645 = vsel %vm1311, %v1637, %v1884
        %v2646 = vsel %vm1311, %v1640, %v1887
        %v2647 = vsel %vm1311, %v1643, %v1890
        %v2648 = vsel %vm1311, %v1646, %v1893
        %v2649 = vsel %vm1311, %v1649, %v1896
        %v2650 = vsel %vm1311, %v1652, %v1899
        %v2651 = vsel %vm1311, %v1655, %v1902
        %v2652 = vsel %vm1320, %v2644, %v2128
        %v2653 = vsel %vm1320, %v2645, %v2131
        %v2654 = vsel %vm1320, %v2646, %v2134
        %v2655 = vsel %vm1320, %v2647, %v2137
        %v2656 = vsel %vm1320, %v2648, %v2140
        %v2657 = vsel %vm1320, %v2649, %v2143
        %v2658 = vsel %vm1320, %v2650, %v2146
        %v2659 = vsel %vm1320, %v2651, %v2149
        %v2660 = vsel %vm1329, %v2652, %v2375
        %v2661 = vsel %vm1329, %v2653, %v2378
        %v2662 = vsel %vm1329, %v2654, %v2381
        %v2663 = vsel %vm1329, %v2655, %v2384
        %v2664 = vsel %vm1329, %v2656, %v2387
        %v2665 = vsel %vm1329, %v2657, %v2390
        %v2666 = vsel %vm1329, %v2658, %v2393
        %v2667 = vsel %vm1329, %v2659, %v2396
        %v2668 = vsel %vm1338, %v2660, %v2622
        %v2669 = vsel %vm1338, %v2661, %v2625
        %v2670 = vsel %vm1338, %v2662, %v2628
        %v2671 = vsel %vm1338, %v2663, %v2631
        %v2672 = vsel %vm1338, %v2664, %v2634
        %v2673 = vsel %vm1338, %v2665, %v2637
        %v2674 = vsel %vm1338, %v2666, %v2640
        %v2675 = vsel %vm1338, %v2667, %v2643
        %v2676 = vsel %vm286, %v2668, -inf
        %2677 = vmax.xlane.f32.xlu0 %v2676
        %v2678 = vpop.xlane.xlu0 %2677
        %v2679 = vsel %vm286, %v2669, -inf
        %2680 = vmax.xlane.f32.xlu0 %v2679
        %v2681 = vpop.xlane.xlu0 %2680
        %v2682 = vsel %vm286, %v2670, -inf
        %2683 = vmax.xlane.f32.xlu0 %v2682
        %v2684 = vpop.xlane.xlu0 %2683
        %v2685 = vsel %vm286, %v2671, -inf
        %2686 = vmax.xlane.f32.xlu0 %v2685
        %v2687 = vpop.xlane.xlu0 %2686
        %v2688 = vsel %vm286, %v2672, -inf
        %2689 = vmax.xlane.f32.xlu0 %v2688
        %v2690 = vpop.xlane.xlu0 %2689
        %v2691 = vsel %vm286, %v2673, -inf
        %2692 = vmax.xlane.f32.xlu0 %v2691
        %v2693 = vpop.xlane.xlu0 %2692
        %v2694 = vsel %vm286, %v2674, -inf
        %2695 = vmax.xlane.f32.xlu0 %v2694
        %v2696 = vpop.xlane.xlu0 %2695
        %v2697 = vsel %vm286, %v2675, -inf
        %2698 = vmax.xlane.f32.xlu0 %v2697
        %v2699 = vpop.xlane.xlu0 %2698
        %v2700 = vsub.f32 %v2668, %v2678
        %v2701 = vsub.f32 %v2669, %v2681
        %v2702 = vsub.f32 %v2670, %v2684
        %v2703 = vsub.f32 %v2671, %v2687
        %v2704 = vsub.f32 %v2672, %v2690
        %v2705 = vsub.f32 %v2673, %v2693
        %v2706 = vsub.f32 %v2674, %v2696
        %v2707 = vsub.f32 %v2675, %v2699
        %v2708 = vmul.f32 %v2700, 1.442695
        %v2709 = vpow.pop %v2708
        %v2710 = vmul.f32 %v2701, 1.442695
        %v2711 = vpow.pop %v2710
        %v2712 = vmul.f32 %v2702, 1.442695
        %v2713 = vpow.pop %v2712
        %v2714 = vmul.f32 %v2703, 1.442695
        %v2715 = vpow.pop %v2714
        %v2716 = vmul.f32 %v2704, 1.442695
        %v2717 = vpow.pop %v2716
        %v2718 = vmul.f32 %v2705, 1.442695
        %v2719 = vpow.pop %v2718
        %v2720 = vmul.f32 %v2706, 1.442695
        %v2721 = vpow.pop %v2720
        %v2722 = vmul.f32 %v2707, 1.442695
        %v2723 = vpow.pop %v2722
        %v2724 = vsel %vm286, %v2709, 0.0
        %2725 = vadd.xlane.f32.xlu0 %v2724
        %v2726 = vpop.xlane.xlu0 %2725
        %v2727 = vsel %vm286, %v2711, 0.0
        %2728 = vadd.xlane.f32.xlu0 %v2727
        %v2729 = vpop.xlane.xlu0 %2728
        %v2730 = vsel %vm286, %v2713, 0.0
        %2731 = vadd.xlane.f32.xlu0 %v2730
        %v2732 = vpop.xlane.xlu0 %2731
        %v2733 = vsel %vm286, %v2715, 0.0
        %2734 = vadd.xlane.f32.xlu0 %v2733
        %v2735 = vpop.xlane.xlu0 %2734
        %v2736 = vsel %vm286, %v2717, 0.0
        %2737 = vadd.xlane.f32.xlu0 %v2736
        %v2738 = vpop.xlane.xlu0 %2737
        %v2739 = vsel %vm286, %v2719, 0.0
        %2740 = vadd.xlane.f32.xlu0 %v2739
        %v2741 = vpop.xlane.xlu0 %2740
        %v2742 = vsel %vm286, %v2721, 0.0
        %2743 = vadd.xlane.f32.xlu0 %v2742
        %v2744 = vpop.xlane.xlu0 %2743
        %v2745 = vsel %vm286, %v2723, 0.0
        %2746 = vadd.xlane.f32.xlu0 %v2745
        %v2747 = vpop.xlane.xlu0 %2746
        %v2748 = vrcp.pop %v2726
        %v2749 = vrcp.pop %v2729
        %v2750 = vrcp.pop %v2732
        %v2751 = vrcp.pop %v2735
        %v2752 = vrcp.pop %v2738
        %v2753 = vrcp.pop %v2741
        %v2754 = vrcp.pop %v2744
        %v2755 = vrcp.pop %v2747
        %v2756 = vmul.f32 %v2709, %v2748
        %v2757 = vmul.f32 %v2711, %v2749
        %v2758 = vmul.f32 %v2713, %v2750
        %v2759 = vmul.f32 %v2715, %v2751
        %v2760 = vmul.f32 %v2717, %v2752
        %v2761 = vmul.f32 %v2719, %v2753
        %v2762 = vmul.f32 %v2721, %v2754
        %v2763 = vmul.f32 %v2723, %v2755
        %2765 = vset.pattern.permute.xlu0 0
        %2766 = vperm.xlu0 %2765, %v2756
        %v2767 = vpop.permute.xlu0 %2766
        %2770 = vset.pattern.permute.xlu0 0
        %2771 = vperm.xlu0 %2770, %v2757
        %v2772 = vpop.permute.xlu0 %2771
        %2775 = vset.pattern.permute.xlu0 0
        %2776 = vperm.xlu0 %2775, %v2758
        %v2777 = vpop.permute.xlu0 %2776
        %2780 = vset.pattern.permute.xlu0 0
        %2781 = vperm.xlu0 %2780, %v2759
        %v2782 = vpop.permute.xlu0 %2781
        %2785 = vset.pattern.permute.xlu0 0
        %2786 = vperm.xlu0 %2785, %v2760
        %v2787 = vpop.permute.xlu0 %2786
        %2790 = vset.pattern.permute.xlu0 0
        %2791 = vperm.xlu0 %2790, %v2761
        %v2792 = vpop.permute.xlu0 %2791
        %2795 = vset.pattern.permute.xlu0 0
        %2796 = vperm.xlu0 %2795, %v2762
        %v2797 = vpop.permute.xlu0 %2796
        %2800 = vset.pattern.permute.xlu0 0
        %2801 = vperm.xlu0 %2800, %v2763
        %v2802 = vpop.permute.xlu0 %2801
        %v2804 = vmul.f32 %v2767, %v248
        %v2805 = vmul.f32 %v2772, %v253
        %v2806 = vmul.f32 %v2777, %v258
        %v2807 = vmul.f32 %v2782, %v263
        %v2808 = vmul.f32 %v2787, %v268
        %v2809 = vmul.f32 %v2792, %v273
        %v2810 = vmul.f32 %v2797, %v278
        %v2811 = vmul.f32 %v2802, %v283
        %v2812 = vsel %vm286, %v2804, 0.0
        %v2813 = vrot.slane %v2812, 4
        %v2814 = vadd.f32 %v2812, %v2813
        %v2815 = vrot.slane %v2814, 2
        %v2816 = vadd.f32 %v2814, %v2815
        %v2817 = vrot.slane %v2816, 1
        %v2818 = vadd.f32 %v2816, %v2817
        %v2819 = vsel %vm286, %v2805, 0.0
        %v2820 = vrot.slane %v2819, 4
        %v2821 = vadd.f32 %v2819, %v2820
        %v2822 = vrot.slane %v2821, 2
        %v2823 = vadd.f32 %v2821, %v2822
        %v2824 = vrot.slane %v2823, 1
        %v2825 = vadd.f32 %v2823, %v2824
        %v2826 = vsel %vm286, %v2806, 0.0
        %v2827 = vrot.slane %v2826, 4
        %v2828 = vadd.f32 %v2826, %v2827
        %v2829 = vrot.slane %v2828, 2
        %v2830 = vadd.f32 %v2828, %v2829
        %v2831 = vrot.slane %v2830, 1
        %v2832 = vadd.f32 %v2830, %v2831
        %v2833 = vsel %vm286, %v2807, 0.0
        %v2834 = vrot.slane %v2833, 4
        %v2835 = vadd.f32 %v2833, %v2834
        %v2836 = vrot.slane %v2835, 2
        %v2837 = vadd.f32 %v2835, %v2836
        %v2838 = vrot.slane %v2837, 1
        %v2839 = vadd.f32 %v2837, %v2838
        %v2840 = vsel %vm286, %v2808, 0.0
        %v2841 = vrot.slane %v2840, 4
        %v2842 = vadd.f32 %v2840, %v2841
        %v2843 = vrot.slane %v2842, 2
        %v2844 = vadd.f32 %v2842, %v2843
        %v2845 = vrot.slane %v2844, 1
        %v2846 = vadd.f32 %v2844, %v2845
        %v2847 = vsel %vm286, %v2809, 0.0
        %v2848 = vrot.slane %v2847, 4
        %v2849 = vadd.f32 %v2847, %v2848
        %v2850 = vrot.slane %v2849, 2
        %v2851 = vadd.f32 %v2849, %v2850
        %v2852 = vrot.slane %v2851, 1
        %v2853 = vadd.f32 %v2851, %v2852
        %v2854 = vsel %vm286, %v2810, 0.0
        %v2855 = vrot.slane %v2854, 4
        %v2856 = vadd.f32 %v2854, %v2855
        %v2857 = vrot.slane %v2856, 2
        %v2858 = vadd.f32 %v2856, %v2857
        %v2859 = vrot.slane %v2858, 1
        %v2860 = vadd.f32 %v2858, %v2859
        %v2861 = vsel %vm286, %v2811, 0.0
        %v2862 = vrot.slane %v2861, 4
        %v2863 = vadd.f32 %v2861, %v2862
        %v2864 = vrot.slane %v2863, 2
        %v2865 = vadd.f32 %v2863, %v2864
        %v2866 = vrot.slane %v2865, 1
        %v2867 = vadd.f32 %v2865, %v2866
        %v2868 = vmul.f32 %v2818, %v2818
        %v2869 = vmul.f32 %v2825, %v2825
        %v2870 = vmul.f32 %v2832, %v2832
        %v2871 = vmul.f32 %v2839, %v2839
        %v2872 = vmul.f32 %v2846, %v2846
        %v2873 = vmul.f32 %v2853, %v2853
        %v2874 = vmul.f32 %v2860, %v2860
        %v2875 = vmul.f32 %v2867, %v2867
        %v2884 = vsel %vm371, %v2869, %v2868
        %v2885 = vsel %vm373, %v2870, %v2884
        %v2886 = vsel %vm375, %v2871, %v2885
        %v2887 = vsel %vm377, %v2872, %v2886
        %v2888 = vsel %vm379, %v2873, %v2887
        %v2889 = vsel %vm381, %v2874, %v2888
        %v2890 = vsel %vm383, %v2875, %v2889
        %v2892 = vsel %vm286, %v2890, 0.0
        %2893 = vadd.xlane.f32.xlu0 %v2892
        %v2894 = vpop.xlane.xlu0 %2893
        %v2895 = vadd.f32 %v2894, 1e-07
        %v2896 = vrsqrt.pop %v2895
        %v2898 = vrot.slane %v2896, 1
        %v2899 = vrot.slane %v2896, 2
        %v2900 = vrot.slane %v2896, 3
        %v2901 = vrot.slane %v2896, 4
        %v2902 = vrot.slane %v2896, 5
        %v2903 = vrot.slane %v2896, 6
        %v2904 = vrot.slane %v2896, 7
        %v2913 = vmul.f32 %v2818, %v2896
        %v2914 = vmul.f32 %v2825, %v2898
        %v2915 = vmul.f32 %v2832, %v2899
        %v2916 = vmul.f32 %v2839, %v2900
        %v2917 = vmul.f32 %v2846, %v2901
        %v2918 = vmul.f32 %v2853, %v2902
        %v2919 = vmul.f32 %v2860, %v2903
        %v2920 = vmul.f32 %v2867, %v2904
        %v2921 = vlaneseq
        %v2922 = vshrl.u32 %v2921, 7
        %v2923 = vsub.s32 0, %v2922
        %v2924 = vrot.slane %v2913, %v2923
        %v2925 = vlaneseq
        %v2926 = vshrl.u32 %v2925, 7
        %v2927 = vsub.s32 0, %v2926
        %v2928 = vrot.slane %v2914, %v2927
        %v2929 = vlaneseq
        %v2930 = vshrl.u32 %v2929, 7
        %v2931 = vsub.s32 0, %v2930
        %v2932 = vrot.slane %v2915, %v2931
        %v2933 = vlaneseq
        %v2934 = vshrl.u32 %v2933, 7
        %v2935 = vsub.s32 0, %v2934
        %v2936 = vrot.slane %v2916, %v2935
        %v2937 = vlaneseq
        %v2938 = vshrl.u32 %v2937, 7
        %v2939 = vsub.s32 0, %v2938
        %v2940 = vrot.slane %v2917, %v2939
        %v2941 = vlaneseq
        %v2942 = vshrl.u32 %v2941, 7
        %v2943 = vsub.s32 0, %v2942
        %v2944 = vrot.slane %v2918, %v2943
        %v2945 = vlaneseq
        %v2946 = vshrl.u32 %v2945, 7
        %v2947 = vsub.s32 0, %v2946
        %v2948 = vrot.slane %v2919, %v2947
        %v2949 = vlaneseq
        %v2950 = vshrl.u32 %v2949, 7
        %v2951 = vsub.s32 0, %v2950
        %v2952 = vrot.slane %v2920, %v2951
        %v2953 = vmul.f32 %v248, %v2924
        %v2954 = vmul.f32 %v253, %v2928
        %v2955 = vmul.f32 %v258, %v2932
        %v2956 = vmul.f32 %v263, %v2936
        %v2957 = vmul.f32 %v268, %v2940
        %v2958 = vmul.f32 %v273, %v2944
        %v2959 = vmul.f32 %v278, %v2948
        %v2960 = vmul.f32 %v283, %v2952
        %v2961 = vsel %vm286, %v2953, 0.0
        %2962 = vadd.xlane.f32.xlu0 %v2961
        %v2963 = vpop.xlane.xlu0 %2962
        %v2964 = vsel %vm286, %v2954, 0.0
        %2965 = vadd.xlane.f32.xlu0 %v2964
        %v2966 = vpop.xlane.xlu0 %2965
        %v2967 = vsel %vm286, %v2955, 0.0
        %2968 = vadd.xlane.f32.xlu0 %v2967
        %v2969 = vpop.xlane.xlu0 %2968
        %v2970 = vsel %vm286, %v2956, 0.0
        %2971 = vadd.xlane.f32.xlu0 %v2970
        %v2972 = vpop.xlane.xlu0 %2971
        %v2973 = vsel %vm286, %v2957, 0.0
        %2974 = vadd.xlane.f32.xlu0 %v2973
        %v2975 = vpop.xlane.xlu0 %2974
        %v2976 = vsel %vm286, %v2958, 0.0
        %2977 = vadd.xlane.f32.xlu0 %v2976
        %v2978 = vpop.xlane.xlu0 %2977
        %v2979 = vsel %vm286, %v2959, 0.0
        %2980 = vadd.xlane.f32.xlu0 %v2979
        %v2981 = vpop.xlane.xlu0 %2980
        %v2982 = vsel %vm286, %v2960, 0.0
        %2983 = vadd.xlane.f32.xlu0 %v2982
        %v2984 = vpop.xlane.xlu0 %2983
        %2985 = vset.pattern.permute.xlu0 1
        %2986 = vperm.xlu0 %2985, %v2756
        %v2987 = vpop.permute.xlu0 %2986
        %2989 = vset.pattern.permute.xlu0 1
        %2990 = vperm.xlu0 %2989, %v2757
        %v2991 = vpop.permute.xlu0 %2990
        %2993 = vset.pattern.permute.xlu0 1
        %2994 = vperm.xlu0 %2993, %v2758
        %v2995 = vpop.permute.xlu0 %2994
        %2997 = vset.pattern.permute.xlu0 1
        %2998 = vperm.xlu0 %2997, %v2759
        %v2999 = vpop.permute.xlu0 %2998
        %3001 = vset.pattern.permute.xlu0 1
        %3002 = vperm.xlu0 %3001, %v2760
        %v3003 = vpop.permute.xlu0 %3002
        %3005 = vset.pattern.permute.xlu0 1
        %3006 = vperm.xlu0 %3005, %v2761
        %v3007 = vpop.permute.xlu0 %3006
        %3009 = vset.pattern.permute.xlu0 1
        %3010 = vperm.xlu0 %3009, %v2762
        %v3011 = vpop.permute.xlu0 %3010
        %3013 = vset.pattern.permute.xlu0 1
        %3014 = vperm.xlu0 %3013, %v2763
        %v3015 = vpop.permute.xlu0 %3014
        %v3017 = vmul.f32 %v2987, %v248
        %v3018 = vmul.f32 %v2991, %v253
        %v3019 = vmul.f32 %v2995, %v258
        %v3020 = vmul.f32 %v2999, %v263
        %v3021 = vmul.f32 %v3003, %v268
        %v3022 = vmul.f32 %v3007, %v273
        %v3023 = vmul.f32 %v3011, %v278
        %v3024 = vmul.f32 %v3015, %v283
        %v3025 = vsel %vm479, %v3017, 0.0
        %v3026 = vrot.slane %v3025, 4
        %v3027 = vadd.f32 %v3025, %v3026
        %v3028 = vrot.slane %v3027, 2
        %v3029 = vadd.f32 %v3027, %v3028
        %v3030 = vrot.slane %v3029, 1
        %v3031 = vadd.f32 %v3029, %v3030
        %v3032 = vsel %vm479, %v3018, 0.0
        %v3033 = vrot.slane %v3032, 4
        %v3034 = vadd.f32 %v3032, %v3033
        %v3035 = vrot.slane %v3034, 2
        %v3036 = vadd.f32 %v3034, %v3035
        %v3037 = vrot.slane %v3036, 1
        %v3038 = vadd.f32 %v3036, %v3037
        %v3039 = vsel %vm479, %v3019, 0.0
        %v3040 = vrot.slane %v3039, 4
        %v3041 = vadd.f32 %v3039, %v3040
        %v3042 = vrot.slane %v3041, 2
        %v3043 = vadd.f32 %v3041, %v3042
        %v3044 = vrot.slane %v3043, 1
        %v3045 = vadd.f32 %v3043, %v3044
        %v3046 = vsel %vm479, %v3020, 0.0
        %v3047 = vrot.slane %v3046, 4
        %v3048 = vadd.f32 %v3046, %v3047
        %v3049 = vrot.slane %v3048, 2
        %v3050 = vadd.f32 %v3048, %v3049
        %v3051 = vrot.slane %v3050, 1
        %v3052 = vadd.f32 %v3050, %v3051
        %v3053 = vsel %vm479, %v3021, 0.0
        %v3054 = vrot.slane %v3053, 4
        %v3055 = vadd.f32 %v3053, %v3054
        %v3056 = vrot.slane %v3055, 2
        %v3057 = vadd.f32 %v3055, %v3056
        %v3058 = vrot.slane %v3057, 1
        %v3059 = vadd.f32 %v3057, %v3058
        %v3060 = vsel %vm479, %v3022, 0.0
        %v3061 = vrot.slane %v3060, 4
        %v3062 = vadd.f32 %v3060, %v3061
        %v3063 = vrot.slane %v3062, 2
        %v3064 = vadd.f32 %v3062, %v3063
        %v3065 = vrot.slane %v3064, 1
        %v3066 = vadd.f32 %v3064, %v3065
        %v3067 = vsel %vm479, %v3023, 0.0
        %v3068 = vrot.slane %v3067, 4
        %v3069 = vadd.f32 %v3067, %v3068
        %v3070 = vrot.slane %v3069, 2
        %v3071 = vadd.f32 %v3069, %v3070
        %v3072 = vrot.slane %v3071, 1
        %v3073 = vadd.f32 %v3071, %v3072
        %v3074 = vsel %vm479, %v3024, 0.0
        %v3075 = vrot.slane %v3074, 4
        %v3076 = vadd.f32 %v3074, %v3075
        %v3077 = vrot.slane %v3076, 2
        %v3078 = vadd.f32 %v3076, %v3077
        %v3079 = vrot.slane %v3078, 1
        %v3080 = vadd.f32 %v3078, %v3079
        %v3081 = vmul.f32 %v3031, %v3031
        %v3082 = vmul.f32 %v3038, %v3038
        %v3083 = vmul.f32 %v3045, %v3045
        %v3084 = vmul.f32 %v3052, %v3052
        %v3085 = vmul.f32 %v3059, %v3059
        %v3086 = vmul.f32 %v3066, %v3066
        %v3087 = vmul.f32 %v3073, %v3073
        %v3088 = vmul.f32 %v3080, %v3080
        %v3097 = vsel %vm371, %v3082, %v3081
        %v3098 = vsel %vm373, %v3083, %v3097
        %v3099 = vsel %vm375, %v3084, %v3098
        %v3100 = vsel %vm377, %v3085, %v3099
        %v3101 = vsel %vm379, %v3086, %v3100
        %v3102 = vsel %vm381, %v3087, %v3101
        %v3103 = vsel %vm383, %v3088, %v3102
        %3104 = vrot.lane.b32.xlu0 %v3103, 123
        %v3105 = vpop.permute.xlu0 %3104
        %v3107 = vsel %vm286, %v3105, 0.0
        %3108 = vadd.xlane.f32.xlu0 %v3107
        %v3109 = vpop.xlane.xlu0 %3108
        %v3110 = vadd.f32 %v3109, 1e-07
        %v3111 = vrsqrt.pop %v3110
        %v3113 = vrot.slane %v3111, 1
        %v3114 = vrot.slane %v3111, 2
        %v3115 = vrot.slane %v3111, 3
        %v3116 = vrot.slane %v3111, 4
        %v3117 = vrot.slane %v3111, 5
        %v3118 = vrot.slane %v3111, 6
        %v3119 = vrot.slane %v3111, 7
        %v3128 = vmul.f32 %v3031, %v3111
        %v3129 = vmul.f32 %v3038, %v3113
        %v3130 = vmul.f32 %v3045, %v3114
        %v3131 = vmul.f32 %v3052, %v3115
        %v3132 = vmul.f32 %v3059, %v3116
        %v3133 = vmul.f32 %v3066, %v3117
        %v3134 = vmul.f32 %v3073, %v3118
        %v3135 = vmul.f32 %v3080, %v3119
        %v3136 = vlaneseq
        %v3137 = vshrl.u32 %v3136, 7
        %v3138 = vsub.s32 0, %v3137
        %v3139 = vrot.slane %v3128, %v3138
        %v3140 = vlaneseq
        %v3141 = vshrl.u32 %v3140, 7
        %v3142 = vsub.s32 0, %v3141
        %v3143 = vrot.slane %v3129, %v3142
        %v3144 = vlaneseq
        %v3145 = vshrl.u32 %v3144, 7
        %v3146 = vsub.s32 0, %v3145
        %v3147 = vrot.slane %v3130, %v3146
        %v3148 = vlaneseq
        %v3149 = vshrl.u32 %v3148, 7
        %v3150 = vsub.s32 0, %v3149
        %v3151 = vrot.slane %v3131, %v3150
        %v3152 = vlaneseq
        %v3153 = vshrl.u32 %v3152, 7
        %v3154 = vsub.s32 0, %v3153
        %v3155 = vrot.slane %v3132, %v3154
        %v3156 = vlaneseq
        %v3157 = vshrl.u32 %v3156, 7
        %v3158 = vsub.s32 0, %v3157
        %v3159 = vrot.slane %v3133, %v3158
        %v3160 = vlaneseq
        %v3161 = vshrl.u32 %v3160, 7
        %v3162 = vsub.s32 0, %v3161
        %v3163 = vrot.slane %v3134, %v3162
        %v3164 = vlaneseq
        %v3165 = vshrl.u32 %v3164, 7
        %v3166 = vsub.s32 0, %v3165
        %v3167 = vrot.slane %v3135, %v3166
        %v3168 = vmul.f32 %v248, %v3139
        %v3169 = vmul.f32 %v253, %v3143
        %v3170 = vmul.f32 %v258, %v3147
        %v3171 = vmul.f32 %v263, %v3151
        %v3172 = vmul.f32 %v268, %v3155
        %v3173 = vmul.f32 %v273, %v3159
        %v3174 = vmul.f32 %v278, %v3163
        %v3175 = vmul.f32 %v283, %v3167
        %3184 = vrot.lane.b32.xlu0 %v3168, 123
        %v3185 = vpop.permute.xlu0 %3184
        %3186 = vrot.lane.b32.xlu0 %v3169, 123
        %v3187 = vpop.permute.xlu0 %3186
        %3188 = vrot.lane.b32.xlu0 %v3170, 123
        %v3189 = vpop.permute.xlu0 %3188
        %3190 = vrot.lane.b32.xlu0 %v3171, 123
        %v3191 = vpop.permute.xlu0 %3190
        %3192 = vrot.lane.b32.xlu0 %v3172, 123
        %v3193 = vpop.permute.xlu0 %3192
        %3194 = vrot.lane.b32.xlu0 %v3173, 123
        %v3195 = vpop.permute.xlu0 %3194
        %3196 = vrot.lane.b32.xlu0 %v3174, 123
        %v3197 = vpop.permute.xlu0 %3196
        %3198 = vrot.lane.b32.xlu0 %v3175, 123
        %v3199 = vpop.permute.xlu0 %3198
        %v3208 = vsel %vm286, %v3185, 0.0
        %3209 = vadd.xlane.f32.xlu0 %v3208
        %v3210 = vpop.xlane.xlu0 %3209
        %v3211 = vsel %vm286, %v3187, 0.0
        %3212 = vadd.xlane.f32.xlu0 %v3211
        %v3213 = vpop.xlane.xlu0 %3212
        %v3214 = vsel %vm286, %v3189, 0.0
        %3215 = vadd.xlane.f32.xlu0 %v3214
        %v3216 = vpop.xlane.xlu0 %3215
        %v3217 = vsel %vm286, %v3191, 0.0
        %3218 = vadd.xlane.f32.xlu0 %v3217
        %v3219 = vpop.xlane.xlu0 %3218
        %v3220 = vsel %vm286, %v3193, 0.0
        %3221 = vadd.xlane.f32.xlu0 %v3220
        %v3222 = vpop.xlane.xlu0 %3221
        %v3223 = vsel %vm286, %v3195, 0.0
        %3224 = vadd.xlane.f32.xlu0 %v3223
        %v3225 = vpop.xlane.xlu0 %3224
        %v3226 = vsel %vm286, %v3197, 0.0
        %3227 = vadd.xlane.f32.xlu0 %v3226
        %v3228 = vpop.xlane.xlu0 %3227
        %v3229 = vsel %vm286, %v3199, 0.0
        %3230 = vadd.xlane.f32.xlu0 %v3229
        %v3231 = vpop.xlane.xlu0 %3230
        %3232 = vset.pattern.permute.xlu0 2
        %3233 = vperm.xlu0 %3232, %v2756
        %v3234 = vpop.permute.xlu0 %3233
        %3236 = vset.pattern.permute.xlu0 2
        %3237 = vperm.xlu0 %3236, %v2757
        %v3238 = vpop.permute.xlu0 %3237
        %3240 = vset.pattern.permute.xlu0 2
        %3241 = vperm.xlu0 %3240, %v2758
        %v3242 = vpop.permute.xlu0 %3241
        %3244 = vset.pattern.permute.xlu0 2
        %3245 = vperm.xlu0 %3244, %v2759
        %v3246 = vpop.permute.xlu0 %3245
        %3248 = vset.pattern.permute.xlu0 2
        %3249 = vperm.xlu0 %3248, %v2760
        %v3250 = vpop.permute.xlu0 %3249
        %3252 = vset.pattern.permute.xlu0 2
        %3253 = vperm.xlu0 %3252, %v2761
        %v3254 = vpop.permute.xlu0 %3253
        %3256 = vset.pattern.permute.xlu0 2
        %3257 = vperm.xlu0 %3256, %v2762
        %v3258 = vpop.permute.xlu0 %3257
        %3260 = vset.pattern.permute.xlu0 2
        %3261 = vperm.xlu0 %3260, %v2763
        %v3262 = vpop.permute.xlu0 %3261
        %v3264 = vmul.f32 %v3234, %v248
        %v3265 = vmul.f32 %v3238, %v253
        %v3266 = vmul.f32 %v3242, %v258
        %v3267 = vmul.f32 %v3246, %v263
        %v3268 = vmul.f32 %v3250, %v268
        %v3269 = vmul.f32 %v3254, %v273
        %v3270 = vmul.f32 %v3258, %v278
        %v3271 = vmul.f32 %v3262, %v283
        %v3272 = vsel %vm687, %v3264, 0.0
        %v3273 = vrot.slane %v3272, 4
        %v3274 = vadd.f32 %v3272, %v3273
        %v3275 = vrot.slane %v3274, 2
        %v3276 = vadd.f32 %v3274, %v3275
        %v3277 = vrot.slane %v3276, 1
        %v3278 = vadd.f32 %v3276, %v3277
        %v3279 = vsel %vm687, %v3265, 0.0
        %v3280 = vrot.slane %v3279, 4
        %v3281 = vadd.f32 %v3279, %v3280
        %v3282 = vrot.slane %v3281, 2
        %v3283 = vadd.f32 %v3281, %v3282
        %v3284 = vrot.slane %v3283, 1
        %v3285 = vadd.f32 %v3283, %v3284
        %v3286 = vsel %vm687, %v3266, 0.0
        %v3287 = vrot.slane %v3286, 4
        %v3288 = vadd.f32 %v3286, %v3287
        %v3289 = vrot.slane %v3288, 2
        %v3290 = vadd.f32 %v3288, %v3289
        %v3291 = vrot.slane %v3290, 1
        %v3292 = vadd.f32 %v3290, %v3291
        %v3293 = vsel %vm687, %v3267, 0.0
        %v3294 = vrot.slane %v3293, 4
        %v3295 = vadd.f32 %v3293, %v3294
        %v3296 = vrot.slane %v3295, 2
        %v3297 = vadd.f32 %v3295, %v3296
        %v3298 = vrot.slane %v3297, 1
        %v3299 = vadd.f32 %v3297, %v3298
        %v3300 = vsel %vm687, %v3268, 0.0
        %v3301 = vrot.slane %v3300, 4
        %v3302 = vadd.f32 %v3300, %v3301
        %v3303 = vrot.slane %v3302, 2
        %v3304 = vadd.f32 %v3302, %v3303
        %v3305 = vrot.slane %v3304, 1
        %v3306 = vadd.f32 %v3304, %v3305
        %v3307 = vsel %vm687, %v3269, 0.0
        %v3308 = vrot.slane %v3307, 4
        %v3309 = vadd.f32 %v3307, %v3308
        %v3310 = vrot.slane %v3309, 2
        %v3311 = vadd.f32 %v3309, %v3310
        %v3312 = vrot.slane %v3311, 1
        %v3313 = vadd.f32 %v3311, %v3312
        %v3314 = vsel %vm687, %v3270, 0.0
        %v3315 = vrot.slane %v3314, 4
        %v3316 = vadd.f32 %v3314, %v3315
        %v3317 = vrot.slane %v3316, 2
        %v3318 = vadd.f32 %v3316, %v3317
        %v3319 = vrot.slane %v3318, 1
        %v3320 = vadd.f32 %v3318, %v3319
        %v3321 = vsel %vm687, %v3271, 0.0
        %v3322 = vrot.slane %v3321, 4
        %v3323 = vadd.f32 %v3321, %v3322
        %v3324 = vrot.slane %v3323, 2
        %v3325 = vadd.f32 %v3323, %v3324
        %v3326 = vrot.slane %v3325, 1
        %v3327 = vadd.f32 %v3325, %v3326
        %v3328 = vmul.f32 %v3278, %v3278
        %v3329 = vmul.f32 %v3285, %v3285
        %v3330 = vmul.f32 %v3292, %v3292
        %v3331 = vmul.f32 %v3299, %v3299
        %v3332 = vmul.f32 %v3306, %v3306
        %v3333 = vmul.f32 %v3313, %v3313
        %v3334 = vmul.f32 %v3320, %v3320
        %v3335 = vmul.f32 %v3327, %v3327
        %v3344 = vsel %vm371, %v3329, %v3328
        %v3345 = vsel %vm373, %v3330, %v3344
        %v3346 = vsel %vm375, %v3331, %v3345
        %v3347 = vsel %vm377, %v3332, %v3346
        %v3348 = vsel %vm379, %v3333, %v3347
        %v3349 = vsel %vm381, %v3334, %v3348
        %v3350 = vsel %vm383, %v3335, %v3349
        %3351 = vrot.lane.b32.xlu0 %v3350, 118
        %v3352 = vpop.permute.xlu0 %3351
        %v3354 = vsel %vm286, %v3352, 0.0
        %3355 = vadd.xlane.f32.xlu0 %v3354
        %v3356 = vpop.xlane.xlu0 %3355
        %v3357 = vadd.f32 %v3356, 1e-07
        %v3358 = vrsqrt.pop %v3357
        %v3360 = vrot.slane %v3358, 1
        %v3361 = vrot.slane %v3358, 2
        %v3362 = vrot.slane %v3358, 3
        %v3363 = vrot.slane %v3358, 4
        %v3364 = vrot.slane %v3358, 5
        %v3365 = vrot.slane %v3358, 6
        %v3366 = vrot.slane %v3358, 7
        %v3375 = vmul.f32 %v3278, %v3358
        %v3376 = vmul.f32 %v3285, %v3360
        %v3377 = vmul.f32 %v3292, %v3361
        %v3378 = vmul.f32 %v3299, %v3362
        %v3379 = vmul.f32 %v3306, %v3363
        %v3380 = vmul.f32 %v3313, %v3364
        %v3381 = vmul.f32 %v3320, %v3365
        %v3382 = vmul.f32 %v3327, %v3366
        %v3383 = vlaneseq
        %v3384 = vshrl.u32 %v3383, 7
        %v3385 = vsub.s32 0, %v3384
        %v3386 = vrot.slane %v3375, %v3385
        %v3387 = vlaneseq
        %v3388 = vshrl.u32 %v3387, 7
        %v3389 = vsub.s32 0, %v3388
        %v3390 = vrot.slane %v3376, %v3389
        %v3391 = vlaneseq
        %v3392 = vshrl.u32 %v3391, 7
        %v3393 = vsub.s32 0, %v3392
        %v3394 = vrot.slane %v3377, %v3393
        %v3395 = vlaneseq
        %v3396 = vshrl.u32 %v3395, 7
        %v3397 = vsub.s32 0, %v3396
        %v3398 = vrot.slane %v3378, %v3397
        %v3399 = vlaneseq
        %v3400 = vshrl.u32 %v3399, 7
        %v3401 = vsub.s32 0, %v3400
        %v3402 = vrot.slane %v3379, %v3401
        %v3403 = vlaneseq
        %v3404 = vshrl.u32 %v3403, 7
        %v3405 = vsub.s32 0, %v3404
        %v3406 = vrot.slane %v3380, %v3405
        %v3407 = vlaneseq
        %v3408 = vshrl.u32 %v3407, 7
        %v3409 = vsub.s32 0, %v3408
        %v3410 = vrot.slane %v3381, %v3409
        %v3411 = vlaneseq
        %v3412 = vshrl.u32 %v3411, 7
        %v3413 = vsub.s32 0, %v3412
        %v3414 = vrot.slane %v3382, %v3413
        %v3415 = vmul.f32 %v248, %v3386
        %v3416 = vmul.f32 %v253, %v3390
        %v3417 = vmul.f32 %v258, %v3394
        %v3418 = vmul.f32 %v263, %v3398
        %v3419 = vmul.f32 %v268, %v3402
        %v3420 = vmul.f32 %v273, %v3406
        %v3421 = vmul.f32 %v278, %v3410
        %v3422 = vmul.f32 %v283, %v3414
        %3431 = vrot.lane.b32.xlu0 %v3415, 118
        %v3432 = vpop.permute.xlu0 %3431
        %3433 = vrot.lane.b32.xlu0 %v3416, 118
        %v3434 = vpop.permute.xlu0 %3433
        %3435 = vrot.lane.b32.xlu0 %v3417, 118
        %v3436 = vpop.permute.xlu0 %3435
        %3437 = vrot.lane.b32.xlu0 %v3418, 118
        %v3438 = vpop.permute.xlu0 %3437
        %3439 = vrot.lane.b32.xlu0 %v3419, 118
        %v3440 = vpop.permute.xlu0 %3439
        %3441 = vrot.lane.b32.xlu0 %v3420, 118
        %v3442 = vpop.permute.xlu0 %3441
        %3443 = vrot.lane.b32.xlu0 %v3421, 118
        %v3444 = vpop.permute.xlu0 %3443
        %3445 = vrot.lane.b32.xlu0 %v3422, 118
        %v3446 = vpop.permute.xlu0 %3445
        %v3455 = vsel %vm286, %v3432, 0.0
        %3456 = vadd.xlane.f32.xlu0 %v3455
        %v3457 = vpop.xlane.xlu0 %3456
        %v3458 = vsel %vm286, %v3434, 0.0
        %3459 = vadd.xlane.f32.xlu0 %v3458
        %v3460 = vpop.xlane.xlu0 %3459
        %v3461 = vsel %vm286, %v3436, 0.0
        %3462 = vadd.xlane.f32.xlu0 %v3461
        %v3463 = vpop.xlane.xlu0 %3462
        %v3464 = vsel %vm286, %v3438, 0.0
        %3465 = vadd.xlane.f32.xlu0 %v3464
        %v3466 = vpop.xlane.xlu0 %3465
        %v3467 = vsel %vm286, %v3440, 0.0
        %3468 = vadd.xlane.f32.xlu0 %v3467
        %v3469 = vpop.xlane.xlu0 %3468
        %v3470 = vsel %vm286, %v3442, 0.0
        %3471 = vadd.xlane.f32.xlu0 %v3470
        %v3472 = vpop.xlane.xlu0 %3471
        %v3473 = vsel %vm286, %v3444, 0.0
        %3474 = vadd.xlane.f32.xlu0 %v3473
        %v3475 = vpop.xlane.xlu0 %3474
        %v3476 = vsel %vm286, %v3446, 0.0
        %3477 = vadd.xlane.f32.xlu0 %v3476
        %v3478 = vpop.xlane.xlu0 %3477
        %3479 = vset.pattern.permute.xlu0 3
        %3480 = vperm.xlu0 %3479, %v2756
        %v3481 = vpop.permute.xlu0 %3480
        %3483 = vset.pattern.permute.xlu0 3
        %3484 = vperm.xlu0 %3483, %v2757
        %v3485 = vpop.permute.xlu0 %3484
        %3487 = vset.pattern.permute.xlu0 3
        %3488 = vperm.xlu0 %3487, %v2758
        %v3489 = vpop.permute.xlu0 %3488
        %3491 = vset.pattern.permute.xlu0 3
        %3492 = vperm.xlu0 %3491, %v2759
        %v3493 = vpop.permute.xlu0 %3492
        %3495 = vset.pattern.permute.xlu0 3
        %3496 = vperm.xlu0 %3495, %v2760
        %v3497 = vpop.permute.xlu0 %3496
        %3499 = vset.pattern.permute.xlu0 3
        %3500 = vperm.xlu0 %3499, %v2761
        %v3501 = vpop.permute.xlu0 %3500
        %3503 = vset.pattern.permute.xlu0 3
        %3504 = vperm.xlu0 %3503, %v2762
        %v3505 = vpop.permute.xlu0 %3504
        %3507 = vset.pattern.permute.xlu0 3
        %3508 = vperm.xlu0 %3507, %v2763
        %v3509 = vpop.permute.xlu0 %3508
        %v3511 = vmul.f32 %v3481, %v248
        %v3512 = vmul.f32 %v3485, %v253
        %v3513 = vmul.f32 %v3489, %v258
        %v3514 = vmul.f32 %v3493, %v263
        %v3515 = vmul.f32 %v3497, %v268
        %v3516 = vmul.f32 %v3501, %v273
        %v3517 = vmul.f32 %v3505, %v278
        %v3518 = vmul.f32 %v3509, %v283
        %v3519 = vsel %vm895, %v3511, 0.0
        %v3520 = vrot.slane %v3519, 4
        %v3521 = vadd.f32 %v3519, %v3520
        %v3522 = vrot.slane %v3521, 2
        %v3523 = vadd.f32 %v3521, %v3522
        %v3524 = vrot.slane %v3523, 1
        %v3525 = vadd.f32 %v3523, %v3524
        %v3526 = vsel %vm895, %v3512, 0.0
        %v3527 = vrot.slane %v3526, 4
        %v3528 = vadd.f32 %v3526, %v3527
        %v3529 = vrot.slane %v3528, 2
        %v3530 = vadd.f32 %v3528, %v3529
        %v3531 = vrot.slane %v3530, 1
        %v3532 = vadd.f32 %v3530, %v3531
        %v3533 = vsel %vm895, %v3513, 0.0
        %v3534 = vrot.slane %v3533, 4
        %v3535 = vadd.f32 %v3533, %v3534
        %v3536 = vrot.slane %v3535, 2
        %v3537 = vadd.f32 %v3535, %v3536
        %v3538 = vrot.slane %v3537, 1
        %v3539 = vadd.f32 %v3537, %v3538
        %v3540 = vsel %vm895, %v3514, 0.0
        %v3541 = vrot.slane %v3540, 4
        %v3542 = vadd.f32 %v3540, %v3541
        %v3543 = vrot.slane %v3542, 2
        %v3544 = vadd.f32 %v3542, %v3543
        %v3545 = vrot.slane %v3544, 1
        %v3546 = vadd.f32 %v3544, %v3545
        %v3547 = vsel %vm895, %v3515, 0.0
        %v3548 = vrot.slane %v3547, 4
        %v3549 = vadd.f32 %v3547, %v3548
        %v3550 = vrot.slane %v3549, 2
        %v3551 = vadd.f32 %v3549, %v3550
        %v3552 = vrot.slane %v3551, 1
        %v3553 = vadd.f32 %v3551, %v3552
        %v3554 = vsel %vm895, %v3516, 0.0
        %v3555 = vrot.slane %v3554, 4
        %v3556 = vadd.f32 %v3554, %v3555
        %v3557 = vrot.slane %v3556, 2
        %v3558 = vadd.f32 %v3556, %v3557
        %v3559 = vrot.slane %v3558, 1
        %v3560 = vadd.f32 %v3558, %v3559
        %v3561 = vsel %vm895, %v3517, 0.0
        %v3562 = vrot.slane %v3561, 4
        %v3563 = vadd.f32 %v3561, %v3562
        %v3564 = vrot.slane %v3563, 2
        %v3565 = vadd.f32 %v3563, %v3564
        %v3566 = vrot.slane %v3565, 1
        %v3567 = vadd.f32 %v3565, %v3566
        %v3568 = vsel %vm895, %v3518, 0.0
        %v3569 = vrot.slane %v3568, 4
        %v3570 = vadd.f32 %v3568, %v3569
        %v3571 = vrot.slane %v3570, 2
        %v3572 = vadd.f32 %v3570, %v3571
        %v3573 = vrot.slane %v3572, 1
        %v3574 = vadd.f32 %v3572, %v3573
        %v3575 = vmul.f32 %v3525, %v3525
        %v3576 = vmul.f32 %v3532, %v3532
        %v3577 = vmul.f32 %v3539, %v3539
        %v3578 = vmul.f32 %v3546, %v3546
        %v3579 = vmul.f32 %v3553, %v3553
        %v3580 = vmul.f32 %v3560, %v3560
        %v3581 = vmul.f32 %v3567, %v3567
        %v3582 = vmul.f32 %v3574, %v3574
        %v3591 = vsel %vm371, %v3576, %v3575
        %v3592 = vsel %vm373, %v3577, %v3591
        %v3593 = vsel %vm375, %v3578, %v3592
        %v3594 = vsel %vm377, %v3579, %v3593
        %v3595 = vsel %vm379, %v3580, %v3594
        %v3596 = vsel %vm381, %v3581, %v3595
        %v3597 = vsel %vm383, %v3582, %v3596
        %3598 = vrot.lane.b32.xlu0 %v3597, 113
        %v3599 = vpop.permute.xlu0 %3598
        %v3601 = vsel %vm286, %v3599, 0.0
        %3602 = vadd.xlane.f32.xlu0 %v3601
        %v3603 = vpop.xlane.xlu0 %3602
        %v3604 = vadd.f32 %v3603, 1e-07
        %v3605 = vrsqrt.pop %v3604
        %v3607 = vrot.slane %v3605, 1
        %v3608 = vrot.slane %v3605, 2
        %v3609 = vrot.slane %v3605, 3
        %v3610 = vrot.slane %v3605, 4
        %v3611 = vrot.slane %v3605, 5
        %v3612 = vrot.slane %v3605, 6
        %v3613 = vrot.slane %v3605, 7
        %v3622 = vmul.f32 %v3525, %v3605
        %v3623 = vmul.f32 %v3532, %v3607
        %v3624 = vmul.f32 %v3539, %v3608
        %v3625 = vmul.f32 %v3546, %v3609
        %v3626 = vmul.f32 %v3553, %v3610
        %v3627 = vmul.f32 %v3560, %v3611
        %v3628 = vmul.f32 %v3567, %v3612
        %v3629 = vmul.f32 %v3574, %v3613
        %v3630 = vlaneseq
        %v3631 = vshrl.u32 %v3630, 7
        %v3632 = vsub.s32 0, %v3631
        %v3633 = vrot.slane %v3622, %v3632
        %v3634 = vlaneseq
        %v3635 = vshrl.u32 %v3634, 7
        %v3636 = vsub.s32 0, %v3635
        %v3637 = vrot.slane %v3623, %v3636
        %v3638 = vlaneseq
        %v3639 = vshrl.u32 %v3638, 7
        %v3640 = vsub.s32 0, %v3639
        %v3641 = vrot.slane %v3624, %v3640
        %v3642 = vlaneseq
        %v3643 = vshrl.u32 %v3642, 7
        %v3644 = vsub.s32 0, %v3643
        %v3645 = vrot.slane %v3625, %v3644
        %v3646 = vlaneseq
        %v3647 = vshrl.u32 %v3646, 7
        %v3648 = vsub.s32 0, %v3647
        %v3649 = vrot.slane %v3626, %v3648
        %v3650 = vlaneseq
        %v3651 = vshrl.u32 %v3650, 7
        %v3652 = vsub.s32 0, %v3651
        %v3653 = vrot.slane %v3627, %v3652
        %v3654 = vlaneseq
        %v3655 = vshrl.u32 %v3654, 7
        %v3656 = vsub.s32 0, %v3655
        %v3657 = vrot.slane %v3628, %v3656
        %v3658 = vlaneseq
        %v3659 = vshrl.u32 %v3658, 7
        %v3660 = vsub.s32 0, %v3659
        %v3661 = vrot.slane %v3629, %v3660
        %v3662 = vmul.f32 %v248, %v3633
        %v3663 = vmul.f32 %v253, %v3637
        %v3664 = vmul.f32 %v258, %v3641
        %v3665 = vmul.f32 %v263, %v3645
        %v3666 = vmul.f32 %v268, %v3649
        %v3667 = vmul.f32 %v273, %v3653
        %v3668 = vmul.f32 %v278, %v3657
        %v3669 = vmul.f32 %v283, %v3661
        %3678 = vrot.lane.b32.xlu0 %v3662, 113
        %v3679 = vpop.permute.xlu0 %3678
        %3680 = vrot.lane.b32.xlu0 %v3663, 113
        %v3681 = vpop.permute.xlu0 %3680
        %3682 = vrot.lane.b32.xlu0 %v3664, 113
        %v3683 = vpop.permute.xlu0 %3682
        %3684 = vrot.lane.b32.xlu0 %v3665, 113
        %v3685 = vpop.permute.xlu0 %3684
        %3686 = vrot.lane.b32.xlu0 %v3666, 113
        %v3687 = vpop.permute.xlu0 %3686
        %3688 = vrot.lane.b32.xlu0 %v3667, 113
        %v3689 = vpop.permute.xlu0 %3688
        %3690 = vrot.lane.b32.xlu0 %v3668, 113
        %v3691 = vpop.permute.xlu0 %3690
        %3692 = vrot.lane.b32.xlu0 %v3669, 113
        %v3693 = vpop.permute.xlu0 %3692
        %v3702 = vsel %vm286, %v3679, 0.0
        %3703 = vadd.xlane.f32.xlu0 %v3702
        %v3704 = vpop.xlane.xlu0 %3703
        %v3705 = vsel %vm286, %v3681, 0.0
        %3706 = vadd.xlane.f32.xlu0 %v3705
        %v3707 = vpop.xlane.xlu0 %3706
        %v3708 = vsel %vm286, %v3683, 0.0
        %3709 = vadd.xlane.f32.xlu0 %v3708
        %v3710 = vpop.xlane.xlu0 %3709
        %v3711 = vsel %vm286, %v3685, 0.0
        %3712 = vadd.xlane.f32.xlu0 %v3711
        %v3713 = vpop.xlane.xlu0 %3712
        %v3714 = vsel %vm286, %v3687, 0.0
        %3715 = vadd.xlane.f32.xlu0 %v3714
        %v3716 = vpop.xlane.xlu0 %3715
        %v3717 = vsel %vm286, %v3689, 0.0
        %3718 = vadd.xlane.f32.xlu0 %v3717
        %v3719 = vpop.xlane.xlu0 %3718
        %v3720 = vsel %vm286, %v3691, 0.0
        %3721 = vadd.xlane.f32.xlu0 %v3720
        %v3722 = vpop.xlane.xlu0 %3721
        %v3723 = vsel %vm286, %v3693, 0.0
        %3724 = vadd.xlane.f32.xlu0 %v3723
        %v3725 = vpop.xlane.xlu0 %3724
        %3726 = vset.pattern.permute.xlu0 4
        %3727 = vperm.xlu0 %3726, %v2756
        %v3728 = vpop.permute.xlu0 %3727
        %3730 = vset.pattern.permute.xlu0 4
        %3731 = vperm.xlu0 %3730, %v2757
        %v3732 = vpop.permute.xlu0 %3731
        %3734 = vset.pattern.permute.xlu0 4
        %3735 = vperm.xlu0 %3734, %v2758
        %v3736 = vpop.permute.xlu0 %3735
        %3738 = vset.pattern.permute.xlu0 4
        %3739 = vperm.xlu0 %3738, %v2759
        %v3740 = vpop.permute.xlu0 %3739
        %3742 = vset.pattern.permute.xlu0 4
        %3743 = vperm.xlu0 %3742, %v2760
        %v3744 = vpop.permute.xlu0 %3743
        %3746 = vset.pattern.permute.xlu0 4
        %3747 = vperm.xlu0 %3746, %v2761
        %v3748 = vpop.permute.xlu0 %3747
        %3750 = vset.pattern.permute.xlu0 4
        %3751 = vperm.xlu0 %3750, %v2762
        %v3752 = vpop.permute.xlu0 %3751
        %3754 = vset.pattern.permute.xlu0 4
        %3755 = vperm.xlu0 %3754, %v2763
        %v3756 = vpop.permute.xlu0 %3755
        %v3758 = vmul.f32 %v3728, %v248
        %v3759 = vmul.f32 %v3732, %v253
        %v3760 = vmul.f32 %v3736, %v258
        %v3761 = vmul.f32 %v3740, %v263
        %v3762 = vmul.f32 %v3744, %v268
        %v3763 = vmul.f32 %v3748, %v273
        %v3764 = vmul.f32 %v3752, %v278
        %v3765 = vmul.f32 %v3756, %v283
        %v3766 = vsel %vm1103, %v3758, 0.0
        %v3767 = vrot.slane %v3766, 4
        %v3768 = vadd.f32 %v3766, %v3767
        %v3769 = vrot.slane %v3768, 2
        %v3770 = vadd.f32 %v3768, %v3769
        %v3771 = vrot.slane %v3770, 1
        %v3772 = vadd.f32 %v3770, %v3771
        %v3773 = vsel %vm1103, %v3759, 0.0
        %v3774 = vrot.slane %v3773, 4
        %v3775 = vadd.f32 %v3773, %v3774
        %v3776 = vrot.slane %v3775, 2
        %v3777 = vadd.f32 %v3775, %v3776
        %v3778 = vrot.slane %v3777, 1
        %v3779 = vadd.f32 %v3777, %v3778
        %v3780 = vsel %vm1103, %v3760, 0.0
        %v3781 = vrot.slane %v3780, 4
        %v3782 = vadd.f32 %v3780, %v3781
        %v3783 = vrot.slane %v3782, 2
        %v3784 = vadd.f32 %v3782, %v3783
        %v3785 = vrot.slane %v3784, 1
        %v3786 = vadd.f32 %v3784, %v3785
        %v3787 = vsel %vm1103, %v3761, 0.0
        %v3788 = vrot.slane %v3787, 4
        %v3789 = vadd.f32 %v3787, %v3788
        %v3790 = vrot.slane %v3789, 2
        %v3791 = vadd.f32 %v3789, %v3790
        %v3792 = vrot.slane %v3791, 1
        %v3793 = vadd.f32 %v3791, %v3792
        %v3794 = vsel %vm1103, %v3762, 0.0
        %v3795 = vrot.slane %v3794, 4
        %v3796 = vadd.f32 %v3794, %v3795
        %v3797 = vrot.slane %v3796, 2
        %v3798 = vadd.f32 %v3796, %v3797
        %v3799 = vrot.slane %v3798, 1
        %v3800 = vadd.f32 %v3798, %v3799
        %v3801 = vsel %vm1103, %v3763, 0.0
        %v3802 = vrot.slane %v3801, 4
        %v3803 = vadd.f32 %v3801, %v3802
        %v3804 = vrot.slane %v3803, 2
        %v3805 = vadd.f32 %v3803, %v3804
        %v3806 = vrot.slane %v3805, 1
        %v3807 = vadd.f32 %v3805, %v3806
        %v3808 = vsel %vm1103, %v3764, 0.0
        %v3809 = vrot.slane %v3808, 4
        %v3810 = vadd.f32 %v3808, %v3809
        %v3811 = vrot.slane %v3810, 2
        %v3812 = vadd.f32 %v3810, %v3811
        %v3813 = vrot.slane %v3812, 1
        %v3814 = vadd.f32 %v3812, %v3813
        %v3815 = vsel %vm1103, %v3765, 0.0
        %v3816 = vrot.slane %v3815, 4
        %v3817 = vadd.f32 %v3815, %v3816
        %v3818 = vrot.slane %v3817, 2
        %v3819 = vadd.f32 %v3817, %v3818
        %v3820 = vrot.slane %v3819, 1
        %v3821 = vadd.f32 %v3819, %v3820
        %v3822 = vmul.f32 %v3772, %v3772
        %v3823 = vmul.f32 %v3779, %v3779
        %v3824 = vmul.f32 %v3786, %v3786
        %v3825 = vmul.f32 %v3793, %v3793
        %v3826 = vmul.f32 %v3800, %v3800
        %v3827 = vmul.f32 %v3807, %v3807
        %v3828 = vmul.f32 %v3814, %v3814
        %v3829 = vmul.f32 %v3821, %v3821
        %v3838 = vsel %vm371, %v3823, %v3822
        %v3839 = vsel %vm373, %v3824, %v3838
        %v3840 = vsel %vm375, %v3825, %v3839
        %v3841 = vsel %vm377, %v3826, %v3840
        %v3842 = vsel %vm379, %v3827, %v3841
        %v3843 = vsel %vm381, %v3828, %v3842
        %v3844 = vsel %vm383, %v3829, %v3843
        %3845 = vrot.lane.b32.xlu0 %v3844, 108
        %v3846 = vpop.permute.xlu0 %3845
        %v3848 = vsel %vm286, %v3846, 0.0
        %3849 = vadd.xlane.f32.xlu0 %v3848
        %v3850 = vpop.xlane.xlu0 %3849
        %v3851 = vadd.f32 %v3850, 1e-07
        %v3852 = vrsqrt.pop %v3851
        %v3854 = vrot.slane %v3852, 1
        %v3855 = vrot.slane %v3852, 2
        %v3856 = vrot.slane %v3852, 3
        %v3857 = vrot.slane %v3852, 4
        %v3858 = vrot.slane %v3852, 5
        %v3859 = vrot.slane %v3852, 6
        %v3860 = vrot.slane %v3852, 7
        %v3869 = vmul.f32 %v3772, %v3852
        %v3870 = vmul.f32 %v3779, %v3854
        %v3871 = vmul.f32 %v3786, %v3855
        %v3872 = vmul.f32 %v3793, %v3856
        %v3873 = vmul.f32 %v3800, %v3857
        %v3874 = vmul.f32 %v3807, %v3858
        %v3875 = vmul.f32 %v3814, %v3859
        %v3876 = vmul.f32 %v3821, %v3860
        %v3877 = vlaneseq
        %v3878 = vshrl.u32 %v3877, 7
        %v3879 = vsub.s32 0, %v3878
        %v3880 = vrot.slane %v3869, %v3879
        %v3881 = vlaneseq
        %v3882 = vshrl.u32 %v3881, 7
        %v3883 = vsub.s32 0, %v3882
        %v3884 = vrot.slane %v3870, %v3883
        %v3885 = vlaneseq
        %v3886 = vshrl.u32 %v3885, 7
        %v3887 = vsub.s32 0, %v3886
        %v3888 = vrot.slane %v3871, %v3887
        %v3889 = vlaneseq
        %v3890 = vshrl.u32 %v3889, 7
        %v3891 = vsub.s32 0, %v3890
        %v3892 = vrot.slane %v3872, %v3891
        %v3893 = vlaneseq
        %v3894 = vshrl.u32 %v3893, 7
        %v3895 = vsub.s32 0, %v3894
        %v3896 = vrot.slane %v3873, %v3895
        %v3897 = vlaneseq
        %v3898 = vshrl.u32 %v3897, 7
        %v3899 = vsub.s32 0, %v3898
        %v3900 = vrot.slane %v3874, %v3899
        %v3901 = vlaneseq
        %v3902 = vshrl.u32 %v3901, 7
        %v3903 = vsub.s32 0, %v3902
        %v3904 = vrot.slane %v3875, %v3903
        %v3905 = vlaneseq
        %v3906 = vshrl.u32 %v3905, 7
        %v3907 = vsub.s32 0, %v3906
        %v3908 = vrot.slane %v3876, %v3907
        %v3909 = vmul.f32 %v248, %v3880
        %v3910 = vmul.f32 %v253, %v3884
        %v3911 = vmul.f32 %v258, %v3888
        %v3912 = vmul.f32 %v263, %v3892
        %v3913 = vmul.f32 %v268, %v3896
        %v3914 = vmul.f32 %v273, %v3900
        %v3915 = vmul.f32 %v278, %v3904
        %v3916 = vmul.f32 %v283, %v3908
        %3925 = vrot.lane.b32.xlu0 %v3909, 108
        %v3926 = vpop.permute.xlu0 %3925
        %3927 = vrot.lane.b32.xlu0 %v3910, 108
        %v3928 = vpop.permute.xlu0 %3927
        %3929 = vrot.lane.b32.xlu0 %v3911, 108
        %v3930 = vpop.permute.xlu0 %3929
        %3931 = vrot.lane.b32.xlu0 %v3912, 108
        %v3932 = vpop.permute.xlu0 %3931
        %3933 = vrot.lane.b32.xlu0 %v3913, 108
        %v3934 = vpop.permute.xlu0 %3933
        %3935 = vrot.lane.b32.xlu0 %v3914, 108
        %v3936 = vpop.permute.xlu0 %3935
        %3937 = vrot.lane.b32.xlu0 %v3915, 108
        %v3938 = vpop.permute.xlu0 %3937
        %3939 = vrot.lane.b32.xlu0 %v3916, 108
        %v3940 = vpop.permute.xlu0 %3939
        %v3949 = vsel %vm286, %v3926, 0.0
        %3950 = vadd.xlane.f32.xlu0 %v3949
        %v3951 = vpop.xlane.xlu0 %3950
        %v3952 = vsel %vm286, %v3928, 0.0
        %3953 = vadd.xlane.f32.xlu0 %v3952
        %v3954 = vpop.xlane.xlu0 %3953
        %v3955 = vsel %vm286, %v3930, 0.0
        %3956 = vadd.xlane.f32.xlu0 %v3955
        %v3957 = vpop.xlane.xlu0 %3956
        %v3958 = vsel %vm286, %v3932, 0.0
        %3959 = vadd.xlane.f32.xlu0 %v3958
        %v3960 = vpop.xlane.xlu0 %3959
        %v3961 = vsel %vm286, %v3934, 0.0
        %3962 = vadd.xlane.f32.xlu0 %v3961
        %v3963 = vpop.xlane.xlu0 %3962
        %v3964 = vsel %vm286, %v3936, 0.0
        %3965 = vadd.xlane.f32.xlu0 %v3964
        %v3966 = vpop.xlane.xlu0 %3965
        %v3967 = vsel %vm286, %v3938, 0.0
        %3968 = vadd.xlane.f32.xlu0 %v3967
        %v3969 = vpop.xlane.xlu0 %3968
        %v3970 = vsel %vm286, %v3940, 0.0
        %3971 = vadd.xlane.f32.xlu0 %v3970
        %v3972 = vpop.xlane.xlu0 %3971
        %v3973 = vsel %vm1311, %v2963, %v3210
        %v3974 = vsel %vm1311, %v2966, %v3213
        %v3975 = vsel %vm1311, %v2969, %v3216
        %v3976 = vsel %vm1311, %v2972, %v3219
        %v3977 = vsel %vm1311, %v2975, %v3222
        %v3978 = vsel %vm1311, %v2978, %v3225
        %v3979 = vsel %vm1311, %v2981, %v3228
        %v3980 = vsel %vm1311, %v2984, %v3231
        %v3981 = vsel %vm1320, %v3973, %v3457
        %v3982 = vsel %vm1320, %v3974, %v3460
        %v3983 = vsel %vm1320, %v3975, %v3463
        %v3984 = vsel %vm1320, %v3976, %v3466
        %v3985 = vsel %vm1320, %v3977, %v3469
        %v3986 = vsel %vm1320, %v3978, %v3472
        %v3987 = vsel %vm1320, %v3979, %v3475
        %v3988 = vsel %vm1320, %v3980, %v3478
        %v3989 = vsel %vm1329, %v3981, %v3704
        %v3990 = vsel %vm1329, %v3982, %v3707
        %v3991 = vsel %vm1329, %v3983, %v3710
        %v3992 = vsel %vm1329, %v3984, %v3713
        %v3993 = vsel %vm1329, %v3985, %v3716
        %v3994 = vsel %vm1329, %v3986, %v3719
        %v3995 = vsel %vm1329, %v3987, %v3722
        %v3996 = vsel %vm1329, %v3988, %v3725
        %v3997 = vsel %vm1338, %v3989, %v3951
        %v3998 = vsel %vm1338, %v3990, %v3954
        %v3999 = vsel %vm1338, %v3991, %v3957
        %v4000 = vsel %vm1338, %v3992, %v3960
        %v4001 = vsel %vm1338, %v3993, %v3963
        %v4002 = vsel %vm1338, %v3994, %v3966
        %v4003 = vsel %vm1338, %v3995, %v3969
        %v4004 = vsel %vm1338, %v3996, %v3972
        %v4005 = vsel %vm286, %v3997, -inf
        %4006 = vmax.xlane.f32.xlu0 %v4005
        %v4007 = vpop.xlane.xlu0 %4006
        %v4008 = vsel %vm286, %v3998, -inf
        %4009 = vmax.xlane.f32.xlu0 %v4008
        %v4010 = vpop.xlane.xlu0 %4009
        %v4011 = vsel %vm286, %v3999, -inf
        %4012 = vmax.xlane.f32.xlu0 %v4011
        %v4013 = vpop.xlane.xlu0 %4012
        %v4014 = vsel %vm286, %v4000, -inf
        %4015 = vmax.xlane.f32.xlu0 %v4014
        %v4016 = vpop.xlane.xlu0 %4015
        %v4017 = vsel %vm286, %v4001, -inf
        %4018 = vmax.xlane.f32.xlu0 %v4017
        %v4019 = vpop.xlane.xlu0 %4018
        %v4020 = vsel %vm286, %v4002, -inf
        %4021 = vmax.xlane.f32.xlu0 %v4020
        %v4022 = vpop.xlane.xlu0 %4021
        %v4023 = vsel %vm286, %v4003, -inf
        %4024 = vmax.xlane.f32.xlu0 %v4023
        %v4025 = vpop.xlane.xlu0 %4024
        %v4026 = vsel %vm286, %v4004, -inf
        %4027 = vmax.xlane.f32.xlu0 %v4026
        %v4028 = vpop.xlane.xlu0 %4027
        %v4029 = vsub.f32 %v3997, %v4007
        %v4030 = vsub.f32 %v3998, %v4010
        %v4031 = vsub.f32 %v3999, %v4013
        %v4032 = vsub.f32 %v4000, %v4016
        %v4033 = vsub.f32 %v4001, %v4019
        %v4034 = vsub.f32 %v4002, %v4022
        %v4035 = vsub.f32 %v4003, %v4025
        %v4036 = vsub.f32 %v4004, %v4028
        %v4037 = vmul.f32 %v4029, 1.442695
        %v4038 = vpow.pop %v4037
        %v4039 = vmul.f32 %v4030, 1.442695
        %v4040 = vpow.pop %v4039
        %v4041 = vmul.f32 %v4031, 1.442695
        %v4042 = vpow.pop %v4041
        %v4043 = vmul.f32 %v4032, 1.442695
        %v4044 = vpow.pop %v4043
        %v4045 = vmul.f32 %v4033, 1.442695
        %v4046 = vpow.pop %v4045
        %v4047 = vmul.f32 %v4034, 1.442695
        %v4048 = vpow.pop %v4047
        %v4049 = vmul.f32 %v4035, 1.442695
        %v4050 = vpow.pop %v4049
        %v4051 = vmul.f32 %v4036, 1.442695
        %v4052 = vpow.pop %v4051
        %v4053 = vsel %vm286, %v4038, 0.0
        %4054 = vadd.xlane.f32.xlu0 %v4053
        %v4055 = vpop.xlane.xlu0 %4054
        %v4056 = vsel %vm286, %v4040, 0.0
        %4057 = vadd.xlane.f32.xlu0 %v4056
        %v4058 = vpop.xlane.xlu0 %4057
        %v4059 = vsel %vm286, %v4042, 0.0
        %4060 = vadd.xlane.f32.xlu0 %v4059
        %v4061 = vpop.xlane.xlu0 %4060
        %v4062 = vsel %vm286, %v4044, 0.0
        %4063 = vadd.xlane.f32.xlu0 %v4062
        %v4064 = vpop.xlane.xlu0 %4063
        %v4065 = vsel %vm286, %v4046, 0.0
        %4066 = vadd.xlane.f32.xlu0 %v4065
        %v4067 = vpop.xlane.xlu0 %4066
        %v4068 = vsel %vm286, %v4048, 0.0
        %4069 = vadd.xlane.f32.xlu0 %v4068
        %v4070 = vpop.xlane.xlu0 %4069
        %v4071 = vsel %vm286, %v4050, 0.0
        %4072 = vadd.xlane.f32.xlu0 %v4071
        %v4073 = vpop.xlane.xlu0 %4072
        %v4074 = vsel %vm286, %v4052, 0.0
        %4075 = vadd.xlane.f32.xlu0 %v4074
        %v4076 = vpop.xlane.xlu0 %4075
        %v4077 = vrcp.pop %v4055
        %v4078 = vrcp.pop %v4058
        %v4079 = vrcp.pop %v4061
        %v4080 = vrcp.pop %v4064
        %v4081 = vrcp.pop %v4067
        %v4082 = vrcp.pop %v4070
        %v4083 = vrcp.pop %v4073
        %v4084 = vrcp.pop %v4076
        %v4085 = vmul.f32 %v4038, %v4077
        %v4086 = vmul.f32 %v4040, %v4078
        %v4087 = vmul.f32 %v4042, %v4079
        %v4088 = vmul.f32 %v4044, %v4080
        %v4089 = vmul.f32 %v4046, %v4081
        %v4090 = vmul.f32 %v4048, %v4082
        %v4091 = vmul.f32 %v4050, %v4083
        %v4092 = vmul.f32 %v4052, %v4084
        %4094 = vset.pattern.permute.xlu0 0
        %4095 = vperm.xlu0 %4094, %v4085
        %v4096 = vpop.permute.xlu0 %4095
        %4099 = vset.pattern.permute.xlu0 0
        %4100 = vperm.xlu0 %4099, %v4086
        %v4101 = vpop.permute.xlu0 %4100
        %4104 = vset.pattern.permute.xlu0 0
        %4105 = vperm.xlu0 %4104, %v4087
        %v4106 = vpop.permute.xlu0 %4105
        %4109 = vset.pattern.permute.xlu0 0
        %4110 = vperm.xlu0 %4109, %v4088
        %v4111 = vpop.permute.xlu0 %4110
        %4114 = vset.pattern.permute.xlu0 0
        %4115 = vperm.xlu0 %4114, %v4089
        %v4116 = vpop.permute.xlu0 %4115
        %4119 = vset.pattern.permute.xlu0 0
        %4120 = vperm.xlu0 %4119, %v4090
        %v4121 = vpop.permute.xlu0 %4120
        %4124 = vset.pattern.permute.xlu0 0
        %4125 = vperm.xlu0 %4124, %v4091
        %v4126 = vpop.permute.xlu0 %4125
        %4129 = vset.pattern.permute.xlu0 0
        %4130 = vperm.xlu0 %4129, %v4092
        %v4131 = vpop.permute.xlu0 %4130
        %v4133 = vmul.f32 %v4096, %v248
        %v4134 = vmul.f32 %v4101, %v253
        %v4135 = vmul.f32 %v4106, %v258
        %v4136 = vmul.f32 %v4111, %v263
        %v4137 = vmul.f32 %v4116, %v268
        %v4138 = vmul.f32 %v4121, %v273
        %v4139 = vmul.f32 %v4126, %v278
        %v4140 = vmul.f32 %v4131, %v283
        %v4141 = vsel %vm286, %v4133, 0.0
        %v4142 = vrot.slane %v4141, 4
        %v4143 = vadd.f32 %v4141, %v4142
        %v4144 = vrot.slane %v4143, 2
        %v4145 = vadd.f32 %v4143, %v4144
        %v4146 = vrot.slane %v4145, 1
        %v4147 = vadd.f32 %v4145, %v4146
        %v4148 = vsel %vm286, %v4134, 0.0
        %v4149 = vrot.slane %v4148, 4
        %v4150 = vadd.f32 %v4148, %v4149
        %v4151 = vrot.slane %v4150, 2
        %v4152 = vadd.f32 %v4150, %v4151
        %v4153 = vrot.slane %v4152, 1
        %v4154 = vadd.f32 %v4152, %v4153
        %v4155 = vsel %vm286, %v4135, 0.0
        %v4156 = vrot.slane %v4155, 4
        %v4157 = vadd.f32 %v4155, %v4156
        %v4158 = vrot.slane %v4157, 2
        %v4159 = vadd.f32 %v4157, %v4158
        %v4160 = vrot.slane %v4159, 1
        %v4161 = vadd.f32 %v4159, %v4160
        %v4162 = vsel %vm286, %v4136, 0.0
        %v4163 = vrot.slane %v4162, 4
        %v4164 = vadd.f32 %v4162, %v4163
        %v4165 = vrot.slane %v4164, 2
        %v4166 = vadd.f32 %v4164, %v4165
        %v4167 = vrot.slane %v4166, 1
        %v4168 = vadd.f32 %v4166, %v4167
        %v4169 = vsel %vm286, %v4137, 0.0
        %v4170 = vrot.slane %v4169, 4
        %v4171 = vadd.f32 %v4169, %v4170
        %v4172 = vrot.slane %v4171, 2
        %v4173 = vadd.f32 %v4171, %v4172
        %v4174 = vrot.slane %v4173, 1
        %v4175 = vadd.f32 %v4173, %v4174
        %v4176 = vsel %vm286, %v4138, 0.0
        %v4177 = vrot.slane %v4176, 4
        %v4178 = vadd.f32 %v4176, %v4177
        %v4179 = vrot.slane %v4178, 2
        %v4180 = vadd.f32 %v4178, %v4179
        %v4181 = vrot.slane %v4180, 1
        %v4182 = vadd.f32 %v4180, %v4181
        %v4183 = vsel %vm286, %v4139, 0.0
        %v4184 = vrot.slane %v4183, 4
        %v4185 = vadd.f32 %v4183, %v4184
        %v4186 = vrot.slane %v4185, 2
        %v4187 = vadd.f32 %v4185, %v4186
        %v4188 = vrot.slane %v4187, 1
        %v4189 = vadd.f32 %v4187, %v4188
        %v4190 = vsel %vm286, %v4140, 0.0
        %v4191 = vrot.slane %v4190, 4
        %v4192 = vadd.f32 %v4190, %v4191
        %v4193 = vrot.slane %v4192, 2
        %v4194 = vadd.f32 %v4192, %v4193
        %v4195 = vrot.slane %v4194, 1
        %v4196 = vadd.f32 %v4194, %v4195
        %v4197 = vmul.f32 %v4147, %v4147
        %v4198 = vmul.f32 %v4154, %v4154
        %v4199 = vmul.f32 %v4161, %v4161
        %v4200 = vmul.f32 %v4168, %v4168
        %v4201 = vmul.f32 %v4175, %v4175
        %v4202 = vmul.f32 %v4182, %v4182
        %v4203 = vmul.f32 %v4189, %v4189
        %v4204 = vmul.f32 %v4196, %v4196
        %v4213 = vsel %vm371, %v4198, %v4197
        %v4214 = vsel %vm373, %v4199, %v4213
        %v4215 = vsel %vm375, %v4200, %v4214
        %v4216 = vsel %vm377, %v4201, %v4215
        %v4217 = vsel %vm379, %v4202, %v4216
        %v4218 = vsel %vm381, %v4203, %v4217
        %v4219 = vsel %vm383, %v4204, %v4218
        %v4221 = vsel %vm286, %v4219, 0.0
        %4222 = vadd.xlane.f32.xlu0 %v4221
        %v4223 = vpop.xlane.xlu0 %4222
        %v4224 = vadd.f32 %v4223, 1e-07
        %v4225 = vrsqrt.pop %v4224
        %v4227 = vrot.slane %v4225, 1
        %v4228 = vrot.slane %v4225, 2
        %v4229 = vrot.slane %v4225, 3
        %v4230 = vrot.slane %v4225, 4
        %v4231 = vrot.slane %v4225, 5
        %v4232 = vrot.slane %v4225, 6
        %v4233 = vrot.slane %v4225, 7
        %v4242 = vmul.f32 %v4147, %v4225
        %v4243 = vmul.f32 %v4154, %v4227
        %v4244 = vmul.f32 %v4161, %v4228
        %v4245 = vmul.f32 %v4168, %v4229
        %v4246 = vmul.f32 %v4175, %v4230
        %v4247 = vmul.f32 %v4182, %v4231
        %v4248 = vmul.f32 %v4189, %v4232
        %v4249 = vmul.f32 %v4196, %v4233
        %4250 = vset.pattern.permute.xlu0 1
        %4251 = vperm.xlu0 %4250, %v4085
        %v4252 = vpop.permute.xlu0 %4251
        %4254 = vset.pattern.permute.xlu0 1
        %4255 = vperm.xlu0 %4254, %v4086
        %v4256 = vpop.permute.xlu0 %4255
        %4258 = vset.pattern.permute.xlu0 1
        %4259 = vperm.xlu0 %4258, %v4087
        %v4260 = vpop.permute.xlu0 %4259
        %4262 = vset.pattern.permute.xlu0 1
        %4263 = vperm.xlu0 %4262, %v4088
        %v4264 = vpop.permute.xlu0 %4263
        %4266 = vset.pattern.permute.xlu0 1
        %4267 = vperm.xlu0 %4266, %v4089
        %v4268 = vpop.permute.xlu0 %4267
        %4270 = vset.pattern.permute.xlu0 1
        %4271 = vperm.xlu0 %4270, %v4090
        %v4272 = vpop.permute.xlu0 %4271
        %4274 = vset.pattern.permute.xlu0 1
        %4275 = vperm.xlu0 %4274, %v4091
        %v4276 = vpop.permute.xlu0 %4275
        %4278 = vset.pattern.permute.xlu0 1
        %4279 = vperm.xlu0 %4278, %v4092
        %v4280 = vpop.permute.xlu0 %4279
        %v4282 = vmul.f32 %v4252, %v248
        %v4283 = vmul.f32 %v4256, %v253
        %v4284 = vmul.f32 %v4260, %v258
        %v4285 = vmul.f32 %v4264, %v263
        %v4286 = vmul.f32 %v4268, %v268
        %v4287 = vmul.f32 %v4272, %v273
        %v4288 = vmul.f32 %v4276, %v278
        %v4289 = vmul.f32 %v4280, %v283
        %v4290 = vsel %vm479, %v4282, 0.0
        %v4291 = vrot.slane %v4290, 4
        %v4292 = vadd.f32 %v4290, %v4291
        %v4293 = vrot.slane %v4292, 2
        %v4294 = vadd.f32 %v4292, %v4293
        %v4295 = vrot.slane %v4294, 1
        %v4296 = vadd.f32 %v4294, %v4295
        %v4297 = vsel %vm479, %v4283, 0.0
        %v4298 = vrot.slane %v4297, 4
        %v4299 = vadd.f32 %v4297, %v4298
        %v4300 = vrot.slane %v4299, 2
        %v4301 = vadd.f32 %v4299, %v4300
        %v4302 = vrot.slane %v4301, 1
        %v4303 = vadd.f32 %v4301, %v4302
        %v4304 = vsel %vm479, %v4284, 0.0
        %v4305 = vrot.slane %v4304, 4
        %v4306 = vadd.f32 %v4304, %v4305
        %v4307 = vrot.slane %v4306, 2
        %v4308 = vadd.f32 %v4306, %v4307
        %v4309 = vrot.slane %v4308, 1
        %v4310 = vadd.f32 %v4308, %v4309
        %v4311 = vsel %vm479, %v4285, 0.0
        %v4312 = vrot.slane %v4311, 4
        %v4313 = vadd.f32 %v4311, %v4312
        %v4314 = vrot.slane %v4313, 2
        %v4315 = vadd.f32 %v4313, %v4314
        %v4316 = vrot.slane %v4315, 1
        %v4317 = vadd.f32 %v4315, %v4316
        %v4318 = vsel %vm479, %v4286, 0.0
        %v4319 = vrot.slane %v4318, 4
        %v4320 = vadd.f32 %v4318, %v4319
        %v4321 = vrot.slane %v4320, 2
        %v4322 = vadd.f32 %v4320, %v4321
        %v4323 = vrot.slane %v4322, 1
        %v4324 = vadd.f32 %v4322, %v4323
        %v4325 = vsel %vm479, %v4287, 0.0
        %v4326 = vrot.slane %v4325, 4
        %v4327 = vadd.f32 %v4325, %v4326
        %v4328 = vrot.slane %v4327, 2
        %v4329 = vadd.f32 %v4327, %v4328
        %v4330 = vrot.slane %v4329, 1
        %v4331 = vadd.f32 %v4329, %v4330
        %v4332 = vsel %vm479, %v4288, 0.0
        %v4333 = vrot.slane %v4332, 4
        %v4334 = vadd.f32 %v4332, %v4333
        %v4335 = vrot.slane %v4334, 2
        %v4336 = vadd.f32 %v4334, %v4335
        %v4337 = vrot.slane %v4336, 1
        %v4338 = vadd.f32 %v4336, %v4337
        %v4339 = vsel %vm479, %v4289, 0.0
        %v4340 = vrot.slane %v4339, 4
        %v4341 = vadd.f32 %v4339, %v4340
        %v4342 = vrot.slane %v4341, 2
        %v4343 = vadd.f32 %v4341, %v4342
        %v4344 = vrot.slane %v4343, 1
        %v4345 = vadd.f32 %v4343, %v4344
        %v4346 = vmul.f32 %v4296, %v4296
        %v4347 = vmul.f32 %v4303, %v4303
        %v4348 = vmul.f32 %v4310, %v4310
        %v4349 = vmul.f32 %v4317, %v4317
        %v4350 = vmul.f32 %v4324, %v4324
        %v4351 = vmul.f32 %v4331, %v4331
        %v4352 = vmul.f32 %v4338, %v4338
        %v4353 = vmul.f32 %v4345, %v4345
        %v4362 = vsel %vm371, %v4347, %v4346
        %v4363 = vsel %vm373, %v4348, %v4362
        %v4364 = vsel %vm375, %v4349, %v4363
        %v4365 = vsel %vm377, %v4350, %v4364
        %v4366 = vsel %vm379, %v4351, %v4365
        %v4367 = vsel %vm381, %v4352, %v4366
        %v4368 = vsel %vm383, %v4353, %v4367
        %4369 = vrot.lane.b32.xlu0 %v4368, 123
        %v4370 = vpop.permute.xlu0 %4369
        %v4372 = vsel %vm286, %v4370, 0.0
        %4373 = vadd.xlane.f32.xlu0 %v4372
        %v4374 = vpop.xlane.xlu0 %4373
        %v4375 = vadd.f32 %v4374, 1e-07
        %v4376 = vrsqrt.pop %v4375
        %v4378 = vrot.slane %v4376, 1
        %v4379 = vrot.slane %v4376, 2
        %v4380 = vrot.slane %v4376, 3
        %v4381 = vrot.slane %v4376, 4
        %v4382 = vrot.slane %v4376, 5
        %v4383 = vrot.slane %v4376, 6
        %v4384 = vrot.slane %v4376, 7
        %v4393 = vmul.f32 %v4296, %v4376
        %v4394 = vmul.f32 %v4303, %v4378
        %v4395 = vmul.f32 %v4310, %v4379
        %v4396 = vmul.f32 %v4317, %v4380
        %v4397 = vmul.f32 %v4324, %v4381
        %v4398 = vmul.f32 %v4331, %v4382
        %v4399 = vmul.f32 %v4338, %v4383
        %v4400 = vmul.f32 %v4345, %v4384
        %4401 = vset.pattern.permute.xlu0 2
        %4402 = vperm.xlu0 %4401, %v4085
        %v4403 = vpop.permute.xlu0 %4402
        %4405 = vset.pattern.permute.xlu0 2
        %4406 = vperm.xlu0 %4405, %v4086
        %v4407 = vpop.permute.xlu0 %4406
        %4409 = vset.pattern.permute.xlu0 2
        %4410 = vperm.xlu0 %4409, %v4087
        %v4411 = vpop.permute.xlu0 %4410
        %4413 = vset.pattern.permute.xlu0 2
        %4414 = vperm.xlu0 %4413, %v4088
        %v4415 = vpop.permute.xlu0 %4414
        %4417 = vset.pattern.permute.xlu0 2
        %4418 = vperm.xlu0 %4417, %v4089
        %v4419 = vpop.permute.xlu0 %4418
        %4421 = vset.pattern.permute.xlu0 2
        %4422 = vperm.xlu0 %4421, %v4090
        %v4423 = vpop.permute.xlu0 %4422
        %4425 = vset.pattern.permute.xlu0 2
        %4426 = vperm.xlu0 %4425, %v4091
        %v4427 = vpop.permute.xlu0 %4426
        %4429 = vset.pattern.permute.xlu0 2
        %4430 = vperm.xlu0 %4429, %v4092
        %v4431 = vpop.permute.xlu0 %4430
        %v4433 = vmul.f32 %v4403, %v248
        %v4434 = vmul.f32 %v4407, %v253
        %v4435 = vmul.f32 %v4411, %v258
        %v4436 = vmul.f32 %v4415, %v263
        %v4437 = vmul.f32 %v4419, %v268
        %v4438 = vmul.f32 %v4423, %v273
        %v4439 = vmul.f32 %v4427, %v278
        %v4440 = vmul.f32 %v4431, %v283
        %v4441 = vsel %vm687, %v4433, 0.0
        %v4442 = vrot.slane %v4441, 4
        %v4443 = vadd.f32 %v4441, %v4442
        %v4444 = vrot.slane %v4443, 2
        %v4445 = vadd.f32 %v4443, %v4444
        %v4446 = vrot.slane %v4445, 1
        %v4447 = vadd.f32 %v4445, %v4446
        %v4448 = vsel %vm687, %v4434, 0.0
        %v4449 = vrot.slane %v4448, 4
        %v4450 = vadd.f32 %v4448, %v4449
        %v4451 = vrot.slane %v4450, 2
        %v4452 = vadd.f32 %v4450, %v4451
        %v4453 = vrot.slane %v4452, 1
        %v4454 = vadd.f32 %v4452, %v4453
        %v4455 = vsel %vm687, %v4435, 0.0
        %v4456 = vrot.slane %v4455, 4
        %v4457 = vadd.f32 %v4455, %v4456
        %v4458 = vrot.slane %v4457, 2
        %v4459 = vadd.f32 %v4457, %v4458
        %v4460 = vrot.slane %v4459, 1
        %v4461 = vadd.f32 %v4459, %v4460
        %v4462 = vsel %vm687, %v4436, 0.0
        %v4463 = vrot.slane %v4462, 4
        %v4464 = vadd.f32 %v4462, %v4463
        %v4465 = vrot.slane %v4464, 2
        %v4466 = vadd.f32 %v4464, %v4465
        %v4467 = vrot.slane %v4466, 1
        %v4468 = vadd.f32 %v4466, %v4467
        %v4469 = vsel %vm687, %v4437, 0.0
        %v4470 = vrot.slane %v4469, 4
        %v4471 = vadd.f32 %v4469, %v4470
        %v4472 = vrot.slane %v4471, 2
        %v4473 = vadd.f32 %v4471, %v4472
        %v4474 = vrot.slane %v4473, 1
        %v4475 = vadd.f32 %v4473, %v4474
        %v4476 = vsel %vm687, %v4438, 0.0
        %v4477 = vrot.slane %v4476, 4
        %v4478 = vadd.f32 %v4476, %v4477
        %v4479 = vrot.slane %v4478, 2
        %v4480 = vadd.f32 %v4478, %v4479
        %v4481 = vrot.slane %v4480, 1
        %v4482 = vadd.f32 %v4480, %v4481
        %v4483 = vsel %vm687, %v4439, 0.0
        %v4484 = vrot.slane %v4483, 4
        %v4485 = vadd.f32 %v4483, %v4484
        %v4486 = vrot.slane %v4485, 2
        %v4487 = vadd.f32 %v4485, %v4486
        %v4488 = vrot.slane %v4487, 1
        %v4489 = vadd.f32 %v4487, %v4488
        %v4490 = vsel %vm687, %v4440, 0.0
        %v4491 = vrot.slane %v4490, 4
        %v4492 = vadd.f32 %v4490, %v4491
        %v4493 = vrot.slane %v4492, 2
        %v4494 = vadd.f32 %v4492, %v4493
        %v4495 = vrot.slane %v4494, 1
        %v4496 = vadd.f32 %v4494, %v4495
        %v4497 = vmul.f32 %v4447, %v4447
        %v4498 = vmul.f32 %v4454, %v4454
        %v4499 = vmul.f32 %v4461, %v4461
        %v4500 = vmul.f32 %v4468, %v4468
        %v4501 = vmul.f32 %v4475, %v4475
        %v4502 = vmul.f32 %v4482, %v4482
        %v4503 = vmul.f32 %v4489, %v4489
        %v4504 = vmul.f32 %v4496, %v4496
        %v4513 = vsel %vm371, %v4498, %v4497
        %v4514 = vsel %vm373, %v4499, %v4513
        %v4515 = vsel %vm375, %v4500, %v4514
        %v4516 = vsel %vm377, %v4501, %v4515
        %v4517 = vsel %vm379, %v4502, %v4516
        %v4518 = vsel %vm381, %v4503, %v4517
        %v4519 = vsel %vm383, %v4504, %v4518
        %4520 = vrot.lane.b32.xlu0 %v4519, 118
        %v4521 = vpop.permute.xlu0 %4520
        %v4523 = vsel %vm286, %v4521, 0.0
        %4524 = vadd.xlane.f32.xlu0 %v4523
        %v4525 = vpop.xlane.xlu0 %4524
        %v4526 = vadd.f32 %v4525, 1e-07
        %v4527 = vrsqrt.pop %v4526
        %v4529 = vrot.slane %v4527, 1
        %v4530 = vrot.slane %v4527, 2
        %v4531 = vrot.slane %v4527, 3
        %v4532 = vrot.slane %v4527, 4
        %v4533 = vrot.slane %v4527, 5
        %v4534 = vrot.slane %v4527, 6
        %v4535 = vrot.slane %v4527, 7
        %v4544 = vmul.f32 %v4447, %v4527
        %v4545 = vmul.f32 %v4454, %v4529
        %v4546 = vmul.f32 %v4461, %v4530
        %v4547 = vmul.f32 %v4468, %v4531
        %v4548 = vmul.f32 %v4475, %v4532
        %v4549 = vmul.f32 %v4482, %v4533
        %v4550 = vmul.f32 %v4489, %v4534
        %v4551 = vmul.f32 %v4496, %v4535
        %4552 = vset.pattern.permute.xlu0 3
        %4553 = vperm.xlu0 %4552, %v4085
        %v4554 = vpop.permute.xlu0 %4553
        %4556 = vset.pattern.permute.xlu0 3
        %4557 = vperm.xlu0 %4556, %v4086
        %v4558 = vpop.permute.xlu0 %4557
        %4560 = vset.pattern.permute.xlu0 3
        %4561 = vperm.xlu0 %4560, %v4087
        %v4562 = vpop.permute.xlu0 %4561
        %4564 = vset.pattern.permute.xlu0 3
        %4565 = vperm.xlu0 %4564, %v4088
        %v4566 = vpop.permute.xlu0 %4565
        %4568 = vset.pattern.permute.xlu0 3
        %4569 = vperm.xlu0 %4568, %v4089
        %v4570 = vpop.permute.xlu0 %4569
        %4572 = vset.pattern.permute.xlu0 3
        %4573 = vperm.xlu0 %4572, %v4090
        %v4574 = vpop.permute.xlu0 %4573
        %4576 = vset.pattern.permute.xlu0 3
        %4577 = vperm.xlu0 %4576, %v4091
        %v4578 = vpop.permute.xlu0 %4577
        %4580 = vset.pattern.permute.xlu0 3
        %4581 = vperm.xlu0 %4580, %v4092
        %v4582 = vpop.permute.xlu0 %4581
        %v4584 = vmul.f32 %v4554, %v248
        %v4585 = vmul.f32 %v4558, %v253
        %v4586 = vmul.f32 %v4562, %v258
        %v4587 = vmul.f32 %v4566, %v263
        %v4588 = vmul.f32 %v4570, %v268
        %v4589 = vmul.f32 %v4574, %v273
        %v4590 = vmul.f32 %v4578, %v278
        %v4591 = vmul.f32 %v4582, %v283
        %v4592 = vsel %vm895, %v4584, 0.0
        %v4593 = vrot.slane %v4592, 4
        %v4594 = vadd.f32 %v4592, %v4593
        %v4595 = vrot.slane %v4594, 2
        %v4596 = vadd.f32 %v4594, %v4595
        %v4597 = vrot.slane %v4596, 1
        %v4598 = vadd.f32 %v4596, %v4597
        %v4599 = vsel %vm895, %v4585, 0.0
        %v4600 = vrot.slane %v4599, 4
        %v4601 = vadd.f32 %v4599, %v4600
        %v4602 = vrot.slane %v4601, 2
        %v4603 = vadd.f32 %v4601, %v4602
        %v4604 = vrot.slane %v4603, 1
        %v4605 = vadd.f32 %v4603, %v4604
        %v4606 = vsel %vm895, %v4586, 0.0
        %v4607 = vrot.slane %v4606, 4
        %v4608 = vadd.f32 %v4606, %v4607
        %v4609 = vrot.slane %v4608, 2
        %v4610 = vadd.f32 %v4608, %v4609
        %v4611 = vrot.slane %v4610, 1
        %v4612 = vadd.f32 %v4610, %v4611
        %v4613 = vsel %vm895, %v4587, 0.0
        %v4614 = vrot.slane %v4613, 4
        %v4615 = vadd.f32 %v4613, %v4614
        %v4616 = vrot.slane %v4615, 2
        %v4617 = vadd.f32 %v4615, %v4616
        %v4618 = vrot.slane %v4617, 1
        %v4619 = vadd.f32 %v4617, %v4618
        %v4620 = vsel %vm895, %v4588, 0.0
        %v4621 = vrot.slane %v4620, 4
        %v4622 = vadd.f32 %v4620, %v4621
        %v4623 = vrot.slane %v4622, 2
        %v4624 = vadd.f32 %v4622, %v4623
        %v4625 = vrot.slane %v4624, 1
        %v4626 = vadd.f32 %v4624, %v4625
        %v4627 = vsel %vm895, %v4589, 0.0
        %v4628 = vrot.slane %v4627, 4
        %v4629 = vadd.f32 %v4627, %v4628
        %v4630 = vrot.slane %v4629, 2
        %v4631 = vadd.f32 %v4629, %v4630
        %v4632 = vrot.slane %v4631, 1
        %v4633 = vadd.f32 %v4631, %v4632
        %v4634 = vsel %vm895, %v4590, 0.0
        %v4635 = vrot.slane %v4634, 4
        %v4636 = vadd.f32 %v4634, %v4635
        %v4637 = vrot.slane %v4636, 2
        %v4638 = vadd.f32 %v4636, %v4637
        %v4639 = vrot.slane %v4638, 1
        %v4640 = vadd.f32 %v4638, %v4639
        %v4641 = vsel %vm895, %v4591, 0.0
        %v4642 = vrot.slane %v4641, 4
        %v4643 = vadd.f32 %v4641, %v4642
        %v4644 = vrot.slane %v4643, 2
        %v4645 = vadd.f32 %v4643, %v4644
        %v4646 = vrot.slane %v4645, 1
        %v4647 = vadd.f32 %v4645, %v4646
        %v4648 = vmul.f32 %v4598, %v4598
        %v4649 = vmul.f32 %v4605, %v4605
        %v4650 = vmul.f32 %v4612, %v4612
        %v4651 = vmul.f32 %v4619, %v4619
        %v4652 = vmul.f32 %v4626, %v4626
        %v4653 = vmul.f32 %v4633, %v4633
        %v4654 = vmul.f32 %v4640, %v4640
        %v4655 = vmul.f32 %v4647, %v4647
        %v4664 = vsel %vm371, %v4649, %v4648
        %v4665 = vsel %vm373, %v4650, %v4664
        %v4666 = vsel %vm375, %v4651, %v4665
        %v4667 = vsel %vm377, %v4652, %v4666
        %v4668 = vsel %vm379, %v4653, %v4667
        %v4669 = vsel %vm381, %v4654, %v4668
        %v4670 = vsel %vm383, %v4655, %v4669
        %4671 = vrot.lane.b32.xlu0 %v4670, 113
        %v4672 = vpop.permute.xlu0 %4671
        %v4674 = vsel %vm286, %v4672, 0.0
        %4675 = vadd.xlane.f32.xlu0 %v4674
        %v4676 = vpop.xlane.xlu0 %4675
        %v4677 = vadd.f32 %v4676, 1e-07
        %v4678 = vrsqrt.pop %v4677
        %v4680 = vrot.slane %v4678, 1
        %v4681 = vrot.slane %v4678, 2
        %v4682 = vrot.slane %v4678, 3
        %v4683 = vrot.slane %v4678, 4
        %v4684 = vrot.slane %v4678, 5
        %v4685 = vrot.slane %v4678, 6
        %v4686 = vrot.slane %v4678, 7
        %v4695 = vmul.f32 %v4598, %v4678
        %v4696 = vmul.f32 %v4605, %v4680
        %v4697 = vmul.f32 %v4612, %v4681
        %v4698 = vmul.f32 %v4619, %v4682
        %v4699 = vmul.f32 %v4626, %v4683
        %v4700 = vmul.f32 %v4633, %v4684
        %v4701 = vmul.f32 %v4640, %v4685
        %v4702 = vmul.f32 %v4647, %v4686
        %4703 = vset.pattern.permute.xlu0 4
        %4704 = vperm.xlu0 %4703, %v4085
        %v4705 = vpop.permute.xlu0 %4704
        %4707 = vset.pattern.permute.xlu0 4
        %4708 = vperm.xlu0 %4707, %v4086
        %v4709 = vpop.permute.xlu0 %4708
        %4711 = vset.pattern.permute.xlu0 4
        %4712 = vperm.xlu0 %4711, %v4087
        %v4713 = vpop.permute.xlu0 %4712
        %4715 = vset.pattern.permute.xlu0 4
        %4716 = vperm.xlu0 %4715, %v4088
        %v4717 = vpop.permute.xlu0 %4716
        %4719 = vset.pattern.permute.xlu0 4
        %4720 = vperm.xlu0 %4719, %v4089
        %v4721 = vpop.permute.xlu0 %4720
        %4723 = vset.pattern.permute.xlu0 4
        %4724 = vperm.xlu0 %4723, %v4090
        %v4725 = vpop.permute.xlu0 %4724
        %4727 = vset.pattern.permute.xlu0 4
        %4728 = vperm.xlu0 %4727, %v4091
        %v4729 = vpop.permute.xlu0 %4728
        %4731 = vset.pattern.permute.xlu0 4
        %4732 = vperm.xlu0 %4731, %v4092
        %v4733 = vpop.permute.xlu0 %4732
        %v4735 = vmul.f32 %v4705, %v248
        %v4736 = vmul.f32 %v4709, %v253
        %v4737 = vmul.f32 %v4713, %v258
        %v4738 = vmul.f32 %v4717, %v263
        %v4739 = vmul.f32 %v4721, %v268
        %v4740 = vmul.f32 %v4725, %v273
        %v4741 = vmul.f32 %v4729, %v278
        %v4742 = vmul.f32 %v4733, %v283
        %v4743 = vsel %vm1103, %v4735, 0.0
        %v4744 = vrot.slane %v4743, 4
        %v4745 = vadd.f32 %v4743, %v4744
        %v4746 = vrot.slane %v4745, 2
        %v4747 = vadd.f32 %v4745, %v4746
        %v4748 = vrot.slane %v4747, 1
        %v4749 = vadd.f32 %v4747, %v4748
        %v4750 = vsel %vm1103, %v4736, 0.0
        %v4751 = vrot.slane %v4750, 4
        %v4752 = vadd.f32 %v4750, %v4751
        %v4753 = vrot.slane %v4752, 2
        %v4754 = vadd.f32 %v4752, %v4753
        %v4755 = vrot.slane %v4754, 1
        %v4756 = vadd.f32 %v4754, %v4755
        %v4757 = vsel %vm1103, %v4737, 0.0
        %v4758 = vrot.slane %v4757, 4
        %v4759 = vadd.f32 %v4757, %v4758
        %v4760 = vrot.slane %v4759, 2
        %v4761 = vadd.f32 %v4759, %v4760
        %v4762 = vrot.slane %v4761, 1
        %v4763 = vadd.f32 %v4761, %v4762
        %v4764 = vsel %vm1103, %v4738, 0.0
        %v4765 = vrot.slane %v4764, 4
        %v4766 = vadd.f32 %v4764, %v4765
        %v4767 = vrot.slane %v4766, 2
        %v4768 = vadd.f32 %v4766, %v4767
        %v4769 = vrot.slane %v4768, 1
        %v4770 = vadd.f32 %v4768, %v4769
        %v4771 = vsel %vm1103, %v4739, 0.0
        %v4772 = vrot.slane %v4771, 4
        %v4773 = vadd.f32 %v4771, %v4772
        %v4774 = vrot.slane %v4773, 2
        %v4775 = vadd.f32 %v4773, %v4774
        %v4776 = vrot.slane %v4775, 1
        %v4777 = vadd.f32 %v4775, %v4776
        %v4778 = vsel %vm1103, %v4740, 0.0
        %v4779 = vrot.slane %v4778, 4
        %v4780 = vadd.f32 %v4778, %v4779
        %v4781 = vrot.slane %v4780, 2
        %v4782 = vadd.f32 %v4780, %v4781
        %v4783 = vrot.slane %v4782, 1
        %v4784 = vadd.f32 %v4782, %v4783
        %v4785 = vsel %vm1103, %v4741, 0.0
        %v4786 = vrot.slane %v4785, 4
        %v4787 = vadd.f32 %v4785, %v4786
        %v4788 = vrot.slane %v4787, 2
        %v4789 = vadd.f32 %v4787, %v4788
        %v4790 = vrot.slane %v4789, 1
        %v4791 = vadd.f32 %v4789, %v4790
        %v4792 = vsel %vm1103, %v4742, 0.0
        %v4793 = vrot.slane %v4792, 4
        %v4794 = vadd.f32 %v4792, %v4793
        %v4795 = vrot.slane %v4794, 2
        %v4796 = vadd.f32 %v4794, %v4795
        %v4797 = vrot.slane %v4796, 1
        %v4798 = vadd.f32 %v4796, %v4797
        %v4799 = vmul.f32 %v4749, %v4749
        %v4800 = vmul.f32 %v4756, %v4756
        %v4801 = vmul.f32 %v4763, %v4763
        %v4802 = vmul.f32 %v4770, %v4770
        %v4803 = vmul.f32 %v4777, %v4777
        %v4804 = vmul.f32 %v4784, %v4784
        %v4805 = vmul.f32 %v4791, %v4791
        %v4806 = vmul.f32 %v4798, %v4798
        %v4815 = vsel %vm371, %v4800, %v4799
        %v4816 = vsel %vm373, %v4801, %v4815
        %v4817 = vsel %vm375, %v4802, %v4816
        %v4818 = vsel %vm377, %v4803, %v4817
        %v4819 = vsel %vm379, %v4804, %v4818
        %v4820 = vsel %vm381, %v4805, %v4819
        %v4821 = vsel %vm383, %v4806, %v4820
        %4822 = vrot.lane.b32.xlu0 %v4821, 108
        %v4823 = vpop.permute.xlu0 %4822
        %v4825 = vsel %vm286, %v4823, 0.0
        %4826 = vadd.xlane.f32.xlu0 %v4825
        %v4827 = vpop.xlane.xlu0 %4826
        %v4828 = vadd.f32 %v4827, 1e-07
        %v4829 = vrsqrt.pop %v4828
        %v4831 = vrot.slane %v4829, 1
        %v4832 = vrot.slane %v4829, 2
        %v4833 = vrot.slane %v4829, 3
        %v4834 = vrot.slane %v4829, 4
        %v4835 = vrot.slane %v4829, 5
        %v4836 = vrot.slane %v4829, 6
        %v4837 = vrot.slane %v4829, 7
        %v4846 = vmul.f32 %v4749, %v4829
        %v4847 = vmul.f32 %v4756, %v4831
        %v4848 = vmul.f32 %v4763, %v4832
        %v4849 = vmul.f32 %v4770, %v4833
        %v4850 = vmul.f32 %v4777, %v4834
        %v4851 = vmul.f32 %v4784, %v4835
        %v4852 = vmul.f32 %v4791, %v4836
        %v4853 = vmul.f32 %v4798, %v4837
        %v4862 = vrot.slane %v4243, 7
        %v4863 = vsel %vm371, %v4862, %v4242
        %v4864 = vrot.slane %v4244, 6
        %v4865 = vsel %vm373, %v4864, %v4863
        %v4866 = vrot.slane %v4245, 5
        %v4867 = vsel %vm375, %v4866, %v4865
        %v4868 = vrot.slane %v4246, 4
        %v4869 = vsel %vm377, %v4868, %v4867
        %v4870 = vrot.slane %v4247, 3
        %v4871 = vsel %vm379, %v4870, %v4869
        %v4872 = vrot.slane %v4248, 2
        %v4873 = vsel %vm381, %v4872, %v4871
        %v4874 = vrot.slane %v4249, 1
        %v4875 = vsel %vm383, %v4874, %v4873
        %v4885 = vrot.slane %v4394, 7
        %v4886 = vsel %vm371, %v4885, %v4393
        %v4887 = vrot.slane %v4395, 6
        %v4888 = vsel %vm373, %v4887, %v4886
        %v4889 = vrot.slane %v4396, 5
        %v4890 = vsel %vm375, %v4889, %v4888
        %v4891 = vrot.slane %v4397, 4
        %v4892 = vsel %vm377, %v4891, %v4890
        %v4893 = vrot.slane %v4398, 3
        %v4894 = vsel %vm379, %v4893, %v4892
        %v4895 = vrot.slane %v4399, 2
        %v4896 = vsel %vm381, %v4895, %v4894
        %v4897 = vrot.slane %v4400, 1
        %v4898 = vsel %vm383, %v4897, %v4896
        %v4908 = vrot.slane %v4545, 7
        %v4909 = vsel %vm371, %v4908, %v4544
        %v4910 = vrot.slane %v4546, 6
        %v4911 = vsel %vm373, %v4910, %v4909
        %v4912 = vrot.slane %v4547, 5
        %v4913 = vsel %vm375, %v4912, %v4911
        %v4914 = vrot.slane %v4548, 4
        %v4915 = vsel %vm377, %v4914, %v4913
        %v4916 = vrot.slane %v4549, 3
        %v4917 = vsel %vm379, %v4916, %v4915
        %v4918 = vrot.slane %v4550, 2
        %v4919 = vsel %vm381, %v4918, %v4917
        %v4920 = vrot.slane %v4551, 1
        %v4921 = vsel %vm383, %v4920, %v4919
        %v4931 = vrot.slane %v4696, 7
        %v4932 = vsel %vm371, %v4931, %v4695
        %v4933 = vrot.slane %v4697, 6
        %v4934 = vsel %vm373, %v4933, %v4932
        %v4935 = vrot.slane %v4698, 5
        %v4936 = vsel %vm375, %v4935, %v4934
        %v4937 = vrot.slane %v4699, 4
        %v4938 = vsel %vm377, %v4937, %v4936
        %v4939 = vrot.slane %v4700, 3
        %v4940 = vsel %vm379, %v4939, %v4938
        %v4941 = vrot.slane %v4701, 2
        %v4942 = vsel %vm381, %v4941, %v4940
        %v4943 = vrot.slane %v4702, 1
        %v4944 = vsel %vm383, %v4943, %v4942
        %v4954 = vrot.slane %v4847, 7
        %v4955 = vsel %vm371, %v4954, %v4846
        %v4956 = vrot.slane %v4848, 6
        %v4957 = vsel %vm373, %v4956, %v4955
        %v4958 = vrot.slane %v4849, 5
        %v4959 = vsel %vm375, %v4958, %v4957
        %v4960 = vrot.slane %v4850, 4
        %v4961 = vsel %vm377, %v4960, %v4959
        %v4962 = vrot.slane %v4851, 3
        %v4963 = vsel %vm379, %v4962, %v4961
        %v4964 = vrot.slane %v4852, 2
        %v4965 = vsel %vm381, %v4964, %v4963
        %v4966 = vrot.slane %v4853, 1
        %v4967 = vsel %vm383, %v4966, %v4965
        %v4969 = vsel %vm286, %v4875, %v4898
        %vm4970 = vcmask 80896
        %v4971 = vsel %vm4970, %v4969, %v4921
        %vm4972 = vcmask 121856
        %v4973 = vsel %vm4972, %v4971, %v4944
        %vm4974 = vcmask 162816
        %v4975 = vsel %vm4974, %v4973, %v4967
        %vm4976 = vcmask 203776
        %v4977 = vsel %vm4976, %v4975, 0.0
        %4978 = vst [vmem:[%s137] sm:$0xff] %v4977
        %s4979 = sand.u32 %s71, 1
        %s4980 = scalar_lea.sflag [#allocation3], %s4979
        %s4981 = sand.u32 %s71, 1
        %s4982 = smul.addr %s4981, 8
        %s4983 = scalar_lea.vmem [#allocation2], %s4982
        // Predicated region
        $region29: #{tpu_custom_call.1} parent=27 // pred_check
          %p4984 = pneg %p81
        $region30: #{tpu_custom_call.1} parent=27 // pred_check_branch
          %4986 = sbr.rel (%p4984) target = $region32
        $region31: #{tpu_custom_call.1} parent=27 // pred_region
          %s4988 = ssub.s32 128, 128
          %4989 = vsyncadd %s4980, %s4988
          %s4990 = smul.addr %s16, 128
          %s4991 = scalar_lea.hbm %s2, %s4990
          %s4993 = sshll.u32 %s4983, 4
          %s4994 = int_to_ptr.vmem [resolvable:$true] %s4993
          %4996 = dma.vmem_to_hbm [thread:$0]  %s4994, 128, %s4991, %s4980
        $region32: #{tpu_custom_call.1} parent=27 // pred_fallthru
          _
      $region28: #{tpu_custom_call.1} parent=5 // pred_fallthru
        _
      %p4997 = scmp.le.s32.totalorder 2, %s11
      // Predicated region
      $region33: #{tpu_custom_call.1} parent=5 // pred_check
        %p4998 = pneg %p4997
      $region34: #{tpu_custom_call.1} parent=5 // pred_check_branch
        %5000 = sbr.rel (%p4998) target = $region36
      $region35: #{tpu_custom_call.1} parent=5 // pred_region
        %s5001 = ssub.s32 %s11, 2
        // Predicated region
        $region37: #{tpu_custom_call.1} parent=35 // pred_check
          %p5002 = pneg %p87
        $region38: #{tpu_custom_call.1} parent=35 // pred_check_branch
          %5004 = sbr.rel (%p5002) target = $region40
        $region39: #{tpu_custom_call.1} parent=35 // pred_region
          %s5005 = sand.u32 %s72, 1
          %s5006 = scalar_lea.sflag [#allocation3], %s5005
          %s5007 = sand.u32 %s72, 1
          %s5008 = smul.addr %s5007, 8
          %s5009 = scalar_lea.vmem [#allocation2], %s5008
          %5010 = dma.done %s5006, 128
        $region40: #{tpu_custom_call.1} parent=35 // pred_fallthru
          _
      $region36: #{tpu_custom_call.1} parent=5 // pred_fallthru
        _
    $region6: #{tpu_custom_call.1} parent=1 // loop_footer
      %s15 = sadd.s32 1, %s11
    $region7: #{tpu_custom_call.1} parent=1 // loop_footer_branch
      %10 = sbr.rel target = $region3
    $region8: #{tpu_custom_call.1} parent=1 // loop_exit
      _
    %5011 = vsyncpa [#allocation3], 1
    %s5012 = scalar_lea.sflag [#allocation3], 1
    %5013 = vsyncpa %s5012, 1

</llo_original>
